<compile_context>
chip_gen: v5e
topology: v5e:2x2
jax: 0.10.0
libtpu: 0.0.40
codegen_flags: <defaults>
</compile_context>

<pallas_src>
import functools

import jax
import jax.numpy as jnp
from jax import lax
from jax.experimental import pallas as pl
from jax.experimental.pallas import tpu as pltpu


def _round_up(v, m):
    return ((v + m - 1) // m) * m


def _conv1_window(tw):
    """conv1 output width (mult of 16 -> free sublane folds) and input tile width."""
    w1 = _round_up(tw + 2, 16)
    return w1, w1 + 2


def _rcu_kernel(x_hbm, w1_ref, b1_ref, w2_ref, b2_ref, out_ref, xbuf, sem, *,
                img_h, img_w):
    """One (batch, row-tile, col-tile) grid step.

    x_hbm   : (B, Hp+4, Wpad, Cp)  zero-padded NHWC input, resident in HBM.
    w*_ref  : (9*Cp, Cp) bf16      tap-major (kh, kw, cin) x cout weights.
    b*_ref  : (1, Cp)   f32
    out_ref : (TH, TW, Cp)
    xbuf    : (2, TH+4, TWin, Cp)  double-buffered input halo window.
    sem     : (2,) DMA semaphores.
    """
    TH, TW, Cp = out_ref.shape
    TH4 = TH + 4
    W1, TWin = _conv1_window(TW)        # conv1 window width, input tile width
    H1 = TH + 2
    K3 = 3 * Cp

    b = pl.program_id(0)
    t = pl.program_id(1)
    w = pl.program_id(2)
    n_w = pl.num_programs(2)

    # ---- manual halo DMA: double-buffered along the (sequential) width axis ----
    def fetch(ww, slot):
        pltpu.make_async_copy(
            x_hbm.at[b, pl.ds(t * TH, TH4), pl.ds(ww * TW, TWin), :],
            xbuf.at[slot], sem.at[slot]).start()

    slot = lax.rem(w, 2)

    @pl.when(w == 0)                     # prime the pipeline for this tile row
    def _():
        fetch(0, 0)

    pltpu.make_async_copy(               # wait for the current tile
        x_hbm.at[0, pl.ds(0, TH4), pl.ds(0, TWin), :],
        xbuf.at[slot], sem.at[slot]).wait()

    @pl.when(w + 1 < n_w)                # prefetch the next width tile
    def _():
        fetch(w + 1, 1 - slot)

    x = xbuf[slot]                                            # (TH4, TWin, Cp)
    a = jnp.maximum(x, 0.0).astype(jnp.bfloat16)              # ReLU(x), MXU operand

    # ---- conv1: 3 accumulated matmuls (one per kernel row), K = 3*Cp ---------
    acc = None
    for ki in range(3):
        slab = jnp.concatenate(
            [a[ki:ki + H1, kj:kj + W1, :] for kj in range(3)],
            axis=-1).reshape(H1 * W1, K3)                     # free fold (W1 % 16 == 0)
        p = jnp.dot(slab, w1_ref[ki * K3:(ki + 1) * K3, :],
                    preferred_element_type=jnp.float32)
        acc = p if acc is None else acc + p
    mid = jnp.maximum(acc + b1_ref[...], 0.0).reshape(H1, W1, Cp)

    # conv2's implicit zero padding: zero intermediate pixels outside the true
    # image.  2-D border mask only (no (H,W,C) iotas), fused into the bf16 cast.
    rows = lax.broadcasted_iota(jnp.int32, (H1, W1), 0) + (t * TH - 1)
    cols = lax.broadcasted_iota(jnp.int32, (H1, W1), 1) + (w * TW - 1)
    inside = (rows >= 0) & (rows < img_h) & (cols >= 0) & (cols < img_w)
    mid = (mid * inside.astype(jnp.float32)[:, :, None]).astype(jnp.bfloat16)

    # ---- conv2: same per-kernel-row structure over the (TH, TW) output tile ---
    acc = None
    for ki in range(3):
        slab = jnp.concatenate(
            [mid[ki:ki + TH, kj:kj + TW, :] for kj in range(3)],
            axis=-1).reshape(TH * TW, K3)
        p = jnp.dot(slab, w2_ref[ki * K3:(ki + 1) * K3, :],
                    preferred_element_type=jnp.float32)
        acc = p if acc is None else acc + p
    out = (acc + b2_ref[...]).reshape(TH, TW, Cp)

    # ---- residual add with the ORIGINAL (un-activated) x ----------------------
    skip = x[2:2 + TH, 2:2 + TW, :].astype(jnp.float32)
    out_ref[...] = (out + skip).astype(out_ref.dtype)


def residual_conv_unit(x_nchw, w1, b1, w2, b2, *,
                       row_tile=16, col_tile=128, vmem_limit_mb=32):
    """ResidualConvUnit_custom.forward (bn=False, ReLU).

    x_nchw: (B, C, H, W); w: (C, C, 3, 3) PyTorch OIHW; b: (C,).
    Defaults are sized for v7x (64 MiB VMEM); on v5e/v6e larger tiles
    (row_tile=32, col_tile=256, vmem_limit_mb=64) shave halo/grid overhead.
    """
    B, C, H, W = x_nchw.shape
    Cp = _round_up(C, 128)                               # lane-dense channels
    TH = max(1, min(row_tile, H))
    TW = max(8, (min(col_tile, _round_up(W, 8)) // 8) * 8)
    Hp, Wp = _round_up(H, TH), _round_up(W, TW)          # pad up; no divisibility cliff
    nT, nW = Hp // TH, Wp // TW
    W1, TWin = _conv1_window(TW)

    # NHWC, channels padded to Cp, 2-pixel zero halo (+ right/bottom slack so
    # every tile's DMA window is in bounds).  No overlapping-tile gather.
    x = jnp.transpose(x_nchw, (0, 2, 3, 1))
    pad_r = (nW - 1) * TW + TWin - (W + 2)
    xpad = jnp.pad(x, ((0, 0), (2, Hp - H + 2), (2, pad_r), (0, Cp - C)))

    def pack_w(wt):   # (Cout, Cin, 3, 3) -> (9*Cp, Cp), (kh, kw, cin)-major, bf16
        wp = jnp.pad(wt, ((0, Cp - C), (0, Cp - C), (0, 0), (0, 0)))
        return jnp.transpose(wp, (2, 3, 1, 0)).reshape(9 * Cp, Cp).astype(jnp.bfloat16)

    def pack_b(bv):
        return jnp.pad(bv, (0, Cp - C)).reshape(1, Cp).astype(jnp.float32)

    w1k, w2k, b1k, b2k = pack_w(w1), pack_w(w2), pack_b(b1), pack_b(b2)

    def const_spec(shape):
        # Grid-invariant operands: single-buffer when the JAX build supports it.
        idx = lambda b, t, w: (0,) * len(shape)
        try:
            return pl.BlockSpec(shape, idx, pipeline_mode=pl.Buffered(1))
        except Exception:
            return pl.BlockSpec(shape, idx)

    kernel = functools.partial(_rcu_kernel, img_h=H, img_w=W)

    out_pad = pl.pallas_call(
        kernel,
        out_shape=jax.ShapeDtypeStruct((B, Hp, Wp, Cp), x_nchw.dtype),
        grid_spec=pltpu.PrefetchScalarGridSpec(
            num_scalar_prefetch=0,
            grid=(B, nT, nW),
            in_specs=[
                pl.BlockSpec(memory_space=pl.ANY),       # input stays in HBM
                const_spec((9 * Cp, Cp)),
                const_spec((1, Cp)),
                const_spec((9 * Cp, Cp)),
                const_spec((1, Cp)),
            ],
            out_specs=pl.BlockSpec((None, TH, TW, Cp),
                                   lambda b, t, w: (b, t, w, 0)),
            scratch_shapes=[
                pltpu.VMEM((2, TH + 4, TWin, Cp), x_nchw.dtype),
                pltpu.SemaphoreType.DMA((2,)),
            ]),
        compiler_params=pltpu.CompilerParams(
            dimension_semantics=("parallel", "parallel", "arbitrary"),
            vmem_limit_bytes=vmem_limit_mb * 1024 * 1024),
    )(xpad, w1k, b1k, w2k, b2k)

    out = out_pad[:, :H, :W, :C]
    return jnp.transpose(out, (0, 3, 1, 2))              # back to NCHW


def _reference(x, w1, b1, w2, b2, conv_dtype=jnp.float32):
    """Pure-JAX reference of the PyTorch forward (bn=False, ReLU).

    conv_dtype=bf16 emulates the kernel's bf16 MXU operands (f32 accumulation).
    """
    dn = lax.conv_dimension_numbers(x.shape, w1.shape, ("NCHW", "OIHW", "NCHW"))

    def conv(v, w):
        return lax.conv_general_dilated(
            v.astype(conv_dtype), w.astype(conv_dtype), (1, 1), ((1, 1), (1, 1)),
            dimension_numbers=dn, preferred_element_type=jnp.float32)

    out = jnp.maximum(x, 0.0)
    out = conv(out, w1) + b1[None, :, None, None]
    out = jnp.maximum(out, 0.0)
    out = conv(out, w2) + b2[None, :, None, None]
    return out + x


if __name__ == "__main__":
    key = jax.random.PRNGKey(0)
    kx, kw1, kb1, kw2, kb2, kx2 = jax.random.split(key, 6)

    C = 4
    w1 = jax.random.normal(kw1, (C, C, 3, 3), jnp.float32) * 0.1
    b1 = jax.random.normal(kb1, (C,), jnp.float32) * 0.1
    w2 = jax.random.normal(kw2, (C, C, 3, 3), jnp.float32) * 0.1
    b2 = jax.random.normal(kb2, (C,), jnp.float32) * 0.1

    def check(x, **tiles):
        out = jax.block_until_ready(residual_conv_unit(x, w1, b1, w2, b2, **tiles))
        assert out.shape == x.shape
        # Tight check vs. a reference with matching numerics (bf16 operands, f32 acc).
        ref_bf16 = _reference(x, w1, b1, w2, b2, jnp.bfloat16)
        err_b = float(jnp.max(jnp.abs(out - ref_bf16)))
        assert jnp.allclose(out, ref_bf16, atol=2e-3, rtol=2e-3), err_b
        # Sanity check vs. exact f32 module semantics (difference = bf16 rounding).
        ref_f32 = _reference(x, w1, b1, w2, b2, jnp.float32)
        err_f = float(jnp.max(jnp.abs(out - ref_f32)))
        assert jnp.allclose(out, ref_f32, atol=5e-2, rtol=5e-2), err_f

    # 2x2x2 grid: exercises halo tiles, border masks and the width-tile prefetch.
    x1 = jax.random.normal(kx, (2, C, 16, 16), jnp.float32)
    check(x1, row_tile=8, col_tile=8)

    # Non-divisible H/W: exercises the padded junk-tail tiles + masks.
    x2 = jax.random.normal(kx2, (1, C, 13, 12), jnp.float32)
    check(x2, row_tile=8, col_tile=8)

    print("KERNEL_OK")
</pallas_src>

<mosaic_0001>
module attributes {stable_mosaic.version = 11 : i64} {
  func.func @_rcu_kernel(%arg0: i32, %arg1: i32, %arg2: i32, %arg3: memref<2x20x26x128xf32, #tpu.memory_space<any>>, %arg4: memref<1152x128xbf16, #tpu.memory_space<vmem>>, %arg5: memref<1x128xf32, #tpu.memory_space<vmem>>, %arg6: memref<1152x128xbf16, #tpu.memory_space<vmem>>, %arg7: memref<1x128xf32, #tpu.memory_space<vmem>>, %arg8: memref<1x8x8x128xf32, #tpu.memory_space<vmem>>, %arg9: memref<2x12x18x128xf32, #tpu.memory_space<vmem>>, %arg10: memref<2x!tpu.dma_semaphore, #tpu.memory_space<semaphore_mem>>) attributes {dimension_semantics = [#tpu.dimension_semantics<parallel>, #tpu.dimension_semantics<parallel>, #tpu.dimension_semantics<arbitrary>], iteration_bounds = array<i64: 2, 2, 2>, scalar_prefetch = 0 : i64, scratch_operands = 2 : i64, tpu.core_type = #tpu.core_type<tc>, window_params = [{}, {pipeline_mode = #tpu.pipeline_mode<synchronous>, transform_indices = @transform_1, window_bounds = array<i64: 1152, 128>}, {pipeline_mode = #tpu.pipeline_mode<synchronous>, transform_indices = @transform_2, window_bounds = array<i64: 1, 128>}, {pipeline_mode = #tpu.pipeline_mode<synchronous>, transform_indices = @transform_3, window_bounds = array<i64: 1152, 128>}, {pipeline_mode = #tpu.pipeline_mode<synchronous>, transform_indices = @transform_4, window_bounds = array<i64: 1, 128>}, {transform_indices = @transform_5, window_bounds = array<i64: 1, 8, 8, 128>}]} {
    %c2_i32 = arith.constant 2 : i32
    %0 = arith.remsi %arg2, %c2_i32 : i32
    %c0_i32 = arith.constant 0 : i32
    %1 = arith.cmpi eq, %arg2, %c0_i32 : i32
    %2 = arith.extui %1 : i1 to i32
    %c0_i32_0 = arith.constant 0 : i32
    %3 = arith.cmpi ne, %2, %c0_i32_0 : i32
    scf.if %3 {
      %c8_i32_43 = arith.constant 8 : i32
      %108 = arith.muli %arg1, %c8_i32_43 : i32
      %c0_i32_44 = arith.constant 0 : i32
      %c0_i32_45 = arith.constant 0 : i32
      %c0_i32_46 = arith.constant 0 : i32
      %c0_i32_47 = arith.constant 0 : i32
      %109 = tpu.memref_slice %arg3[%arg0, %108, %c0_i32_46, %c0_i32_47] : memref<2x20x26x128xf32, #tpu.memory_space<any>> -> memref<1x12x18x128xf32, #tpu.memory_space<any>>
      %110 = tpu.memref_squeeze %109 : memref<1x12x18x128xf32, #tpu.memory_space<any>> -> memref<12x18x128xf32, #tpu.memory_space<any>>
      %c0_i32_48 = arith.constant 0 : i32
      %c0_i32_49 = arith.constant 0 : i32
      %c0_i32_50 = arith.constant 0 : i32
      %111 = tpu.memref_slice %arg9[%c0_i32_44, %c0_i32_48, %c0_i32_49, %c0_i32_50] : memref<2x12x18x128xf32, #tpu.memory_space<vmem>> -> memref<1x12x18x128xf32, #tpu.memory_space<vmem>>
      %112 = tpu.memref_squeeze %111 : memref<1x12x18x128xf32, #tpu.memory_space<vmem>> -> memref<12x18x128xf32, #tpu.memory_space<vmem>>
      %113 = tpu.memref_slice %arg10[%c0_i32_45] : memref<2x!tpu.dma_semaphore, #tpu.memory_space<semaphore_mem>> -> memref<1x!tpu.dma_semaphore, #tpu.memory_space<semaphore_mem>>
      %114 = tpu.memref_squeeze %113 : memref<1x!tpu.dma_semaphore, #tpu.memory_space<semaphore_mem>> -> memref<!tpu.dma_semaphore, #tpu.memory_space<semaphore_mem>>
      tpu.enqueue_dma source(%110 : memref<12x18x128xf32, #tpu.memory_space<any>>) target(%112 : memref<12x18x128xf32, #tpu.memory_space<vmem>>) target_semaphore(%114 : memref<!tpu.dma_semaphore, #tpu.memory_space<semaphore_mem>>)
    } else {
    }
    %c0_i32_1 = arith.constant 0 : i32
    %c0_i32_2 = arith.constant 0 : i32
    %c0_i32_3 = arith.constant 0 : i32
    %c0_i32_4 = arith.constant 0 : i32
    %4 = tpu.memref_slice %arg3[%c0_i32_1, %c0_i32_2, %c0_i32_3, %c0_i32_4] : memref<2x20x26x128xf32, #tpu.memory_space<any>> -> memref<1x12x18x128xf32, #tpu.memory_space<any>>
    %5 = tpu.memref_squeeze %4 : memref<1x12x18x128xf32, #tpu.memory_space<any>> -> memref<12x18x128xf32, #tpu.memory_space<any>>
    %c0_i32_5 = arith.constant 0 : i32
    %c0_i32_6 = arith.constant 0 : i32
    %c0_i32_7 = arith.constant 0 : i32
    %6 = tpu.memref_slice %arg9[%0, %c0_i32_5, %c0_i32_6, %c0_i32_7] : memref<2x12x18x128xf32, #tpu.memory_space<vmem>> -> memref<1x12x18x128xf32, #tpu.memory_space<vmem>>
    %7 = tpu.memref_squeeze %6 : memref<1x12x18x128xf32, #tpu.memory_space<vmem>> -> memref<12x18x128xf32, #tpu.memory_space<vmem>>
    %8 = tpu.memref_slice %arg10[%0] : memref<2x!tpu.dma_semaphore, #tpu.memory_space<semaphore_mem>> -> memref<1x!tpu.dma_semaphore, #tpu.memory_space<semaphore_mem>>
    %9 = tpu.memref_squeeze %8 : memref<1x!tpu.dma_semaphore, #tpu.memory_space<semaphore_mem>> -> memref<!tpu.dma_semaphore, #tpu.memory_space<semaphore_mem>>
    tpu.wait_dma2 semaphore(%9 : memref<!tpu.dma_semaphore, #tpu.memory_space<semaphore_mem>>) src(%5 : memref<12x18x128xf32, #tpu.memory_space<any>>) dst(%7 : memref<12x18x128xf32, #tpu.memory_space<vmem>>)
    %c1_i32 = arith.constant 1 : i32
    %10 = arith.addi %arg2, %c1_i32 : i32
    %c2_i32_8 = arith.constant 2 : i32
    %11 = arith.cmpi slt, %10, %c2_i32_8 : i32
    %12 = arith.extui %11 : i1 to i32
    %c0_i32_9 = arith.constant 0 : i32
    %13 = arith.cmpi ne, %12, %c0_i32_9 : i32
    scf.if %13 {
      %c1_i32_43 = arith.constant 1 : i32
      %108 = arith.addi %arg2, %c1_i32_43 : i32
      %c1_i32_44 = arith.constant 1 : i32
      %109 = arith.subi %c1_i32_44, %0 : i32
      %c8_i32_45 = arith.constant 8 : i32
      %110 = arith.muli %arg1, %c8_i32_45 : i32
      %c8_i32_46 = arith.constant 8 : i32
      %111 = arith.muli %108, %c8_i32_46 : i32
      %c0_i32_47 = arith.constant 0 : i32
      %112 = tpu.memref_slice %arg3[%arg0, %110, %111, %c0_i32_47] : memref<2x20x26x128xf32, #tpu.memory_space<any>> -> memref<1x12x18x128xf32, #tpu.memory_space<any>>
      %113 = tpu.memref_squeeze %112 : memref<1x12x18x128xf32, #tpu.memory_space<any>> -> memref<12x18x128xf32, #tpu.memory_space<any>>
      %c0_i32_48 = arith.constant 0 : i32
      %c0_i32_49 = arith.constant 0 : i32
      %c0_i32_50 = arith.constant 0 : i32
      %114 = tpu.memref_slice %arg9[%109, %c0_i32_48, %c0_i32_49, %c0_i32_50] : memref<2x12x18x128xf32, #tpu.memory_space<vmem>> -> memref<1x12x18x128xf32, #tpu.memory_space<vmem>>
      %115 = tpu.memref_squeeze %114 : memref<1x12x18x128xf32, #tpu.memory_space<vmem>> -> memref<12x18x128xf32, #tpu.memory_space<vmem>>
      %116 = tpu.memref_slice %arg10[%109] : memref<2x!tpu.dma_semaphore, #tpu.memory_space<semaphore_mem>> -> memref<1x!tpu.dma_semaphore, #tpu.memory_space<semaphore_mem>>
      %117 = tpu.memref_squeeze %116 : memref<1x!tpu.dma_semaphore, #tpu.memory_space<semaphore_mem>> -> memref<!tpu.dma_semaphore, #tpu.memory_space<semaphore_mem>>
      tpu.enqueue_dma source(%113 : memref<12x18x128xf32, #tpu.memory_space<any>>) target(%115 : memref<12x18x128xf32, #tpu.memory_space<vmem>>) target_semaphore(%117 : memref<!tpu.dma_semaphore, #tpu.memory_space<semaphore_mem>>)
    } else {
    }
    %14 = arith.index_cast %0 : i32 to index
    %c0 = arith.constant 0 : index
    %c0_10 = arith.constant 0 : index
    %c0_11 = arith.constant 0 : index
    %15 = vector.load %arg9[%14, %c0, %c0_10, %c0_11] : memref<2x12x18x128xf32, #tpu.memory_space<vmem>>, vector<1x12x18x128xf32>
    %16 = vector.shape_cast %15 : vector<1x12x18x128xf32> to vector<12x18x128xf32>
    %cst = arith.constant 0.000000e+00 : f32
    %17 = vector.broadcast %cst : f32 to vector<12x18x128xf32>
    %18 = arith.maximumf %16, %17 : vector<12x18x128xf32>
    %19 = arith.truncf %18 : vector<12x18x128xf32> to vector<12x18x128xbf16>
    %20 = vector.extract_strided_slice %19 {offsets = [0, 0, 0], sizes = [10, 16, 128], strides = [1, 1, 1]} : vector<12x18x128xbf16> to vector<10x16x128xbf16>
    %21 = vector.extract_strided_slice %19 {offsets = [0, 1, 0], sizes = [10, 16, 128], strides = [1, 1, 1]} : vector<12x18x128xbf16> to vector<10x16x128xbf16>
    %22 = vector.extract_strided_slice %19 {offsets = [0, 2, 0], sizes = [10, 16, 128], strides = [1, 1, 1]} : vector<12x18x128xbf16> to vector<10x16x128xbf16>
    %23 = tpu.concatenate %20, %21, %22 in 2 : vector<10x16x128xbf16>, vector<10x16x128xbf16>, vector<10x16x128xbf16> -> vector<10x16x384xbf16>
    %24 = vector.shape_cast %23 : vector<10x16x384xbf16> to vector<160x384xbf16>
    %c0_12 = arith.constant 0 : index
    %c0_13 = arith.constant 0 : index
    %25 = vector.load %arg4[%c0_12, %c0_13] : memref<1152x128xbf16, #tpu.memory_space<vmem>>, vector<384x128xbf16>
    %cst_14 = arith.constant dense<0.000000e+00> : vector<160x128xf32>
    %26 = tpu.matmul %24, %25, %cst_14 {dimension_numbers = #tpu.dot_dimension_numbers<[1], [0], [0], [1], [0, 0, 1, 1], [], []>} : vector<160x384xbf16>, vector<384x128xbf16>, vector<160x128xf32> -> vector<160x128xf32>
    %27 = vector.extract_strided_slice %19 {offsets = [1, 0, 0], sizes = [10, 16, 128], strides = [1, 1, 1]} : vector<12x18x128xbf16> to vector<10x16x128xbf16>
    %28 = vector.extract_strided_slice %19 {offsets = [1, 1, 0], sizes = [10, 16, 128], strides = [1, 1, 1]} : vector<12x18x128xbf16> to vector<10x16x128xbf16>
    %29 = vector.extract_strided_slice %19 {offsets = [1, 2, 0], sizes = [10, 16, 128], strides = [1, 1, 1]} : vector<12x18x128xbf16> to vector<10x16x128xbf16>
    %30 = tpu.concatenate %27, %28, %29 in 2 : vector<10x16x128xbf16>, vector<10x16x128xbf16>, vector<10x16x128xbf16> -> vector<10x16x384xbf16>
    %31 = vector.shape_cast %30 : vector<10x16x384xbf16> to vector<160x384xbf16>
    %c384 = arith.constant 384 : index
    %c0_15 = arith.constant 0 : index
    %32 = vector.load %arg4[%c384, %c0_15] : memref<1152x128xbf16, #tpu.memory_space<vmem>>, vector<384x128xbf16>
    %cst_16 = arith.constant dense<0.000000e+00> : vector<160x128xf32>
    %33 = tpu.matmul %31, %32, %cst_16 {dimension_numbers = #tpu.dot_dimension_numbers<[1], [0], [0], [1], [0, 0, 1, 1], [], []>} : vector<160x384xbf16>, vector<384x128xbf16>, vector<160x128xf32> -> vector<160x128xf32>
    %34 = arith.addf %26, %33 : vector<160x128xf32>
    %35 = vector.extract_strided_slice %19 {offsets = [2, 0, 0], sizes = [10, 16, 128], strides = [1, 1, 1]} : vector<12x18x128xbf16> to vector<10x16x128xbf16>
    %36 = vector.extract_strided_slice %19 {offsets = [2, 1, 0], sizes = [10, 16, 128], strides = [1, 1, 1]} : vector<12x18x128xbf16> to vector<10x16x128xbf16>
    %37 = vector.extract_strided_slice %19 {offsets = [2, 2, 0], sizes = [10, 16, 128], strides = [1, 1, 1]} : vector<12x18x128xbf16> to vector<10x16x128xbf16>
    %38 = tpu.concatenate %35, %36, %37 in 2 : vector<10x16x128xbf16>, vector<10x16x128xbf16>, vector<10x16x128xbf16> -> vector<10x16x384xbf16>
    %39 = vector.shape_cast %38 : vector<10x16x384xbf16> to vector<160x384xbf16>
    %c768 = arith.constant 768 : index
    %c0_17 = arith.constant 0 : index
    %40 = vector.load %arg4[%c768, %c0_17] : memref<1152x128xbf16, #tpu.memory_space<vmem>>, vector<384x128xbf16>
    %cst_18 = arith.constant dense<0.000000e+00> : vector<160x128xf32>
    %41 = tpu.matmul %39, %40, %cst_18 {dimension_numbers = #tpu.dot_dimension_numbers<[1], [0], [0], [1], [0, 0, 1, 1], [], []>} : vector<160x384xbf16>, vector<384x128xbf16>, vector<160x128xf32> -> vector<160x128xf32>
    %42 = arith.addf %34, %41 : vector<160x128xf32>
    %c0_19 = arith.constant 0 : index
    %c0_20 = arith.constant 0 : index
    %43 = vector.load %arg5[%c0_19, %c0_20] : memref<1x128xf32, #tpu.memory_space<vmem>>, vector<1x128xf32>
    %44 = vector.broadcast %43 : vector<1x128xf32> to vector<160x128xf32>
    %45 = arith.addf %42, %44 : vector<160x128xf32>
    %cst_21 = arith.constant 0.000000e+00 : f32
    %46 = vector.broadcast %cst_21 : f32 to vector<160x128xf32>
    %47 = arith.maximumf %45, %46 : vector<160x128xf32>
    %48 = vector.shape_cast %47 : vector<160x128xf32> to vector<10x16x128xf32>
    %49 = tpu.iota {dimensions = array<i32: 0>} : vector<10x16xi32>
    %c8_i32 = arith.constant 8 : i32
    %50 = arith.muli %arg1, %c8_i32 : i32
    %c1_i32_22 = arith.constant 1 : i32
    %51 = arith.subi %50, %c1_i32_22 : i32
    %52 = vector.broadcast %51 : i32 to vector<10x16xi32>
    %53 = arith.addi %49, %52 : vector<10x16xi32>
    %54 = tpu.iota {dimensions = array<i32: 1>} : vector<10x16xi32>
    %c8_i32_23 = arith.constant 8 : i32
    %55 = arith.muli %arg2, %c8_i32_23 : i32
    %c1_i32_24 = arith.constant 1 : i32
    %56 = arith.subi %55, %c1_i32_24 : i32
    %57 = vector.broadcast %56 : i32 to vector<10x16xi32>
    %58 = arith.addi %54, %57 : vector<10x16xi32>
    %c0_i32_25 = arith.constant 0 : i32
    %59 = vector.broadcast %c0_i32_25 : i32 to vector<10x16xi32>
    %60 = arith.cmpi sge, %53, %59 : vector<10x16xi32>
    %c16_i32 = arith.constant 16 : i32
    %61 = vector.broadcast %c16_i32 : i32 to vector<10x16xi32>
    %62 = arith.cmpi slt, %53, %61 : vector<10x16xi32>
    %63 = arith.andi %60, %62 : vector<10x16xi1>
    %c0_i32_26 = arith.constant 0 : i32
    %64 = vector.broadcast %c0_i32_26 : i32 to vector<10x16xi32>
    %65 = arith.cmpi sge, %58, %64 : vector<10x16xi32>
    %66 = arith.andi %63, %65 : vector<10x16xi1>
    %c16_i32_27 = arith.constant 16 : i32
    %67 = vector.broadcast %c16_i32_27 : i32 to vector<10x16xi32>
    %68 = arith.cmpi slt, %58, %67 : vector<10x16xi32>
    %69 = arith.andi %66, %68 : vector<10x16xi1>
    %70 = arith.extui %69 : vector<10x16xi1> to vector<10x16xi32>
    %71 = arith.sitofp %70 : vector<10x16xi32> to vector<10x16xf32>
    %72 = vector.shape_cast %71 : vector<10x16xf32> to vector<10x16x1xf32>
    %73 = vector.broadcast %72 : vector<10x16x1xf32> to vector<10x16x128xf32>
    %74 = arith.mulf %48, %73 : vector<10x16x128xf32>
    %75 = arith.truncf %74 : vector<10x16x128xf32> to vector<10x16x128xbf16>
    %76 = vector.extract_strided_slice %75 {offsets = [0, 0, 0], sizes = [8, 8, 128], strides = [1, 1, 1]} : vector<10x16x128xbf16> to vector<8x8x128xbf16>
    %77 = vector.extract_strided_slice %75 {offsets = [0, 1, 0], sizes = [8, 8, 128], strides = [1, 1, 1]} : vector<10x16x128xbf16> to vector<8x8x128xbf16>
    %78 = vector.extract_strided_slice %75 {offsets = [0, 2, 0], sizes = [8, 8, 128], strides = [1, 1, 1]} : vector<10x16x128xbf16> to vector<8x8x128xbf16>
    %79 = tpu.concatenate %76, %77, %78 in 2 : vector<8x8x128xbf16>, vector<8x8x128xbf16>, vector<8x8x128xbf16> -> vector<8x8x384xbf16>
    %80 = vector.shape_cast %79 : vector<8x8x384xbf16> to vector<64x384xbf16>
    %c0_28 = arith.constant 0 : index
    %c0_29 = arith.constant 0 : index
    %81 = vector.load %arg6[%c0_28, %c0_29] : memref<1152x128xbf16, #tpu.memory_space<vmem>>, vector<384x128xbf16>
    %cst_30 = arith.constant dense<0.000000e+00> : vector<64x128xf32>
    %82 = tpu.matmul %80, %81, %cst_30 {dimension_numbers = #tpu.dot_dimension_numbers<[1], [0], [0], [1], [0, 0, 1, 1], [], []>} : vector<64x384xbf16>, vector<384x128xbf16>, vector<64x128xf32> -> vector<64x128xf32>
    %83 = vector.extract_strided_slice %75 {offsets = [1, 0, 0], sizes = [8, 8, 128], strides = [1, 1, 1]} : vector<10x16x128xbf16> to vector<8x8x128xbf16>
    %84 = vector.extract_strided_slice %75 {offsets = [1, 1, 0], sizes = [8, 8, 128], strides = [1, 1, 1]} : vector<10x16x128xbf16> to vector<8x8x128xbf16>
    %85 = vector.extract_strided_slice %75 {offsets = [1, 2, 0], sizes = [8, 8, 128], strides = [1, 1, 1]} : vector<10x16x128xbf16> to vector<8x8x128xbf16>
    %86 = tpu.concatenate %83, %84, %85 in 2 : vector<8x8x128xbf16>, vector<8x8x128xbf16>, vector<8x8x128xbf16> -> vector<8x8x384xbf16>
    %87 = vector.shape_cast %86 : vector<8x8x384xbf16> to vector<64x384xbf16>
    %c384_31 = arith.constant 384 : index
    %c0_32 = arith.constant 0 : index
    %88 = vector.load %arg6[%c384_31, %c0_32] : memref<1152x128xbf16, #tpu.memory_space<vmem>>, vector<384x128xbf16>
    %cst_33 = arith.constant dense<0.000000e+00> : vector<64x128xf32>
    %89 = tpu.matmul %87, %88, %cst_33 {dimension_numbers = #tpu.dot_dimension_numbers<[1], [0], [0], [1], [0, 0, 1, 1], [], []>} : vector<64x384xbf16>, vector<384x128xbf16>, vector<64x128xf32> -> vector<64x128xf32>
    %90 = arith.addf %82, %89 : vector<64x128xf32>
    %91 = vector.extract_strided_slice %75 {offsets = [2, 0, 0], sizes = [8, 8, 128], strides = [1, 1, 1]} : vector<10x16x128xbf16> to vector<8x8x128xbf16>
    %92 = vector.extract_strided_slice %75 {offsets = [2, 1, 0], sizes = [8, 8, 128], strides = [1, 1, 1]} : vector<10x16x128xbf16> to vector<8x8x128xbf16>
    %93 = vector.extract_strided_slice %75 {offsets = [2, 2, 0], sizes = [8, 8, 128], strides = [1, 1, 1]} : vector<10x16x128xbf16> to vector<8x8x128xbf16>
    %94 = tpu.concatenate %91, %92, %93 in 2 : vector<8x8x128xbf16>, vector<8x8x128xbf16>, vector<8x8x128xbf16> -> vector<8x8x384xbf16>
    %95 = vector.shape_cast %94 : vector<8x8x384xbf16> to vector<64x384xbf16>
    %c768_34 = arith.constant 768 : index
    %c0_35 = arith.constant 0 : index
    %96 = vector.load %arg6[%c768_34, %c0_35] : memref<1152x128xbf16, #tpu.memory_space<vmem>>, vector<384x128xbf16>
    %cst_36 = arith.constant dense<0.000000e+00> : vector<64x128xf32>
    %97 = tpu.matmul %95, %96, %cst_36 {dimension_numbers = #tpu.dot_dimension_numbers<[1], [0], [0], [1], [0, 0, 1, 1], [], []>} : vector<64x384xbf16>, vector<384x128xbf16>, vector<64x128xf32> -> vector<64x128xf32>
    %98 = arith.addf %90, %97 : vector<64x128xf32>
    %c0_37 = arith.constant 0 : index
    %c0_38 = arith.constant 0 : index
    %99 = vector.load %arg7[%c0_37, %c0_38] : memref<1x128xf32, #tpu.memory_space<vmem>>, vector<1x128xf32>
    %100 = vector.broadcast %99 : vector<1x128xf32> to vector<64x128xf32>
    %101 = arith.addf %98, %100 : vector<64x128xf32>
    %102 = vector.shape_cast %101 : vector<64x128xf32> to vector<8x8x128xf32>
    %103 = vector.extract_strided_slice %16 {offsets = [2, 2, 0], sizes = [8, 8, 128], strides = [1, 1, 1]} : vector<12x18x128xf32> to vector<8x8x128xf32>
    %104 = arith.addf %102, %103 : vector<8x8x128xf32>
    %c0_39 = arith.constant 0 : index
    %c0_40 = arith.constant 0 : index
    %c0_41 = arith.constant 0 : index
    %c0_42 = arith.constant 0 : index
    %105 = vector.load %arg8[%c0_39, %c0_40, %c0_41, %c0_42] : memref<1x8x8x128xf32, #tpu.memory_space<vmem>>, vector<1x8x8x128xf32>
    %106 = vector.shape_cast %105 : vector<1x8x8x128xf32> to vector<8x8x128xf32>
    %107 = vector.shape_cast %104 : vector<8x8x128xf32> to vector<1x8x8x128xf32>
    tpu.vector_store %arg8[%c0_39, %c0_40, %c0_41, %c0_42], %107 {strides = array<i32>} : memref<1x8x8x128xf32, #tpu.memory_space<vmem>>, vector<1x8x8x128xf32>,
    return
  }
  func.func @transform_1(%arg0: i32, %arg1: i32, %arg2: i32) -> (i32, i32) {
    %c0_i32 = arith.constant 0 : i32
    %c0_i32_0 = arith.constant 0 : i32
    %c0_i32_1 = arith.constant 0 : i32
    return %c0_i32, %c0_i32_0 : i32, i32
  }
  func.func @transform_2(%arg0: i32, %arg1: i32, %arg2: i32) -> (i32, i32) {
    %c0_i32 = arith.constant 0 : i32
    %c0_i32_0 = arith.constant 0 : i32
    %c0_i32_1 = arith.constant 0 : i32
    return %c0_i32, %c0_i32_0 : i32, i32
  }
  func.func @transform_3(%arg0: i32, %arg1: i32, %arg2: i32) -> (i32, i32) {
    %c0_i32 = arith.constant 0 : i32
    %c0_i32_0 = arith.constant 0 : i32
    %c0_i32_1 = arith.constant 0 : i32
    return %c0_i32, %c0_i32_0 : i32, i32
  }
  func.func @transform_4(%arg0: i32, %arg1: i32, %arg2: i32) -> (i32, i32) {
    %c0_i32 = arith.constant 0 : i32
    %c0_i32_0 = arith.constant 0 : i32
    %c0_i32_1 = arith.constant 0 : i32
    return %c0_i32, %c0_i32_0 : i32, i32
  }
  func.func @transform_5(%arg0: i32, %arg1: i32, %arg2: i32) -> (i32, i32, i32, i32) {
    %c0_i32 = arith.constant 0 : i32
    %c0_i32_0 = arith.constant 0 : i32
    return %arg0, %arg1, %arg2, %c0_i32 : i32, i32, i32, i32
  }
}

</mosaic_0001>

<llo_original>
// kernel: tpu_custom_call.1
$region0: #{tpu_custom_call.1}
  #allocation0 [shape = 'u32[]', space=smem, size = 0x4, offset = 0x4, fixed_abs, tag = 'smem constant byte address 0x4 - core index']
  #allocation1 [shape = 'u32[72,128]{1,0:T(1,128)}', space=vmem, size = 0x9000, scoped, tag = 'internal scratch']
  #allocation2 [shape = 'f32[2,12,18,128]{3,2,1,0:T(8,128)}', space=vmem, size = 0x48000, scoped, tag = 'scratch operand']
  #allocation3 [shape = 's32[2]{0}', space=sflag, size = 0x8, scoped, tag = 'scratch operand']
  #allocation6 [shape = 's32[]', space=sflag, size = 0x4, offset = 0, fixed_abs, tag = 'sflag constant byte address 0x0 - dummy sync flag']
  #allocation7 [shape = 's32[]', space=sflag, size = 0x4, offset = 0, fixed_abs, tag = 'sflag constant byte address 0x0 - dummy sync flag']
  %s0 = inlined_call_operand.vmem [shape: f32[2,20,26,128], index: 0, kind: input, shape index: {}]
  %s1 = inlined_call_operand.vmem [shape: bf16[1152,128], index: 1, kind: input, shape index: {}]
  %s2 = inlined_call_operand.vmem [shape: f32[1,128], index: 2, kind: input, shape index: {}]
  %s3 = inlined_call_operand.vmem [shape: bf16[1152,128], index: 3, kind: input, shape index: {}]
  %s4 = inlined_call_operand.vmem [shape: f32[1,128], index: 4, kind: input, shape index: {}]
  %s5 = inlined_call_operand.hbm [shape: f32[2,16,16,128], index: 5, kind: output, shape index: {}]
  %s6 = sld [smem:[#allocation0]]
  $region101: #{tpu_custom_call.1} parent=0
    _
  %s8 = ssub.s32 1, %s6
  %s9 = scalar_select 0, %s8, %s6
  $region1: #{tpu_custom_call.1} parent=0
    #allocation4 [shape = 'u8[65536]{0}', space=vmem, size = 0x10000, scoped, tag = 'output window, operand 0']
    #allocation5 [shape = 's32[2]{0}', space=sflag, size = 0x8, scoped, tag = 'scoped memory for tpu_custom_call.1']
    %10 = vsyncpa [#allocation5], 0
    %s11 = scalar_lea.sflag [#allocation5], 1
    %12 = vsyncpa %s11, 0
    loop: start=0, step=1, limit=10
    $region2: #{tpu_custom_call.1} parent=1 // loop_pre_header
      _
    $region3: #{tpu_custom_call.1} parent=1 // loop_header
      %s14 = sphi 0, %s18
      %p15 = scmp.ge.s32.totalorder %s14, 10
      %s21 = sphi 0, %s40
      %s22 = sphi 0, %s36
      %s23 = sphi 0, %s32
      %s24 = sphi 0, %s21
      %s25 = sphi 0, %s22
      %s26 = sphi 0, %s23
      %s27 = sphi 0, %s24
      %s28 = sphi 0, %s25
      %s29 = sphi 0, %s26
      %s41 = sphi 0, %s41
      %s43 = sphi 0, %s41
      %s44 = sphi 0, %s43
      %s58 = sphi 0, %s44
      %s62 = sphi 0, %s62
      %s64 = sphi 0, %s62
      %s65 = sphi 0, %s64
      %s79 = sphi 0, %s65
      %s83 = sphi 0, %s83
      %s85 = sphi 0, %s83
      %s86 = sphi 0, %s85
      %s100 = sphi 0, %s86
      %s104 = sphi 0, %s104
      %s106 = sphi 0, %s104
      %s107 = sphi 0, %s106
      %s121 = sphi 0, %s107
      %s131 = sphi 0, %s133
      %s134 = sphi 0, %s131
      %s135 = sphi 0, %s134
      %s151 = sphi 0, %s135
    $region4: #{tpu_custom_call.1} parent=1 // loop_header_branch
      %17 = sbr.rel (%p15) target = $region8
    $region5: #{tpu_custom_call.1} parent=1 // loop_body
      %s19 = ssub.s32 %s14, 1
      %s20 = ssub.s32 %s14, 2
      %s30 = sadd.s32 1, %s23
      %p31 = scmp.ge.s32.totalorder %s30, 2
      %s32 = scalar_select %p31, 0, %s30
      %s33 = sadd.s32 1, %s22
      %s34 = scalar_select %p31, %s33, %s22
      %p35 = scmp.ge.s32.totalorder %s34, 2
      %s36 = scalar_select %p35, 0, %s34
      %s37 = sadd.s32 1, %s21
      %s38 = scalar_select %p35, %s37, %s21
      %p39 = scmp.ge.s32.totalorder %s38, 2
      %s40 = scalar_select %p39, 0, %s38
      %s42 = sadd.s32 %s41, 1
      %p45 = scmp.eq.s32.totalorder %s14, 7
      %p46 = scmp.ne.s32.totalorder %s41, %s43
      %p47 = scmp.eq.s32.totalorder %s14, 0
      %p48 = por %p46, %p47
      %p49 = scmp.ne.s32.totalorder %s41, %s43
      %p50 = scmp.eq.s32.totalorder %s19, 7
      %p51 = por %p49, %p50
      %p52 = scmp.ne.s32.totalorder %s43, %s44
      %p53 = scmp.eq.s32.totalorder %s19, 0
      %p54 = por %p52, %p53
      %p55 = scmp.ne.s32.totalorder %s43, %s44
      %p56 = scmp.eq.s32.totalorder %s20, 7
      %p57 = por %p55, %p56
      %p59 = scmp.ne.s32.totalorder %s44, %s58
      %p60 = scmp.eq.s32.totalorder %s20, 0
      %p61 = por %p59, %p60
      %s63 = sadd.s32 %s62, 1
      %p66 = scmp.eq.s32.totalorder %s14, 7
      %p67 = scmp.ne.s32.totalorder %s62, %s64
      %p68 = scmp.eq.s32.totalorder %s14, 0
      %p69 = por %p67, %p68
      %p70 = scmp.ne.s32.totalorder %s62, %s64
      %p71 = scmp.eq.s32.totalorder %s19, 7
      %p72 = por %p70, %p71
      %p73 = scmp.ne.s32.totalorder %s64, %s65
      %p74 = scmp.eq.s32.totalorder %s19, 0
      %p75 = por %p73, %p74
      %p76 = scmp.ne.s32.totalorder %s64, %s65
      %p77 = scmp.eq.s32.totalorder %s20, 7
      %p78 = por %p76, %p77
      %p80 = scmp.ne.s32.totalorder %s65, %s79
      %p81 = scmp.eq.s32.totalorder %s20, 0
      %p82 = por %p80, %p81
      %s84 = sadd.s32 %s83, 1
      %p87 = scmp.eq.s32.totalorder %s14, 7
      %p88 = scmp.ne.s32.totalorder %s83, %s85
      %p89 = scmp.eq.s32.totalorder %s14, 0
      %p90 = por %p88, %p89
      %p91 = scmp.ne.s32.totalorder %s83, %s85
      %p92 = scmp.eq.s32.totalorder %s19, 7
      %p93 = por %p91, %p92
      %p94 = scmp.ne.s32.totalorder %s85, %s86
      %p95 = scmp.eq.s32.totalorder %s19, 0
      %p96 = por %p94, %p95
      %p97 = scmp.ne.s32.totalorder %s85, %s86
      %p98 = scmp.eq.s32.totalorder %s20, 7
      %p99 = por %p97, %p98
      %p101 = scmp.ne.s32.totalorder %s86, %s100
      %p102 = scmp.eq.s32.totalorder %s20, 0
      %p103 = por %p101, %p102
      %s105 = sadd.s32 %s104, 1
      %p108 = scmp.eq.s32.totalorder %s14, 7
      %p109 = scmp.ne.s32.totalorder %s104, %s106
      %p110 = scmp.eq.s32.totalorder %s14, 0
      %p111 = por %p109, %p110
      %p112 = scmp.ne.s32.totalorder %s104, %s106
      %p113 = scmp.eq.s32.totalorder %s19, 7
      %p114 = por %p112, %p113
      %p115 = scmp.ne.s32.totalorder %s106, %s107
      %p116 = scmp.eq.s32.totalorder %s19, 0
      %p117 = por %p115, %p116
      %p118 = scmp.ne.s32.totalorder %s106, %s107
      %p119 = scmp.eq.s32.totalorder %s20, 7
      %p120 = por %p118, %p119
      %p122 = scmp.ne.s32.totalorder %s107, %s121
      %p123 = scmp.eq.s32.totalorder %s20, 0
      %p124 = por %p122, %p123
      %s125 = ssub.s32 %s21, %s40
      %s126 = ssub.s32 %s22, %s36
      %s127 = sor.u32 %s125, %s126
      %s128 = ssub.s32 %s23, %s32
      %s129 = sor.u32 %s127, %s128
      %p130 = scmp.eq.s32.totalorder %s129, 0
      %s132 = sadd.s32 %s131, 1
      %s133 = scalar_select %p130, %s131, %s132
      %p136 = pneg %p130
      %p137 = scmp.eq.s32.totalorder %s14, 7
      %p138 = por %p136, %p137
      %p139 = scmp.ne.s32.totalorder %s131, %s134
      %p140 = scmp.eq.s32.totalorder %s14, 0
      %p141 = por %p139, %p140
      %p142 = scmp.ne.s32.totalorder %s131, %s134
      %p143 = scmp.eq.s32.totalorder %s19, 7
      %p144 = por %p142, %p143
      %p145 = scmp.ne.s32.totalorder %s134, %s135
      %p146 = scmp.eq.s32.totalorder %s19, 0
      %p147 = por %p145, %p146
      %p148 = scmp.ne.s32.totalorder %s134, %s135
      %p149 = scmp.eq.s32.totalorder %s20, 7
      %p150 = por %p148, %p149
      %p152 = scmp.ne.s32.totalorder %s135, %s151
      %p153 = scmp.eq.s32.totalorder %s20, 0
      %p154 = por %p152, %p153
      %p155 = scmp.le.s32.totalorder 1, %s14
      %p156 = scmp.lt.s32.totalorder %s14, 9
      %p157 = pnand %p155, %p156
      %p158 = pneg %p157
      // Predicated region
      $region9: #{tpu_custom_call.1} parent=5 // pred_check
        _
      $region10: #{tpu_custom_call.1} parent=5 // pred_check_branch
        %160 = sbr.rel (%p157) target = $region12
      $region11: #{tpu_custom_call.1} parent=5 // pred_region
        %s161 = ssub.s32 %s14, 1
        // Predicated region
        $region13: #{tpu_custom_call.1} parent=11 // pred_check
          %p162 = pneg %p54
        $region14: #{tpu_custom_call.1} parent=11 // pred_check_branch
          %164 = sbr.rel (%p162) target = $region16
        $region15: #{tpu_custom_call.1} parent=11 // pred_region
          _
        $region16: #{tpu_custom_call.1} parent=11 // pred_fallthru
          _
        // Predicated region
        $region17: #{tpu_custom_call.1} parent=11 // pred_check
          %p165 = pneg %p75
        $region18: #{tpu_custom_call.1} parent=11 // pred_check_branch
          %167 = sbr.rel (%p165) target = $region20
        $region19: #{tpu_custom_call.1} parent=11 // pred_region
          _
        $region20: #{tpu_custom_call.1} parent=11 // pred_fallthru
          _
        // Predicated region
        $region21: #{tpu_custom_call.1} parent=11 // pred_check
          %p168 = pneg %p96
        $region22: #{tpu_custom_call.1} parent=11 // pred_check_branch
          %170 = sbr.rel (%p168) target = $region24
        $region23: #{tpu_custom_call.1} parent=11 // pred_region
          _
        $region24: #{tpu_custom_call.1} parent=11 // pred_fallthru
          _
        // Predicated region
        $region25: #{tpu_custom_call.1} parent=11 // pred_check
          %p171 = pneg %p117
        $region26: #{tpu_custom_call.1} parent=11 // pred_check_branch
          %173 = sbr.rel (%p171) target = $region28
        $region27: #{tpu_custom_call.1} parent=11 // pred_region
          _
        $region28: #{tpu_custom_call.1} parent=11 // pred_fallthru
          _
      $region12: #{tpu_custom_call.1} parent=5 // pred_fallthru
        _
      %p174 = scmp.lt.s32.totalorder %s14, 8
      // Predicated region
      $region29: #{tpu_custom_call.1} parent=5 // pred_check
        %p175 = pneg %p174
      $region30: #{tpu_custom_call.1} parent=5 // pred_check_branch
        %177 = sbr.rel (%p175) target = $region32
      $region31: #{tpu_custom_call.1} parent=5 // pred_region
        _
      $region32: #{tpu_custom_call.1} parent=5 // pred_fallthru
        _
      %p178 = scmp.le.s32.totalorder 1, %s14
      %p179 = scmp.lt.s32.totalorder %s14, 9
      %p180 = pnand %p178, %p179
      %p181 = pneg %p180
      // Predicated region
      $region33: #{tpu_custom_call.1} parent=5 // pred_check
        _
      $region34: #{tpu_custom_call.1} parent=5 // pred_check_branch
        %183 = sbr.rel (%p180) target = $region36
      $region35: #{tpu_custom_call.1} parent=5 // pred_region
        %s184 = ssub.s32 %s14, 1
        %p185 = pneg %p54
        %p186 = pneg %p51
        %p187 = pneg %p75
        %p188 = pneg %p72
        %p189 = pneg %p96
        %p190 = pneg %p93
        %p191 = pneg %p117
        %p192 = pneg %p114
        %p193 = pneg %p147
        %p194 = pneg %p144
        %s195 = sand.u32 %s134, 1
        %s196 = scalar_lea.sflag [#allocation5], %s195
        %s197 = sand.u32 %s134, 1
        %s198 = smul.addr %s197, 64
        %s199 = scalar_lea.vmem [#allocation4], %s198
        %s200 = smul.u32 8, %s25
        %p201 = scmp.lt.s32.totalorder %s26, 0
        %s202 = ssub.s32 0, %s26
        %s203 = scalar_select %p201, %s202, %s26
        %s204 = sand.u32 %s203, 1
        %s205 = ssub.s32 0, %s204
        %s206 = scalar_select %p201, %s205, %s204
        %p207 = scmp.eq.s32.totalorder %s26, 0
        // Predicated region
        $region37: #{tpu_custom_call.1} parent=35 // pred_check
          %p208 = pneg %p207
        $region38: #{tpu_custom_call.1} parent=35 // pred_check_branch
          %210 = sbr.rel (%p208) target = $region40
        $region39: #{tpu_custom_call.1} parent=35 // pred_region
          %s211 = smul.u32 %s25, 8
          %s212 = smul.u32 %s211, 32
          %s213 = smul.u32 %s24, 640
          %s214 = sadd.s32 %s212, %s213
          %s215 = scalar_lea.vmem %s0, %s214
          // Predicated region
          $region41: #{tpu_custom_call.1} parent=39 // pred_check
            _
          $region42: #{tpu_custom_call.1} parent=39 // pred_check_branch
            %217 = sbr.rel (0) target = $region44
          $region43: #{tpu_custom_call.1} parent=39 // pred_region
            %s218 = scalar_lea.vmem %s215, 16
            %s219 = scalar_lea.vmem [#allocation2], 16
            loop: start=0, step=1, limit=1
            $region45: #{tpu_custom_call.1} parent=43 // loop_pre_header
              _
            $region46: #{tpu_custom_call.1} parent=43 // loop_header
              %s221 = sphi 0, %s225
              %p222 = scmp.ge.s32.totalorder %s221, 1
              %s226 = sphi %s215, %s215
              %s227 = sphi [#allocation2], [#allocation2]
            $region47: #{tpu_custom_call.1} parent=43 // loop_header_branch
              %224 = sbr.rel (%p222) target = $region51
            $region48: #{tpu_custom_call.1} parent=43 // loop_body
              %v228 = vld [vmem:[%s226] sm:$0xff]
              %229 = vst [vmem:[%s227] sm:$0xff] %v228
              %v230 = vld [vmem:[%s226 + $0x8] sm:$0xff]
              %231 = vst [vmem:[%s227 + $0x8] sm:$0xff] %v230
              %v232 = vld [vmem:[%s226 + $0x20] sm:$0xff]
              %233 = vst [vmem:[%s227 + $0x18] sm:$0xff] %v232
              %v234 = vld [vmem:[%s226 + $0x28] sm:$0xff]
              %235 = vst [vmem:[%s227 + $0x20] sm:$0xff] %v234
              %v236 = vld [vmem:[%s226 + $0x40] sm:$0xff]
              %237 = vst [vmem:[%s227 + $0x30] sm:$0xff] %v236
              %v238 = vld [vmem:[%s226 + $0x48] sm:$0xff]
              %239 = vst [vmem:[%s227 + $0x38] sm:$0xff] %v238
              %v240 = vld [vmem:[%s226 + $0x60] sm:$0xff]
              %241 = vst [vmem:[%s227 + $0x48] sm:$0xff] %v240
              %v242 = vld [vmem:[%s226 + $0x68] sm:$0xff]
              %243 = vst [vmem:[%s227 + $0x50] sm:$0xff] %v242
              %v244 = vld [vmem:[%s226 + $0x80] sm:$0xff]
              %245 = vst [vmem:[%s227 + $0x60] sm:$0xff] %v244
              %v246 = vld [vmem:[%s226 + $0x88] sm:$0xff]
              %247 = vst [vmem:[%s227 + $0x68] sm:$0xff] %v246
              %v248 = vld [vmem:[%s226 + $0xa0] sm:$0xff]
              %249 = vst [vmem:[%s227 + $0x78] sm:$0xff] %v248
              %v250 = vld [vmem:[%s226 + $0xa8] sm:$0xff]
              %251 = vst [vmem:[%s227 + $0x80] sm:$0xff] %v250
              %v252 = vld [vmem:[%s226 + $0xc0] sm:$0xff]
              %253 = vst [vmem:[%s227 + $0x90] sm:$0xff] %v252
              %v254 = vld [vmem:[%s226 + $0xc8] sm:$0xff]
              %255 = vst [vmem:[%s227 + $0x98] sm:$0xff] %v254
              %v256 = vld [vmem:[%s226 + $0xe0] sm:$0xff]
              %257 = vst [vmem:[%s227 + $0xa8] sm:$0xff] %v256
              %v258 = vld [vmem:[%s226 + $0xe8] sm:$0xff]
              %259 = vst [vmem:[%s227 + $0xb0] sm:$0xff] %v258
              %v260 = vld [vmem:[%s226 + $0x100] sm:$0xff]
              %261 = vst [vmem:[%s227 + $0xc0] sm:$0xff] %v260
              %v262 = vld [vmem:[%s226 + $0x108] sm:$0xff]
              %263 = vst [vmem:[%s227 + $0xc8] sm:$0xff] %v262
              %v264 = vld [vmem:[%s226 + $0x120] sm:$0xff]
              %265 = vst [vmem:[%s227 + $0xd8] sm:$0xff] %v264
              %v266 = vld [vmem:[%s226 + $0x128] sm:$0xff]
              %267 = vst [vmem:[%s227 + $0xe0] sm:$0xff] %v266
              %v268 = vld [vmem:[%s226 + $0x140] sm:$0xff]
              %269 = vst [vmem:[%s227 + $0xf0] sm:$0xff] %v268
              %v270 = vld [vmem:[%s226 + $0x148] sm:$0xff]
              %271 = vst [vmem:[%s227 + $0xf8] sm:$0xff] %v270
              %v272 = vld [vmem:[%s226 + $0x160] sm:$0xff]
              %273 = vst [vmem:[%s227 + $0x108] sm:$0xff] %v272
              %v274 = vld [vmem:[%s226 + $0x168] sm:$0xff]
              %275 = vst [vmem:[%s227 + $0x110] sm:$0xff] %v274
            $region49: #{tpu_custom_call.1} parent=43 // loop_footer
              %s225 = sadd.s32 1, %s221
            $region50: #{tpu_custom_call.1} parent=43 // loop_footer_branch
              %220 = sbr.rel target = $region46
            $region51: #{tpu_custom_call.1} parent=43 // loop_exit
              _
            %s277 = ssub.s32 4, 1
            loop: start=0, step=1, limit=1
            $region52: #{tpu_custom_call.1} parent=43 // loop_pre_header
              _
            $region53: #{tpu_custom_call.1} parent=43 // loop_header
              %s279 = sphi 0, %s283
              %p280 = scmp.ge.s32.totalorder %s279, 1
              %s284 = sphi %s218, %s218
              %s285 = sphi %s219, %s219
            $region54: #{tpu_custom_call.1} parent=43 // loop_header_branch
              %282 = sbr.rel (%p280) target = $region58
            $region55: #{tpu_custom_call.1} parent=43 // loop_body
              %v286 = vld [vmem:[%s284] sm:%s277]
              %287 = vst [vmem:[%s285] sm:%s277] %v286
              %v288 = vld [vmem:[%s284 + $0x20] sm:%s277]
              %289 = vst [vmem:[%s285 + $0x18] sm:%s277] %v288
              %v290 = vld [vmem:[%s284 + $0x40] sm:%s277]
              %291 = vst [vmem:[%s285 + $0x30] sm:%s277] %v290
              %v292 = vld [vmem:[%s284 + $0x60] sm:%s277]
              %293 = vst [vmem:[%s285 + $0x48] sm:%s277] %v292
              %v294 = vld [vmem:[%s284 + $0x80] sm:%s277]
              %295 = vst [vmem:[%s285 + $0x60] sm:%s277] %v294
              %v296 = vld [vmem:[%s284 + $0xa0] sm:%s277]
              %297 = vst [vmem:[%s285 + $0x78] sm:%s277] %v296
              %v298 = vld [vmem:[%s284 + $0xc0] sm:%s277]
              %299 = vst [vmem:[%s285 + $0x90] sm:%s277] %v298
              %v300 = vld [vmem:[%s284 + $0xe0] sm:%s277]
              %301 = vst [vmem:[%s285 + $0xa8] sm:%s277] %v300
              %v302 = vld [vmem:[%s284 + $0x100] sm:%s277]
              %303 = vst [vmem:[%s285 + $0xc0] sm:%s277] %v302
              %v304 = vld [vmem:[%s284 + $0x120] sm:%s277]
              %305 = vst [vmem:[%s285 + $0xd8] sm:%s277] %v304
              %v306 = vld [vmem:[%s284 + $0x140] sm:%s277]
              %307 = vst [vmem:[%s285 + $0xf0] sm:%s277] %v306
              %v308 = vld [vmem:[%s284 + $0x160] sm:%s277]
              %309 = vst [vmem:[%s285 + $0x108] sm:%s277] %v308
            $region56: #{tpu_custom_call.1} parent=43 // loop_footer
              %s283 = sadd.s32 1, %s279
            $region57: #{tpu_custom_call.1} parent=43 // loop_footer_branch
              %278 = sbr.rel target = $region53
            $region58: #{tpu_custom_call.1} parent=43 // loop_exit
              _
          $region44: #{tpu_custom_call.1} parent=39 // pred_fallthru
            _
          // Predicated region
          $region59: #{tpu_custom_call.1} parent=39 // pred_check
            _
          $region60: #{tpu_custom_call.1} parent=39 // pred_check_branch
            %312 = sbr.rel (0) target = $region62
          $region61: #{tpu_custom_call.1} parent=39 // pred_region
            %313 = vsyncadd [#allocation3], 3456
          $region62: #{tpu_custom_call.1} parent=39 // pred_fallthru
            _
        $region40: #{tpu_custom_call.1} parent=35 // pred_fallthru
          _
        %s314 = smul.u32 %s206, 288
        %s315 = scalar_lea.vmem [#allocation2], %s314
        %s316 = scalar_lea.sflag [#allocation3], %s206
        %s317 = smul.u32 12, 18
        %s318 = smul.u32 %s317, 1
        %s319 = sshll.u32 %s318, 4
        %320 = dma.done %s316, %s319
        %s321 = sadd.s32 %s26, 1
        %p322 = scmp.lt.s32.totalorder %s321, 2
        // Predicated region
        $region63: #{tpu_custom_call.1} parent=35 // pred_check
          %p323 = pneg %p322
        $region64: #{tpu_custom_call.1} parent=35 // pred_check_branch
          %325 = sbr.rel (%p323) target = $region66
        $region65: #{tpu_custom_call.1} parent=35 // pred_region
          %s326 = ssub.s32 1, %s206
          %s327 = smul.u32 %s25, 8
          %s328 = smul.u32 %s321, 8
          %s329 = smul.u32 %s327, 32
          %s330 = sadd.s32 %s328, %s329
          %s331 = smul.u32 %s24, 640
          %s332 = sadd.s32 %s330, %s331
          %s333 = scalar_lea.vmem %s0, %s332
          %s334 = smul.u32 %s326, 288
          %s335 = scalar_lea.vmem [#allocation2], %s334
          %s336 = scalar_lea.sflag [#allocation3], %s326
          // Predicated region
          $region67: #{tpu_custom_call.1} parent=65 // pred_check
            _
          $region68: #{tpu_custom_call.1} parent=65 // pred_check_branch
            %338 = sbr.rel (0) target = $region70
          $region69: #{tpu_custom_call.1} parent=65 // pred_region
            %s339 = scalar_lea.vmem %s333, 16
            %s340 = scalar_lea.vmem %s335, 16 [#allocation2]
            loop: start=0, step=1, limit=1
            $region71: #{tpu_custom_call.1} parent=69 // loop_pre_header
              _
            $region72: #{tpu_custom_call.1} parent=69 // loop_header
              %s342 = sphi 0, %s346
              %p343 = scmp.ge.s32.totalorder %s342, 1
              %s347 = sphi %s333, %s333
              %s348 = sphi %s335, %s335
            $region73: #{tpu_custom_call.1} parent=69 // loop_header_branch
              %345 = sbr.rel (%p343) target = $region77
            $region74: #{tpu_custom_call.1} parent=69 // loop_body
              %v349 = vld [vmem:[%s347] sm:$0xff]
              %350 = vst [vmem:[%s348] sm:$0xff] %v349
              %v351 = vld [vmem:[%s347 + $0x8] sm:$0xff]
              %352 = vst [vmem:[%s348 + $0x8] sm:$0xff] %v351
              %v353 = vld [vmem:[%s347 + $0x20] sm:$0xff]
              %354 = vst [vmem:[%s348 + $0x18] sm:$0xff] %v353
              %v355 = vld [vmem:[%s347 + $0x28] sm:$0xff]
              %356 = vst [vmem:[%s348 + $0x20] sm:$0xff] %v355
              %v357 = vld [vmem:[%s347 + $0x40] sm:$0xff]
              %358 = vst [vmem:[%s348 + $0x30] sm:$0xff] %v357
              %v359 = vld [vmem:[%s347 + $0x48] sm:$0xff]
              %360 = vst [vmem:[%s348 + $0x38] sm:$0xff] %v359
              %v361 = vld [vmem:[%s347 + $0x60] sm:$0xff]
              %362 = vst [vmem:[%s348 + $0x48] sm:$0xff] %v361
              %v363 = vld [vmem:[%s347 + $0x68] sm:$0xff]
              %364 = vst [vmem:[%s348 + $0x50] sm:$0xff] %v363
              %v365 = vld [vmem:[%s347 + $0x80] sm:$0xff]
              %366 = vst [vmem:[%s348 + $0x60] sm:$0xff] %v365
              %v367 = vld [vmem:[%s347 + $0x88] sm:$0xff]
              %368 = vst [vmem:[%s348 + $0x68] sm:$0xff] %v367
              %v369 = vld [vmem:[%s347 + $0xa0] sm:$0xff]
              %370 = vst [vmem:[%s348 + $0x78] sm:$0xff] %v369
              %v371 = vld [vmem:[%s347 + $0xa8] sm:$0xff]
              %372 = vst [vmem:[%s348 + $0x80] sm:$0xff] %v371
              %v373 = vld [vmem:[%s347 + $0xc0] sm:$0xff]
              %374 = vst [vmem:[%s348 + $0x90] sm:$0xff] %v373
              %v375 = vld [vmem:[%s347 + $0xc8] sm:$0xff]
              %376 = vst [vmem:[%s348 + $0x98] sm:$0xff] %v375
              %v377 = vld [vmem:[%s347 + $0xe0] sm:$0xff]
              %378 = vst [vmem:[%s348 + $0xa8] sm:$0xff] %v377
              %v379 = vld [vmem:[%s347 + $0xe8] sm:$0xff]
              %380 = vst [vmem:[%s348 + $0xb0] sm:$0xff] %v379
              %v381 = vld [vmem:[%s347 + $0x100] sm:$0xff]
              %382 = vst [vmem:[%s348 + $0xc0] sm:$0xff] %v381
              %v383 = vld [vmem:[%s347 + $0x108] sm:$0xff]
              %384 = vst [vmem:[%s348 + $0xc8] sm:$0xff] %v383
              %v385 = vld [vmem:[%s347 + $0x120] sm:$0xff]
              %386 = vst [vmem:[%s348 + $0xd8] sm:$0xff] %v385
              %v387 = vld [vmem:[%s347 + $0x128] sm:$0xff]
              %388 = vst [vmem:[%s348 + $0xe0] sm:$0xff] %v387
              %v389 = vld [vmem:[%s347 + $0x140] sm:$0xff]
              %390 = vst [vmem:[%s348 + $0xf0] sm:$0xff] %v389
              %v391 = vld [vmem:[%s347 + $0x148] sm:$0xff]
              %392 = vst [vmem:[%s348 + $0xf8] sm:$0xff] %v391
              %v393 = vld [vmem:[%s347 + $0x160] sm:$0xff]
              %394 = vst [vmem:[%s348 + $0x108] sm:$0xff] %v393
              %v395 = vld [vmem:[%s347 + $0x168] sm:$0xff]
              %396 = vst [vmem:[%s348 + $0x110] sm:$0xff] %v395
            $region75: #{tpu_custom_call.1} parent=69 // loop_footer
              %s346 = sadd.s32 1, %s342
            $region76: #{tpu_custom_call.1} parent=69 // loop_footer_branch
              %341 = sbr.rel target = $region72
            $region77: #{tpu_custom_call.1} parent=69 // loop_exit
              _
            %s398 = ssub.s32 4, 1
            loop: start=0, step=1, limit=1
            $region78: #{tpu_custom_call.1} parent=69 // loop_pre_header
              _
            $region79: #{tpu_custom_call.1} parent=69 // loop_header
              %s400 = sphi 0, %s404
              %p401 = scmp.ge.s32.totalorder %s400, 1
              %s405 = sphi %s339, %s339
              %s406 = sphi %s340, %s340
            $region80: #{tpu_custom_call.1} parent=69 // loop_header_branch
              %403 = sbr.rel (%p401) target = $region84
            $region81: #{tpu_custom_call.1} parent=69 // loop_body
              %v407 = vld [vmem:[%s405] sm:%s398]
              %408 = vst [vmem:[%s406] sm:%s398] %v407
              %v409 = vld [vmem:[%s405 + $0x20] sm:%s398]
              %410 = vst [vmem:[%s406 + $0x18] sm:%s398] %v409
              %v411 = vld [vmem:[%s405 + $0x40] sm:%s398]
              %412 = vst [vmem:[%s406 + $0x30] sm:%s398] %v411
              %v413 = vld [vmem:[%s405 + $0x60] sm:%s398]
              %414 = vst [vmem:[%s406 + $0x48] sm:%s398] %v413
              %v415 = vld [vmem:[%s405 + $0x80] sm:%s398]
              %416 = vst [vmem:[%s406 + $0x60] sm:%s398] %v415
              %v417 = vld [vmem:[%s405 + $0xa0] sm:%s398]
              %418 = vst [vmem:[%s406 + $0x78] sm:%s398] %v417
              %v419 = vld [vmem:[%s405 + $0xc0] sm:%s398]
              %420 = vst [vmem:[%s406 + $0x90] sm:%s398] %v419
              %v421 = vld [vmem:[%s405 + $0xe0] sm:%s398]
              %422 = vst [vmem:[%s406 + $0xa8] sm:%s398] %v421
              %v423 = vld [vmem:[%s405 + $0x100] sm:%s398]
              %424 = vst [vmem:[%s406 + $0xc0] sm:%s398] %v423
              %v425 = vld [vmem:[%s405 + $0x120] sm:%s398]
              %426 = vst [vmem:[%s406 + $0xd8] sm:%s398] %v425
              %v427 = vld [vmem:[%s405 + $0x140] sm:%s398]
              %428 = vst [vmem:[%s406 + $0xf0] sm:%s398] %v427
              %v429 = vld [vmem:[%s405 + $0x160] sm:%s398]
              %430 = vst [vmem:[%s406 + $0x108] sm:%s398] %v429
            $region82: #{tpu_custom_call.1} parent=69 // loop_footer
              %s404 = sadd.s32 1, %s400
            $region83: #{tpu_custom_call.1} parent=69 // loop_footer_branch
              %399 = sbr.rel target = $region79
            $region84: #{tpu_custom_call.1} parent=69 // loop_exit
              _
          $region70: #{tpu_custom_call.1} parent=65 // pred_fallthru
            _
          // Predicated region
          $region85: #{tpu_custom_call.1} parent=65 // pred_check
            _
          $region86: #{tpu_custom_call.1} parent=65 // pred_check_branch
            %433 = sbr.rel (0) target = $region88
          $region87: #{tpu_custom_call.1} parent=65 // pred_region
            %434 = vsyncadd %s336, 3456
          $region88: #{tpu_custom_call.1} parent=65 // pred_fallthru
            _
        $region66: #{tpu_custom_call.1} parent=35 // pred_fallthru
          _
        %v435 = vld [vmem:[%s315] sm:$0xff]
        %v436 = vld [vmem:[%s315 + $0x8] sm:$0xff]
        %v437 = vld [vmem:[%s315 + $0x10] sm:$0x3]
        %v438 = vld [vmem:[%s315 + $0x18] sm:$0xff]
        %v439 = vld [vmem:[%s315 + $0x20] sm:$0xff]
        %v440 = vld [vmem:[%s315 + $0x28] sm:$0x3]
        %v441 = vld [vmem:[%s315 + $0x30] sm:$0xff]
        %v442 = vld [vmem:[%s315 + $0x38] sm:$0xff]
        %v443 = vld [vmem:[%s315 + $0x40] sm:$0x3]
        %v444 = vld [vmem:[%s315 + $0x48] sm:$0xff]
        %v445 = vld [vmem:[%s315 + $0x50] sm:$0xff]
        %v446 = vld [vmem:[%s315 + $0x58] sm:$0x3]
        %v447 = vld [vmem:[%s315 + $0x60] sm:$0xff]
        %v448 = vld [vmem:[%s315 + $0x68] sm:$0xff]
        %v449 = vld [vmem:[%s315 + $0x70] sm:$0x3]
        %v450 = vld [vmem:[%s315 + $0x78] sm:$0xff]
        %v451 = vld [vmem:[%s315 + $0x80] sm:$0xff]
        %v452 = vld [vmem:[%s315 + $0x88] sm:$0x3]
        %v453 = vld [vmem:[%s315 + $0x90] sm:$0xff]
        %v454 = vld [vmem:[%s315 + $0x98] sm:$0xff]
        %v455 = vld [vmem:[%s315 + $0xa0] sm:$0x3]
        %v456 = vld [vmem:[%s315 + $0xa8] sm:$0xff]
        %v457 = vld [vmem:[%s315 + $0xb0] sm:$0xff]
        %v458 = vld [vmem:[%s315 + $0xb8] sm:$0x3]
        %v459 = vld [vmem:[%s315 + $0xc0] sm:$0xff]
        %v460 = vld [vmem:[%s315 + $0xc8] sm:$0xff]
        %v461 = vld [vmem:[%s315 + $0xd0] sm:$0x3]
        %v462 = vld [vmem:[%s315 + $0xd8] sm:$0xff]
        %v463 = vld [vmem:[%s315 + $0xe0] sm:$0xff]
        %v464 = vld [vmem:[%s315 + $0xe8] sm:$0x3]
        %v465 = vld [vmem:[%s315 + $0xf0] sm:$0xff]
        %v466 = vld [vmem:[%s315 + $0xf8] sm:$0xff]
        %v467 = vld [vmem:[%s315 + $0x100] sm:$0x3]
        %v468 = vld [vmem:[%s315 + $0x108] sm:$0xff]
        %v469 = vld [vmem:[%s315 + $0x110] sm:$0xff]
        %v470 = vld [vmem:[%s315 + $0x118] sm:$0x3]
        %v471 = vmax.f32 %v435, 0.0
        %v472 = vmax.f32 %v436, 0.0
        %v473 = vmax.f32 %v437, 0.0
        %v474 = vmax.f32 %v438, 0.0
        %v475 = vmax.f32 %v439, 0.0
        %v476 = vmax.f32 %v440, 0.0
        %v477 = vmax.f32 %v441, 0.0
        %v478 = vmax.f32 %v442, 0.0
        %v479 = vmax.f32 %v443, 0.0
        %v480 = vmax.f32 %v444, 0.0
        %v481 = vmax.f32 %v445, 0.0
        %v482 = vmax.f32 %v446, 0.0
        %v483 = vmax.f32 %v447, 0.0
        %v484 = vmax.f32 %v448, 0.0
        %v485 = vmax.f32 %v449, 0.0
        %v486 = vmax.f32 %v450, 0.0
        %v487 = vmax.f32 %v451, 0.0
        %v488 = vmax.f32 %v452, 0.0
        %v489 = vmax.f32 %v453, 0.0
        %v490 = vmax.f32 %v454, 0.0
        %v491 = vmax.f32 %v455, 0.0
        %v492 = vmax.f32 %v456, 0.0
        %v493 = vmax.f32 %v457, 0.0
        %v494 = vmax.f32 %v458, 0.0
        %v495 = vmax.f32 %v459, 0.0
        %v496 = vmax.f32 %v460, 0.0
        %v497 = vmax.f32 %v461, 0.0
        %v498 = vmax.f32 %v462, 0.0
        %v499 = vmax.f32 %v463, 0.0
        %v500 = vmax.f32 %v464, 0.0
        %v501 = vmax.f32 %v465, 0.0
        %v502 = vmax.f32 %v466, 0.0
        %v503 = vmax.f32 %v467, 0.0
        %v504 = vmax.f32 %v468, 0.0
        %v505 = vmax.f32 %v469, 0.0
        %v506 = vmax.f32 %v470, 0.0
        %v507 = vpack.c.bf16 %v471, %v471
        %v508 = vpack.c.bf16 %v472, %v472
        %v509 = vpack.c.bf16 %v473, %v473
        %v510 = vpack.c.bf16 %v474, %v474
        %v511 = vpack.c.bf16 %v475, %v475
        %v512 = vpack.c.bf16 %v476, %v476
        %v513 = vpack.c.bf16 %v477, %v477
        %v514 = vpack.c.bf16 %v478, %v478
        %v515 = vpack.c.bf16 %v479, %v479
        %v516 = vpack.c.bf16 %v480, %v480
        %v517 = vpack.c.bf16 %v481, %v481
        %v518 = vpack.c.bf16 %v482, %v482
        %v519 = vpack.c.bf16 %v483, %v483
        %v520 = vpack.c.bf16 %v484, %v484
        %v521 = vpack.c.bf16 %v485, %v485
        %v522 = vpack.c.bf16 %v486, %v486
        %v523 = vpack.c.bf16 %v487, %v487
        %v524 = vpack.c.bf16 %v488, %v488
        %v525 = vpack.c.bf16 %v489, %v489
        %v526 = vpack.c.bf16 %v490, %v490
        %v527 = vpack.c.bf16 %v491, %v491
        %v528 = vpack.c.bf16 %v492, %v492
        %v529 = vpack.c.bf16 %v493, %v493
        %v530 = vpack.c.bf16 %v494, %v494
        %v531 = vpack.c.bf16 %v495, %v495
        %v532 = vpack.c.bf16 %v496, %v496
        %v533 = vpack.c.bf16 %v497, %v497
        %v534 = vpack.c.bf16 %v498, %v498
        %v535 = vpack.c.bf16 %v499, %v499
        %v536 = vpack.c.bf16 %v500, %v500
        %v537 = vpack.c.bf16 %v501, %v501
        %v538 = vpack.c.bf16 %v502, %v502
        %v539 = vpack.c.bf16 %v503, %v503
        %v540 = vpack.c.bf16 %v504, %v504
        %v541 = vpack.c.bf16 %v505, %v505
        %v542 = vpack.c.bf16 %v506, %v506
        %v563 = vunpack.c.l.b16 %v507
        %v564 = vunpack.c.l.b16 %v508
        %v565 = vunpack.c.l.b16 %v510
        %v566 = vunpack.c.l.b16 %v511
        %v567 = vunpack.c.l.b16 %v513
        %v568 = vunpack.c.l.b16 %v514
        %v569 = vunpack.c.l.b16 %v516
        %v570 = vunpack.c.l.b16 %v517
        %v571 = vunpack.c.l.b16 %v519
        %v572 = vunpack.c.l.b16 %v520
        %v573 = vunpack.c.l.b16 %v522
        %v574 = vunpack.c.l.b16 %v523
        %v575 = vunpack.c.l.b16 %v525
        %v576 = vunpack.c.l.b16 %v526
        %v577 = vunpack.c.l.b16 %v528
        %v578 = vunpack.c.l.b16 %v529
        %v579 = vunpack.c.l.b16 %v531
        %v580 = vunpack.c.l.b16 %v532
        %v581 = vunpack.c.l.b16 %v534
        %v582 = vunpack.c.l.b16 %v535
        %v583 = vpack.c.b16 %v564, %v563
        %v584 = vpack.c.b16 %v566, %v565
        %v585 = vpack.c.b16 %v568, %v567
        %v586 = vpack.c.b16 %v570, %v569
        %v587 = vpack.c.b16 %v572, %v571
        %v588 = vpack.c.b16 %v574, %v573
        %v589 = vpack.c.b16 %v576, %v575
        %v590 = vpack.c.b16 %v578, %v577
        %v591 = vpack.c.b16 %v580, %v579
        %v592 = vpack.c.b16 %v582, %v581
        %v613 = vunpack.c.l.b16 %v509
        %v614 = vunpack.c.l.b16 %v512
        %v615 = vunpack.c.l.b16 %v515
        %v616 = vunpack.c.l.b16 %v518
        %v617 = vunpack.c.l.b16 %v521
        %v618 = vunpack.c.l.b16 %v524
        %v619 = vunpack.c.l.b16 %v527
        %v620 = vunpack.c.l.b16 %v530
        %v621 = vunpack.c.l.b16 %v533
        %v622 = vunpack.c.l.b16 %v536
        %v623 = vpack.c.b16 %v613, %v613
        %v624 = vpack.c.b16 %v614, %v614
        %v625 = vpack.c.b16 %v615, %v615
        %v626 = vpack.c.b16 %v616, %v616
        %v627 = vpack.c.b16 %v617, %v617
        %v628 = vpack.c.b16 %v618, %v618
        %v629 = vpack.c.b16 %v619, %v619
        %v630 = vpack.c.b16 %v620, %v620
        %v631 = vpack.c.b16 %v621, %v621
        %v632 = vpack.c.b16 %v622, %v622
        %vm633 = vsmask.f32 7424
        %v635 = vshrl.u32 %v583, 16
        %v637 = vshll.u32 %v583, 16
        %v639 = vrot.slane %v637, 1
        %v640 = vor.u32 %v635, %v639
        %v642 = vshll.u32 %v623, 16
        %v644 = vrot.slane %v642, 1
        %v645 = vsel %vm633, %v640, %v644
        %v647 = vshrl.u32 %v584, 16
        %v649 = vshll.u32 %v584, 16
        %v651 = vrot.slane %v649, 1
        %v652 = vor.u32 %v647, %v651
        %v654 = vshll.u32 %v624, 16
        %v656 = vrot.slane %v654, 1
        %v657 = vsel %vm633, %v652, %v656
        %v659 = vshrl.u32 %v585, 16
        %v661 = vshll.u32 %v585, 16
        %v663 = vrot.slane %v661, 1
        %v664 = vor.u32 %v659, %v663
        %v666 = vshll.u32 %v625, 16
        %v668 = vrot.slane %v666, 1
        %v669 = vsel %vm633, %v664, %v668
        %v671 = vshrl.u32 %v586, 16
        %v673 = vshll.u32 %v586, 16
        %v675 = vrot.slane %v673, 1
        %v676 = vor.u32 %v671, %v675
        %v678 = vshll.u32 %v626, 16
        %v680 = vrot.slane %v678, 1
        %v681 = vsel %vm633, %v676, %v680
        %v683 = vshrl.u32 %v587, 16
        %v685 = vshll.u32 %v587, 16
        %v687 = vrot.slane %v685, 1
        %v688 = vor.u32 %v683, %v687
        %v690 = vshll.u32 %v627, 16
        %v692 = vrot.slane %v690, 1
        %v693 = vsel %vm633, %v688, %v692
        %v695 = vshrl.u32 %v588, 16
        %v697 = vshll.u32 %v588, 16
        %v699 = vrot.slane %v697, 1
        %v700 = vor.u32 %v695, %v699
        %v702 = vshll.u32 %v628, 16
        %v704 = vrot.slane %v702, 1
        %v705 = vsel %vm633, %v700, %v704
        %v707 = vshrl.u32 %v589, 16
        %v709 = vshll.u32 %v589, 16
        %v711 = vrot.slane %v709, 1
        %v712 = vor.u32 %v707, %v711
        %v714 = vshll.u32 %v629, 16
        %v716 = vrot.slane %v714, 1
        %v717 = vsel %vm633, %v712, %v716
        %v719 = vshrl.u32 %v590, 16
        %v721 = vshll.u32 %v590, 16
        %v723 = vrot.slane %v721, 1
        %v724 = vor.u32 %v719, %v723
        %v726 = vshll.u32 %v630, 16
        %v728 = vrot.slane %v726, 1
        %v729 = vsel %vm633, %v724, %v728
        %v731 = vshrl.u32 %v591, 16
        %v733 = vshll.u32 %v591, 16
        %v735 = vrot.slane %v733, 1
        %v736 = vor.u32 %v731, %v735
        %v738 = vshll.u32 %v631, 16
        %v740 = vrot.slane %v738, 1
        %v741 = vsel %vm633, %v736, %v740
        %v743 = vshrl.u32 %v592, 16
        %v745 = vshll.u32 %v592, 16
        %v747 = vrot.slane %v745, 1
        %v748 = vor.u32 %v743, %v747
        %v750 = vshll.u32 %v632, 16
        %v752 = vrot.slane %v750, 1
        %v753 = vsel %vm633, %v748, %v752
        %vm764 = vcmask 1046528
        %v765 = vrot.slane %v583, 1
        %v766 = vrot.slane %v623, 1
        %v767 = vsel %vm764, %v765, %v766
        %v768 = vrot.slane %v584, 1
        %v769 = vrot.slane %v624, 1
        %v770 = vsel %vm764, %v768, %v769
        %v771 = vrot.slane %v585, 1
        %v772 = vrot.slane %v625, 1
        %v773 = vsel %vm764, %v771, %v772
        %v774 = vrot.slane %v586, 1
        %v775 = vrot.slane %v626, 1
        %v776 = vsel %vm764, %v774, %v775
        %v777 = vrot.slane %v587, 1
        %v778 = vrot.slane %v627, 1
        %v779 = vsel %vm764, %v777, %v778
        %v780 = vrot.slane %v588, 1
        %v781 = vrot.slane %v628, 1
        %v782 = vsel %vm764, %v780, %v781
        %v783 = vrot.slane %v589, 1
        %v784 = vrot.slane %v629, 1
        %v785 = vsel %vm764, %v783, %v784
        %v786 = vrot.slane %v590, 1
        %v787 = vrot.slane %v630, 1
        %v788 = vsel %vm764, %v786, %v787
        %v789 = vrot.slane %v591, 1
        %v790 = vrot.slane %v631, 1
        %v791 = vsel %vm764, %v789, %v790
        %v792 = vrot.slane %v592, 1
        %v793 = vrot.slane %v632, 1
        %v794 = vsel %vm764, %v792, %v793
        %v805 = vld [vmem:[%s1] sm:$0xf]
        %v806 = vld [vmem:[%s1 + $0x4] sm:$0xf]
        %v807 = vld [vmem:[%s1 + $0x8] sm:$0xf]
        %v808 = vld [vmem:[%s1 + $0xc] sm:$0xf]
        %v809 = vld [vmem:[%s1 + $0x10] sm:$0xf]
        %v810 = vld [vmem:[%s1 + $0x14] sm:$0xf]
        %v811 = vld [vmem:[%s1 + $0x18] sm:$0xf]
        %v812 = vld [vmem:[%s1 + $0x1c] sm:$0xf]
        %v813 = vld [vmem:[%s1 + $0x20] sm:$0xf]
        %v814 = vld [vmem:[%s1 + $0x24] sm:$0xf]
        %v815 = vld [vmem:[%s1 + $0x28] sm:$0xf]
        %v816 = vld [vmem:[%s1 + $0x2c] sm:$0xf]
        %v817 = vld [vmem:[%s1 + $0x30] sm:$0xf]
        %v818 = vld [vmem:[%s1 + $0x34] sm:$0xf]
        %v819 = vld [vmem:[%s1 + $0x38] sm:$0xf]
        %v820 = vld [vmem:[%s1 + $0x3c] sm:$0xf]
        %v821 = vld [vmem:[%s1 + $0x40] sm:$0xf]
        %v822 = vld [vmem:[%s1 + $0x44] sm:$0xf]
        %v823 = vld [vmem:[%s1 + $0x48] sm:$0xf]
        %v824 = vld [vmem:[%s1 + $0x4c] sm:$0xf]
        %v825 = vld [vmem:[%s1 + $0x50] sm:$0xf]
        %v826 = vld [vmem:[%s1 + $0x54] sm:$0xf]
        %v827 = vld [vmem:[%s1 + $0x58] sm:$0xf]
        %v828 = vld [vmem:[%s1 + $0x5c] sm:$0xf]
        %v829 = vld [vmem:[%s1 + $0x60] sm:$0xf]
        %v830 = vld [vmem:[%s1 + $0x64] sm:$0xf]
        %v831 = vld [vmem:[%s1 + $0x68] sm:$0xf]
        %v832 = vld [vmem:[%s1 + $0x6c] sm:$0xf]
        %v833 = vld [vmem:[%s1 + $0x70] sm:$0xf]
        %v834 = vld [vmem:[%s1 + $0x74] sm:$0xf]
        %v835 = vld [vmem:[%s1 + $0x78] sm:$0xf]
        %v836 = vld [vmem:[%s1 + $0x7c] sm:$0xf]
        %v837 = vld [vmem:[%s1 + $0x80] sm:$0xf]
        %v838 = vld [vmem:[%s1 + $0x84] sm:$0xf]
        %v839 = vld [vmem:[%s1 + $0x88] sm:$0xf]
        %v840 = vld [vmem:[%s1 + $0x8c] sm:$0xf]
        %v841 = vld [vmem:[%s1 + $0x90] sm:$0xf]
        %v842 = vld [vmem:[%s1 + $0x94] sm:$0xf]
        %v843 = vld [vmem:[%s1 + $0x98] sm:$0xf]
        %v844 = vld [vmem:[%s1 + $0x9c] sm:$0xf]
        %v845 = vld [vmem:[%s1 + $0xa0] sm:$0xf]
        %v846 = vld [vmem:[%s1 + $0xa4] sm:$0xf]
        %v847 = vld [vmem:[%s1 + $0xa8] sm:$0xf]
        %v848 = vld [vmem:[%s1 + $0xac] sm:$0xf]
        %v849 = vld [vmem:[%s1 + $0xb0] sm:$0xf]
        %v850 = vld [vmem:[%s1 + $0xb4] sm:$0xf]
        %v851 = vld [vmem:[%s1 + $0xb8] sm:$0xf]
        %v852 = vld [vmem:[%s1 + $0xbc] sm:$0xf]
        %v855 = vunpack.c.l.b16 %v537
        %v856 = vunpack.c.l.b16 %v538
        %v857 = vpack.c.b16 %v856, %v855
        %v860 = vunpack.c.l.b16 %v539
        %v861 = vpack.c.b16 %v860, %v860
        %v863 = vshrl.u32 %v857, 16
        %v865 = vshll.u32 %v857, 16
        %v867 = vrot.slane %v865, 1
        %v868 = vor.u32 %v863, %v867
        %v870 = vshll.u32 %v861, 16
        %v872 = vrot.slane %v870, 1
        %v873 = vsel %vm633, %v868, %v872
        %v875 = vrot.slane %v857, 1
        %v876 = vrot.slane %v861, 1
        %v877 = vsel %vm764, %v875, %v876
        %v879 = vld [vmem:[%s1 + $0xc0] sm:$0xf]
        %v880 = vld [vmem:[%s1 + $0xc4] sm:$0xf]
        %v881 = vld [vmem:[%s1 + $0xc8] sm:$0xf]
        %v882 = vld [vmem:[%s1 + $0xcc] sm:$0xf]
        %v883 = vld [vmem:[%s1 + $0xd0] sm:$0xf]
        %v884 = vld [vmem:[%s1 + $0xd4] sm:$0xf]
        %v885 = vld [vmem:[%s1 + $0xd8] sm:$0xf]
        %v886 = vld [vmem:[%s1 + $0xdc] sm:$0xf]
        %v887 = vld [vmem:[%s1 + $0xe0] sm:$0xf]
        %v888 = vld [vmem:[%s1 + $0xe4] sm:$0xf]
        %v889 = vld [vmem:[%s1 + $0xe8] sm:$0xf]
        %v890 = vld [vmem:[%s1 + $0xec] sm:$0xf]
        %v891 = vld [vmem:[%s1 + $0xf0] sm:$0xf]
        %v892 = vld [vmem:[%s1 + $0xf4] sm:$0xf]
        %v893 = vld [vmem:[%s1 + $0xf8] sm:$0xf]
        %v894 = vld [vmem:[%s1 + $0xfc] sm:$0xf]
        %v895 = vld [vmem:[%s1 + $0x100] sm:$0xf]
        %v896 = vld [vmem:[%s1 + $0x104] sm:$0xf]
        %v897 = vld [vmem:[%s1 + $0x108] sm:$0xf]
        %v898 = vld [vmem:[%s1 + $0x10c] sm:$0xf]
        %v899 = vld [vmem:[%s1 + $0x110] sm:$0xf]
        %v900 = vld [vmem:[%s1 + $0x114] sm:$0xf]
        %v901 = vld [vmem:[%s1 + $0x118] sm:$0xf]
        %v902 = vld [vmem:[%s1 + $0x11c] sm:$0xf]
        %v903 = vld [vmem:[%s1 + $0x120] sm:$0xf]
        %v904 = vld [vmem:[%s1 + $0x124] sm:$0xf]
        %v905 = vld [vmem:[%s1 + $0x128] sm:$0xf]
        %v906 = vld [vmem:[%s1 + $0x12c] sm:$0xf]
        %v907 = vld [vmem:[%s1 + $0x130] sm:$0xf]
        %v908 = vld [vmem:[%s1 + $0x134] sm:$0xf]
        %v909 = vld [vmem:[%s1 + $0x138] sm:$0xf]
        %v910 = vld [vmem:[%s1 + $0x13c] sm:$0xf]
        %v911 = vld [vmem:[%s1 + $0x140] sm:$0xf]
        %v912 = vld [vmem:[%s1 + $0x144] sm:$0xf]
        %v913 = vld [vmem:[%s1 + $0x148] sm:$0xf]
        %v914 = vld [vmem:[%s1 + $0x14c] sm:$0xf]
        %v915 = vld [vmem:[%s1 + $0x150] sm:$0xf]
        %v916 = vld [vmem:[%s1 + $0x154] sm:$0xf]
        %v917 = vld [vmem:[%s1 + $0x158] sm:$0xf]
        %v918 = vld [vmem:[%s1 + $0x15c] sm:$0xf]
        %v919 = vld [vmem:[%s1 + $0x160] sm:$0xf]
        %v920 = vld [vmem:[%s1 + $0x164] sm:$0xf]
        %v921 = vld [vmem:[%s1 + $0x168] sm:$0xf]
        %v922 = vld [vmem:[%s1 + $0x16c] sm:$0xf]
        %v923 = vld [vmem:[%s1 + $0x170] sm:$0xf]
        %v924 = vld [vmem:[%s1 + $0x174] sm:$0xf]
        %v925 = vld [vmem:[%s1 + $0x178] sm:$0xf]
        %v926 = vld [vmem:[%s1 + $0x17c] sm:$0xf]
        %v975 = vunpack.c.l.b16 %v879
        %v976 = vunpack.c.l.b16 %v880
        %v977 = vunpack.c.l.b16 %v881
        %v978 = vunpack.c.l.b16 %v882
        %v979 = vunpack.c.l.b16 %v883
        %v980 = vunpack.c.l.b16 %v884
        %v981 = vunpack.c.l.b16 %v885
        %v982 = vunpack.c.l.b16 %v886
        %v983 = vunpack.c.l.b16 %v887
        %v984 = vunpack.c.l.b16 %v888
        %v985 = vunpack.c.l.b16 %v889
        %v986 = vunpack.c.l.b16 %v890
        %v987 = vunpack.c.l.b16 %v891
        %v988 = vunpack.c.l.b16 %v892
        %v989 = vunpack.c.l.b16 %v893
        %v990 = vunpack.c.l.b16 %v894
        %v991 = vunpack.c.l.b16 %v895
        %v992 = vunpack.c.l.b16 %v896
        %v993 = vunpack.c.l.b16 %v897
        %v994 = vunpack.c.l.b16 %v898
        %v995 = vunpack.c.l.b16 %v899
        %v996 = vunpack.c.l.b16 %v900
        %v997 = vunpack.c.l.b16 %v901
        %v998 = vunpack.c.l.b16 %v902
        %v999 = vunpack.c.l.b16 %v903
        %v1000 = vunpack.c.l.b16 %v904
        %v1001 = vunpack.c.l.b16 %v905
        %v1002 = vunpack.c.l.b16 %v906
        %v1003 = vunpack.c.l.b16 %v907
        %v1004 = vunpack.c.l.b16 %v908
        %v1005 = vunpack.c.l.b16 %v909
        %v1006 = vunpack.c.l.b16 %v910
        %v1007 = vunpack.c.l.b16 %v911
        %v1008 = vunpack.c.l.b16 %v912
        %v1009 = vunpack.c.l.b16 %v913
        %v1010 = vunpack.c.l.b16 %v914
        %v1011 = vunpack.c.l.b16 %v915
        %v1012 = vunpack.c.l.b16 %v916
        %v1013 = vunpack.c.l.b16 %v917
        %v1014 = vunpack.c.l.b16 %v918
        %v1015 = vunpack.c.l.b16 %v919
        %v1016 = vunpack.c.l.b16 %v920
        %v1017 = vunpack.c.l.b16 %v921
        %v1018 = vunpack.c.l.b16 %v922
        %v1019 = vunpack.c.l.b16 %v923
        %v1020 = vunpack.c.l.b16 %v924
        %v1021 = vunpack.c.l.b16 %v925
        %v1022 = vunpack.c.l.b16 %v926
        %v1023 = vpack.c.b16 %v976, %v975
        %v1024 = vpack.c.b16 %v978, %v977
        %v1025 = vpack.c.b16 %v980, %v979
        %v1026 = vpack.c.b16 %v982, %v981
        %v1027 = vpack.c.b16 %v984, %v983
        %v1028 = vpack.c.b16 %v986, %v985
        %v1029 = vpack.c.b16 %v988, %v987
        %v1030 = vpack.c.b16 %v990, %v989
        %v1031 = vpack.c.b16 %v992, %v991
        %v1032 = vpack.c.b16 %v994, %v993
        %v1033 = vpack.c.b16 %v996, %v995
        %v1034 = vpack.c.b16 %v998, %v997
        %v1035 = vpack.c.b16 %v1000, %v999
        %v1036 = vpack.c.b16 %v1002, %v1001
        %v1037 = vpack.c.b16 %v1004, %v1003
        %v1038 = vpack.c.b16 %v1006, %v1005
        %v1039 = vpack.c.b16 %v1008, %v1007
        %v1040 = vpack.c.b16 %v1010, %v1009
        %v1041 = vpack.c.b16 %v1012, %v1011
        %v1042 = vpack.c.b16 %v1014, %v1013
        %v1043 = vpack.c.b16 %v1016, %v1015
        %v1044 = vpack.c.b16 %v1018, %v1017
        %v1045 = vpack.c.b16 %v1020, %v1019
        %v1046 = vpack.c.b16 %v1022, %v1021
        %1071 = vmatpush.bf16.msra.mxu0 %v1030
        %1072 = vmatpush.bf16.msra.mxu0 %v1029
        %1073 = vmatpush.bf16.msra.mxu0 %v1028
        %1074 = vmatpush.bf16.msra.mxu0 %v1027
        %1075 = vmatpush.bf16.msra.mxu0 %v1026
        %1076 = vmatpush.bf16.msra.mxu0 %v1025
        %1077 = vmatpush.bf16.msra.mxu0 %v1024
        %1078 = vmatpush.bf16.msra.mxu0 %v1023
        %1079 = vmatmul.bf16.gmra.mxu0 %v584
        %v1080 = vpop.f32.mrf.mxu0
        %v1081 = vadd.f32 0.0, %v1080
        %v1082 = vpop.f32.mrf.mxu0
        %v1083 = vadd.f32 0.0, %v1082
        %1084 = vmatmul.bf16.gmra.mxu0 %v585
        %v1085 = vpop.f32.mrf.mxu0
        %v1086 = vadd.f32 0.0, %v1085
        %v1087 = vpop.f32.mrf.mxu0
        %v1088 = vadd.f32 0.0, %v1087
        %1089 = vmatmul.bf16.gmra.mxu0 %v586
        %v1090 = vpop.f32.mrf.mxu0
        %v1091 = vadd.f32 0.0, %v1090
        %v1092 = vpop.f32.mrf.mxu0
        %v1093 = vadd.f32 0.0, %v1092
        %1094 = vmatmul.bf16.gmra.mxu0 %v587
        %v1095 = vpop.f32.mrf.mxu0
        %v1096 = vadd.f32 0.0, %v1095
        %v1097 = vpop.f32.mrf.mxu0
        %v1098 = vadd.f32 0.0, %v1097
        %1099 = vmatmul.bf16.gmra.mxu0 %v588
        %v1100 = vpop.f32.mrf.mxu0
        %v1101 = vadd.f32 0.0, %v1100
        %v1102 = vpop.f32.mrf.mxu0
        %v1103 = vadd.f32 0.0, %v1102
        %1104 = vmatmul.bf16.gmra.mxu0 %v589
        %v1105 = vpop.f32.mrf.mxu0
        %v1106 = vadd.f32 0.0, %v1105
        %v1107 = vpop.f32.mrf.mxu0
        %v1108 = vadd.f32 0.0, %v1107
        %1109 = vmatmul.bf16.gmra.mxu0 %v590
        %v1110 = vpop.f32.mrf.mxu0
        %v1111 = vadd.f32 0.0, %v1110
        %v1112 = vpop.f32.mrf.mxu0
        %v1113 = vadd.f32 0.0, %v1112
        %1114 = vmatmul.bf16.gmra.mxu0 %v591
        %v1115 = vpop.f32.mrf.mxu0
        %v1116 = vadd.f32 0.0, %v1115
        %v1117 = vpop.f32.mrf.mxu0
        %v1118 = vadd.f32 0.0, %v1117
        %1119 = vmatmul.bf16.gmra.mxu0 %v592
        %v1120 = vpop.f32.mrf.mxu0
        %v1121 = vadd.f32 0.0, %v1120
        %v1122 = vpop.f32.mrf.mxu0
        %v1123 = vadd.f32 0.0, %v1122
        %1124 = vmatmul.bf16.gmra.mxu0 %v857
        %v1125 = vpop.f32.mrf.mxu0
        %v1126 = vadd.f32 0.0, %v1125
        %v1127 = vpop.f32.mrf.mxu0
        %v1128 = vadd.f32 0.0, %v1127
        %1129 = vdwg.mxu0
        %1130 = vmatpush.bf16.msra.mxu0 %v1038
        %1131 = vmatpush.bf16.msra.mxu0 %v1037
        %1132 = vmatpush.bf16.msra.mxu0 %v1036
        %1133 = vmatpush.bf16.msra.mxu0 %v1035
        %1134 = vmatpush.bf16.msra.mxu0 %v1034
        %1135 = vmatpush.bf16.msra.mxu0 %v1033
        %1136 = vmatpush.bf16.msra.mxu0 %v1032
        %1137 = vmatpush.bf16.msra.mxu0 %v1031
        %1138 = vmatmul.bf16.gmra.mxu0 %v657
        %v1139 = vpop.f32.mrf.mxu0
        %v1140 = vadd.f32 %v1081, %v1139
        %v1141 = vpop.f32.mrf.mxu0
        %v1142 = vadd.f32 %v1083, %v1141
        %1143 = vmatmul.bf16.gmra.mxu0 %v669
        %v1144 = vpop.f32.mrf.mxu0
        %v1145 = vadd.f32 %v1086, %v1144
        %v1146 = vpop.f32.mrf.mxu0
        %v1147 = vadd.f32 %v1088, %v1146
        %1148 = vmatmul.bf16.gmra.mxu0 %v681
        %v1149 = vpop.f32.mrf.mxu0
        %v1150 = vadd.f32 %v1091, %v1149
        %v1151 = vpop.f32.mrf.mxu0
        %v1152 = vadd.f32 %v1093, %v1151
        %1153 = vmatmul.bf16.gmra.mxu0 %v693
        %v1154 = vpop.f32.mrf.mxu0
        %v1155 = vadd.f32 %v1096, %v1154
        %v1156 = vpop.f32.mrf.mxu0
        %v1157 = vadd.f32 %v1098, %v1156
        %1158 = vmatmul.bf16.gmra.mxu0 %v705
        %v1159 = vpop.f32.mrf.mxu0
        %v1160 = vadd.f32 %v1101, %v1159
        %v1161 = vpop.f32.mrf.mxu0
        %v1162 = vadd.f32 %v1103, %v1161
        %1163 = vmatmul.bf16.gmra.mxu0 %v717
        %v1164 = vpop.f32.mrf.mxu0
        %v1165 = vadd.f32 %v1106, %v1164
        %v1166 = vpop.f32.mrf.mxu0
        %v1167 = vadd.f32 %v1108, %v1166
        %1168 = vmatmul.bf16.gmra.mxu0 %v729
        %v1169 = vpop.f32.mrf.mxu0
        %v1170 = vadd.f32 %v1111, %v1169
        %v1171 = vpop.f32.mrf.mxu0
        %v1172 = vadd.f32 %v1113, %v1171
        %1173 = vmatmul.bf16.gmra.mxu0 %v741
        %v1174 = vpop.f32.mrf.mxu0
        %v1175 = vadd.f32 %v1116, %v1174
        %v1176 = vpop.f32.mrf.mxu0
        %v1177 = vadd.f32 %v1118, %v1176
        %1178 = vmatmul.bf16.gmra.mxu0 %v753
        %v1179 = vpop.f32.mrf.mxu0
        %v1180 = vadd.f32 %v1121, %v1179
        %v1181 = vpop.f32.mrf.mxu0
        %v1182 = vadd.f32 %v1123, %v1181
        %1183 = vmatmul.bf16.gmra.mxu0 %v873
        %v1184 = vpop.f32.mrf.mxu0
        %v1185 = vadd.f32 %v1126, %v1184
        %v1186 = vpop.f32.mrf.mxu0
        %v1187 = vadd.f32 %v1128, %v1186
        %1188 = vdwg.mxu0
        %1189 = vmatpush.bf16.msra.mxu0 %v1046
        %1190 = vmatpush.bf16.msra.mxu0 %v1045
        %1191 = vmatpush.bf16.msra.mxu0 %v1044
        %1192 = vmatpush.bf16.msra.mxu0 %v1043
        %1193 = vmatpush.bf16.msra.mxu0 %v1042
        %1194 = vmatpush.bf16.msra.mxu0 %v1041
        %1195 = vmatpush.bf16.msra.mxu0 %v1040
        %1196 = vmatpush.bf16.msra.mxu0 %v1039
        %1197 = vmatmul.bf16.gmra.mxu0 %v770
        %v1198 = vpop.f32.mrf.mxu0
        %v1199 = vadd.f32 %v1140, %v1198
        %v1200 = vpop.f32.mrf.mxu0
        %v1201 = vadd.f32 %v1142, %v1200
        %1202 = vmatmul.bf16.gmra.mxu0 %v773
        %v1203 = vpop.f32.mrf.mxu0
        %v1204 = vadd.f32 %v1145, %v1203
        %v1205 = vpop.f32.mrf.mxu0
        %v1206 = vadd.f32 %v1147, %v1205
        %1207 = vmatmul.bf16.gmra.mxu0 %v776
        %v1208 = vpop.f32.mrf.mxu0
        %v1209 = vadd.f32 %v1150, %v1208
        %v1210 = vpop.f32.mrf.mxu0
        %v1211 = vadd.f32 %v1152, %v1210
        %1212 = vmatmul.bf16.gmra.mxu0 %v779
        %v1213 = vpop.f32.mrf.mxu0
        %v1214 = vadd.f32 %v1155, %v1213
        %v1215 = vpop.f32.mrf.mxu0
        %v1216 = vadd.f32 %v1157, %v1215
        %1217 = vmatmul.bf16.gmra.mxu0 %v782
        %v1218 = vpop.f32.mrf.mxu0
        %v1219 = vadd.f32 %v1160, %v1218
        %v1220 = vpop.f32.mrf.mxu0
        %v1221 = vadd.f32 %v1162, %v1220
        %1222 = vmatmul.bf16.gmra.mxu0 %v785
        %v1223 = vpop.f32.mrf.mxu0
        %v1224 = vadd.f32 %v1165, %v1223
        %v1225 = vpop.f32.mrf.mxu0
        %v1226 = vadd.f32 %v1167, %v1225
        %1227 = vmatmul.bf16.gmra.mxu0 %v788
        %v1228 = vpop.f32.mrf.mxu0
        %v1229 = vadd.f32 %v1170, %v1228
        %v1230 = vpop.f32.mrf.mxu0
        %v1231 = vadd.f32 %v1172, %v1230
        %1232 = vmatmul.bf16.gmra.mxu0 %v791
        %v1233 = vpop.f32.mrf.mxu0
        %v1234 = vadd.f32 %v1175, %v1233
        %v1235 = vpop.f32.mrf.mxu0
        %v1236 = vadd.f32 %v1177, %v1235
        %1237 = vmatmul.bf16.gmra.mxu0 %v794
        %v1238 = vpop.f32.mrf.mxu0
        %v1239 = vadd.f32 %v1180, %v1238
        %v1240 = vpop.f32.mrf.mxu0
        %v1241 = vadd.f32 %v1182, %v1240
        %1242 = vmatmul.bf16.gmra.mxu0 %v877
        %v1243 = vpop.f32.mrf.mxu0
        %v1244 = vadd.f32 %v1185, %v1243
        %v1245 = vpop.f32.mrf.mxu0
        %v1246 = vadd.f32 %v1187, %v1245
        %1247 = vdwg.mxu0
        %v1296 = vunpack.c.l.b16 %v805
        %v1297 = vunpack.c.l.b16 %v806
        %v1298 = vunpack.c.l.b16 %v807
        %v1299 = vunpack.c.l.b16 %v808
        %v1300 = vunpack.c.l.b16 %v809
        %v1301 = vunpack.c.l.b16 %v810
        %v1302 = vunpack.c.l.b16 %v811
        %v1303 = vunpack.c.l.b16 %v812
        %v1304 = vunpack.c.l.b16 %v813
        %v1305 = vunpack.c.l.b16 %v814
        %v1306 = vunpack.c.l.b16 %v815
        %v1307 = vunpack.c.l.b16 %v816
        %v1308 = vunpack.c.l.b16 %v817
        %v1309 = vunpack.c.l.b16 %v818
        %v1310 = vunpack.c.l.b16 %v819
        %v1311 = vunpack.c.l.b16 %v820
        %v1312 = vunpack.c.l.b16 %v821
        %v1313 = vunpack.c.l.b16 %v822
        %v1314 = vunpack.c.l.b16 %v823
        %v1315 = vunpack.c.l.b16 %v824
        %v1316 = vunpack.c.l.b16 %v825
        %v1317 = vunpack.c.l.b16 %v826
        %v1318 = vunpack.c.l.b16 %v827
        %v1319 = vunpack.c.l.b16 %v828
        %v1320 = vunpack.c.l.b16 %v829
        %v1321 = vunpack.c.l.b16 %v830
        %v1322 = vunpack.c.l.b16 %v831
        %v1323 = vunpack.c.l.b16 %v832
        %v1324 = vunpack.c.l.b16 %v833
        %v1325 = vunpack.c.l.b16 %v834
        %v1326 = vunpack.c.l.b16 %v835
        %v1327 = vunpack.c.l.b16 %v836
        %v1328 = vunpack.c.l.b16 %v837
        %v1329 = vunpack.c.l.b16 %v838
        %v1330 = vunpack.c.l.b16 %v839
        %v1331 = vunpack.c.l.b16 %v840
        %v1332 = vunpack.c.l.b16 %v841
        %v1333 = vunpack.c.l.b16 %v842
        %v1334 = vunpack.c.l.b16 %v843
        %v1335 = vunpack.c.l.b16 %v844
        %v1336 = vunpack.c.l.b16 %v845
        %v1337 = vunpack.c.l.b16 %v846
        %v1338 = vunpack.c.l.b16 %v847
        %v1339 = vunpack.c.l.b16 %v848
        %v1340 = vunpack.c.l.b16 %v849
        %v1341 = vunpack.c.l.b16 %v850
        %v1342 = vunpack.c.l.b16 %v851
        %v1343 = vunpack.c.l.b16 %v852
        %v1344 = vpack.c.b16 %v1297, %v1296
        %v1345 = vpack.c.b16 %v1299, %v1298
        %v1346 = vpack.c.b16 %v1301, %v1300
        %v1347 = vpack.c.b16 %v1303, %v1302
        %v1348 = vpack.c.b16 %v1305, %v1304
        %v1349 = vpack.c.b16 %v1307, %v1306
        %v1350 = vpack.c.b16 %v1309, %v1308
        %v1351 = vpack.c.b16 %v1311, %v1310
        %v1352 = vpack.c.b16 %v1313, %v1312
        %v1353 = vpack.c.b16 %v1315, %v1314
        %v1354 = vpack.c.b16 %v1317, %v1316
        %v1355 = vpack.c.b16 %v1319, %v1318
        %v1356 = vpack.c.b16 %v1321, %v1320
        %v1357 = vpack.c.b16 %v1323, %v1322
        %v1358 = vpack.c.b16 %v1325, %v1324
        %v1359 = vpack.c.b16 %v1327, %v1326
        %v1360 = vpack.c.b16 %v1329, %v1328
        %v1361 = vpack.c.b16 %v1331, %v1330
        %v1362 = vpack.c.b16 %v1333, %v1332
        %v1363 = vpack.c.b16 %v1335, %v1334
        %v1364 = vpack.c.b16 %v1337, %v1336
        %v1365 = vpack.c.b16 %v1339, %v1338
        %v1366 = vpack.c.b16 %v1341, %v1340
        %v1367 = vpack.c.b16 %v1343, %v1342
        %1392 = vmatpush.bf16.msra.mxu0 %v1351
        %1393 = vmatpush.bf16.msra.mxu0 %v1350
        %1394 = vmatpush.bf16.msra.mxu0 %v1349
        %1395 = vmatpush.bf16.msra.mxu0 %v1348
        %1396 = vmatpush.bf16.msra.mxu0 %v1347
        %1397 = vmatpush.bf16.msra.mxu0 %v1346
        %1398 = vmatpush.bf16.msra.mxu0 %v1345
        %1399 = vmatpush.bf16.msra.mxu0 %v1344
        %1400 = vmatmul.bf16.gmra.mxu0 %v583
        %v1401 = vpop.f32.mrf.mxu0
        %v1402 = vadd.f32 %v1199, %v1401
        %v1403 = vpop.f32.mrf.mxu0
        %v1404 = vadd.f32 %v1201, %v1403
        %1405 = vmatmul.bf16.gmra.mxu0 %v584
        %v1406 = vpop.f32.mrf.mxu0
        %v1407 = vadd.f32 %v1204, %v1406
        %v1408 = vpop.f32.mrf.mxu0
        %v1409 = vadd.f32 %v1206, %v1408
        %1410 = vmatmul.bf16.gmra.mxu0 %v585
        %v1411 = vpop.f32.mrf.mxu0
        %v1412 = vadd.f32 %v1209, %v1411
        %v1413 = vpop.f32.mrf.mxu0
        %v1414 = vadd.f32 %v1211, %v1413
        %1415 = vmatmul.bf16.gmra.mxu0 %v586
        %v1416 = vpop.f32.mrf.mxu0
        %v1417 = vadd.f32 %v1214, %v1416
        %v1418 = vpop.f32.mrf.mxu0
        %v1419 = vadd.f32 %v1216, %v1418
        %1420 = vmatmul.bf16.gmra.mxu0 %v587
        %v1421 = vpop.f32.mrf.mxu0
        %v1422 = vadd.f32 %v1219, %v1421
        %v1423 = vpop.f32.mrf.mxu0
        %v1424 = vadd.f32 %v1221, %v1423
        %1425 = vmatmul.bf16.gmra.mxu0 %v588
        %v1426 = vpop.f32.mrf.mxu0
        %v1427 = vadd.f32 %v1224, %v1426
        %v1428 = vpop.f32.mrf.mxu0
        %v1429 = vadd.f32 %v1226, %v1428
        %1430 = vmatmul.bf16.gmra.mxu0 %v589
        %v1431 = vpop.f32.mrf.mxu0
        %v1432 = vadd.f32 %v1229, %v1431
        %v1433 = vpop.f32.mrf.mxu0
        %v1434 = vadd.f32 %v1231, %v1433
        %1435 = vmatmul.bf16.gmra.mxu0 %v590
        %v1436 = vpop.f32.mrf.mxu0
        %v1437 = vadd.f32 %v1234, %v1436
        %v1438 = vpop.f32.mrf.mxu0
        %v1439 = vadd.f32 %v1236, %v1438
        %1440 = vmatmul.bf16.gmra.mxu0 %v591
        %v1441 = vpop.f32.mrf.mxu0
        %v1442 = vadd.f32 %v1239, %v1441
        %v1443 = vpop.f32.mrf.mxu0
        %v1444 = vadd.f32 %v1241, %v1443
        %1445 = vmatmul.bf16.gmra.mxu0 %v592
        %v1446 = vpop.f32.mrf.mxu0
        %v1447 = vadd.f32 %v1244, %v1446
        %v1448 = vpop.f32.mrf.mxu0
        %v1449 = vadd.f32 %v1246, %v1448
        %1450 = vdwg.mxu0
        %1451 = vmatpush.bf16.msra.mxu0 %v1359
        %1452 = vmatpush.bf16.msra.mxu0 %v1358
        %1453 = vmatpush.bf16.msra.mxu0 %v1357
        %1454 = vmatpush.bf16.msra.mxu0 %v1356
        %1455 = vmatpush.bf16.msra.mxu0 %v1355
        %1456 = vmatpush.bf16.msra.mxu0 %v1354
        %1457 = vmatpush.bf16.msra.mxu0 %v1353
        %1458 = vmatpush.bf16.msra.mxu0 %v1352
        %1459 = vmatmul.bf16.gmra.mxu0 %v645
        %v1460 = vpop.f32.mrf.mxu0
        %v1461 = vadd.f32 %v1402, %v1460
        %v1462 = vpop.f32.mrf.mxu0
        %v1463 = vadd.f32 %v1404, %v1462
        %1464 = vmatmul.bf16.gmra.mxu0 %v657
        %v1465 = vpop.f32.mrf.mxu0
        %v1466 = vadd.f32 %v1407, %v1465
        %v1467 = vpop.f32.mrf.mxu0
        %v1468 = vadd.f32 %v1409, %v1467
        %1469 = vmatmul.bf16.gmra.mxu0 %v669
        %v1470 = vpop.f32.mrf.mxu0
        %v1471 = vadd.f32 %v1412, %v1470
        %v1472 = vpop.f32.mrf.mxu0
        %v1473 = vadd.f32 %v1414, %v1472
        %1474 = vmatmul.bf16.gmra.mxu0 %v681
        %v1475 = vpop.f32.mrf.mxu0
        %v1476 = vadd.f32 %v1417, %v1475
        %v1477 = vpop.f32.mrf.mxu0
        %v1478 = vadd.f32 %v1419, %v1477
        %1479 = vmatmul.bf16.gmra.mxu0 %v693
        %v1480 = vpop.f32.mrf.mxu0
        %v1481 = vadd.f32 %v1422, %v1480
        %v1482 = vpop.f32.mrf.mxu0
        %v1483 = vadd.f32 %v1424, %v1482
        %1484 = vmatmul.bf16.gmra.mxu0 %v705
        %v1485 = vpop.f32.mrf.mxu0
        %v1486 = vadd.f32 %v1427, %v1485
        %v1487 = vpop.f32.mrf.mxu0
        %v1488 = vadd.f32 %v1429, %v1487
        %1489 = vmatmul.bf16.gmra.mxu0 %v717
        %v1490 = vpop.f32.mrf.mxu0
        %v1491 = vadd.f32 %v1432, %v1490
        %v1492 = vpop.f32.mrf.mxu0
        %v1493 = vadd.f32 %v1434, %v1492
        %1494 = vmatmul.bf16.gmra.mxu0 %v729
        %v1495 = vpop.f32.mrf.mxu0
        %v1496 = vadd.f32 %v1437, %v1495
        %v1497 = vpop.f32.mrf.mxu0
        %v1498 = vadd.f32 %v1439, %v1497
        %1499 = vmatmul.bf16.gmra.mxu0 %v741
        %v1500 = vpop.f32.mrf.mxu0
        %v1501 = vadd.f32 %v1442, %v1500
        %v1502 = vpop.f32.mrf.mxu0
        %v1503 = vadd.f32 %v1444, %v1502
        %1504 = vmatmul.bf16.gmra.mxu0 %v753
        %v1505 = vpop.f32.mrf.mxu0
        %v1506 = vadd.f32 %v1447, %v1505
        %v1507 = vpop.f32.mrf.mxu0
        %v1508 = vadd.f32 %v1449, %v1507
        %1509 = vdwg.mxu0
        %1510 = vmatpush.bf16.msra.mxu0 %v1367
        %1511 = vmatpush.bf16.msra.mxu0 %v1366
        %1512 = vmatpush.bf16.msra.mxu0 %v1365
        %1513 = vmatpush.bf16.msra.mxu0 %v1364
        %1514 = vmatpush.bf16.msra.mxu0 %v1363
        %1515 = vmatpush.bf16.msra.mxu0 %v1362
        %1516 = vmatpush.bf16.msra.mxu0 %v1361
        %1517 = vmatpush.bf16.msra.mxu0 %v1360
        %1518 = vmatmul.bf16.gmra.mxu0 %v767
        %v1519 = vpop.f32.mrf.mxu0
        %v1520 = vadd.f32 %v1461, %v1519
        %v1521 = vpop.f32.mrf.mxu0
        %v1522 = vadd.f32 %v1463, %v1521
        %1523 = vmatmul.bf16.gmra.mxu0 %v770
        %v1524 = vpop.f32.mrf.mxu0
        %v1525 = vadd.f32 %v1466, %v1524
        %v1526 = vpop.f32.mrf.mxu0
        %v1527 = vadd.f32 %v1468, %v1526
        %1528 = vmatmul.bf16.gmra.mxu0 %v773
        %v1529 = vpop.f32.mrf.mxu0
        %v1530 = vadd.f32 %v1471, %v1529
        %v1531 = vpop.f32.mrf.mxu0
        %v1532 = vadd.f32 %v1473, %v1531
        %1533 = vmatmul.bf16.gmra.mxu0 %v776
        %v1534 = vpop.f32.mrf.mxu0
        %v1535 = vadd.f32 %v1476, %v1534
        %v1536 = vpop.f32.mrf.mxu0
        %v1537 = vadd.f32 %v1478, %v1536
        %1538 = vmatmul.bf16.gmra.mxu0 %v779
        %v1539 = vpop.f32.mrf.mxu0
        %v1540 = vadd.f32 %v1481, %v1539
        %v1541 = vpop.f32.mrf.mxu0
        %v1542 = vadd.f32 %v1483, %v1541
        %1543 = vmatmul.bf16.gmra.mxu0 %v782
        %v1544 = vpop.f32.mrf.mxu0
        %v1545 = vadd.f32 %v1486, %v1544
        %v1546 = vpop.f32.mrf.mxu0
        %v1547 = vadd.f32 %v1488, %v1546
        %1548 = vmatmul.bf16.gmra.mxu0 %v785
        %v1549 = vpop.f32.mrf.mxu0
        %v1550 = vadd.f32 %v1491, %v1549
        %v1551 = vpop.f32.mrf.mxu0
        %v1552 = vadd.f32 %v1493, %v1551
        %1553 = vmatmul.bf16.gmra.mxu0 %v788
        %v1554 = vpop.f32.mrf.mxu0
        %v1555 = vadd.f32 %v1496, %v1554
        %v1556 = vpop.f32.mrf.mxu0
        %v1557 = vadd.f32 %v1498, %v1556
        %1558 = vmatmul.bf16.gmra.mxu0 %v791
        %v1559 = vpop.f32.mrf.mxu0
        %v1560 = vadd.f32 %v1501, %v1559
        %v1561 = vpop.f32.mrf.mxu0
        %v1562 = vadd.f32 %v1503, %v1561
        %1563 = vmatmul.bf16.gmra.mxu0 %v794
        %v1564 = vpop.f32.mrf.mxu0
        %v1565 = vadd.f32 %v1506, %v1564
        %v1566 = vpop.f32.mrf.mxu0
        %v1567 = vadd.f32 %v1508, %v1566
        %1568 = vdwg.mxu0
        %v1571 = vunpack.c.l.b16 %v540
        %v1572 = vunpack.c.l.b16 %v541
        %v1573 = vpack.c.b16 %v1572, %v1571
        %v1576 = vunpack.c.l.b16 %v542
        %v1577 = vpack.c.b16 %v1576, %v1576
        %v1579 = vshrl.u32 %v1573, 16
        %v1581 = vshll.u32 %v1573, 16
        %v1583 = vrot.slane %v1581, 1
        %v1584 = vor.u32 %v1579, %v1583
        %v1586 = vshll.u32 %v1577, 16
        %v1588 = vrot.slane %v1586, 1
        %v1589 = vsel %vm633, %v1584, %v1588
        %v1591 = vrot.slane %v1573, 1
        %v1592 = vrot.slane %v1577, 1
        %v1593 = vsel %vm764, %v1591, %v1592
        %v1595 = vld [vmem:[%s1 + $0x180] sm:$0xf]
        %v1596 = vld [vmem:[%s1 + $0x184] sm:$0xf]
        %v1597 = vld [vmem:[%s1 + $0x188] sm:$0xf]
        %v1598 = vld [vmem:[%s1 + $0x18c] sm:$0xf]
        %v1599 = vld [vmem:[%s1 + $0x190] sm:$0xf]
        %v1600 = vld [vmem:[%s1 + $0x194] sm:$0xf]
        %v1601 = vld [vmem:[%s1 + $0x198] sm:$0xf]
        %v1602 = vld [vmem:[%s1 + $0x19c] sm:$0xf]
        %v1603 = vld [vmem:[%s1 + $0x1a0] sm:$0xf]
        %v1604 = vld [vmem:[%s1 + $0x1a4] sm:$0xf]
        %v1605 = vld [vmem:[%s1 + $0x1a8] sm:$0xf]
        %v1606 = vld [vmem:[%s1 + $0x1ac] sm:$0xf]
        %v1607 = vld [vmem:[%s1 + $0x1b0] sm:$0xf]
        %v1608 = vld [vmem:[%s1 + $0x1b4] sm:$0xf]
        %v1609 = vld [vmem:[%s1 + $0x1b8] sm:$0xf]
        %v1610 = vld [vmem:[%s1 + $0x1bc] sm:$0xf]
        %v1611 = vld [vmem:[%s1 + $0x1c0] sm:$0xf]
        %v1612 = vld [vmem:[%s1 + $0x1c4] sm:$0xf]
        %v1613 = vld [vmem:[%s1 + $0x1c8] sm:$0xf]
        %v1614 = vld [vmem:[%s1 + $0x1cc] sm:$0xf]
        %v1615 = vld [vmem:[%s1 + $0x1d0] sm:$0xf]
        %v1616 = vld [vmem:[%s1 + $0x1d4] sm:$0xf]
        %v1617 = vld [vmem:[%s1 + $0x1d8] sm:$0xf]
        %v1618 = vld [vmem:[%s1 + $0x1dc] sm:$0xf]
        %v1619 = vld [vmem:[%s1 + $0x1e0] sm:$0xf]
        %v1620 = vld [vmem:[%s1 + $0x1e4] sm:$0xf]
        %v1621 = vld [vmem:[%s1 + $0x1e8] sm:$0xf]
        %v1622 = vld [vmem:[%s1 + $0x1ec] sm:$0xf]
        %v1623 = vld [vmem:[%s1 + $0x1f0] sm:$0xf]
        %v1624 = vld [vmem:[%s1 + $0x1f4] sm:$0xf]
        %v1625 = vld [vmem:[%s1 + $0x1f8] sm:$0xf]
        %v1626 = vld [vmem:[%s1 + $0x1fc] sm:$0xf]
        %v1627 = vld [vmem:[%s1 + $0x200] sm:$0xf]
        %v1628 = vld [vmem:[%s1 + $0x204] sm:$0xf]
        %v1629 = vld [vmem:[%s1 + $0x208] sm:$0xf]
        %v1630 = vld [vmem:[%s1 + $0x20c] sm:$0xf]
        %v1631 = vld [vmem:[%s1 + $0x210] sm:$0xf]
        %v1632 = vld [vmem:[%s1 + $0x214] sm:$0xf]
        %v1633 = vld [vmem:[%s1 + $0x218] sm:$0xf]
        %v1634 = vld [vmem:[%s1 + $0x21c] sm:$0xf]
        %v1635 = vld [vmem:[%s1 + $0x220] sm:$0xf]
        %v1636 = vld [vmem:[%s1 + $0x224] sm:$0xf]
        %v1637 = vld [vmem:[%s1 + $0x228] sm:$0xf]
        %v1638 = vld [vmem:[%s1 + $0x22c] sm:$0xf]
        %v1639 = vld [vmem:[%s1 + $0x230] sm:$0xf]
        %v1640 = vld [vmem:[%s1 + $0x234] sm:$0xf]
        %v1641 = vld [vmem:[%s1 + $0x238] sm:$0xf]
        %v1642 = vld [vmem:[%s1 + $0x23c] sm:$0xf]
        %v1691 = vunpack.c.l.b16 %v1595
        %v1692 = vunpack.c.l.b16 %v1596
        %v1693 = vunpack.c.l.b16 %v1597
        %v1694 = vunpack.c.l.b16 %v1598
        %v1695 = vunpack.c.l.b16 %v1599
        %v1696 = vunpack.c.l.b16 %v1600
        %v1697 = vunpack.c.l.b16 %v1601
        %v1698 = vunpack.c.l.b16 %v1602
        %v1699 = vunpack.c.l.b16 %v1603
        %v1700 = vunpack.c.l.b16 %v1604
        %v1701 = vunpack.c.l.b16 %v1605
        %v1702 = vunpack.c.l.b16 %v1606
        %v1703 = vunpack.c.l.b16 %v1607
        %v1704 = vunpack.c.l.b16 %v1608
        %v1705 = vunpack.c.l.b16 %v1609
        %v1706 = vunpack.c.l.b16 %v1610
        %v1707 = vunpack.c.l.b16 %v1611
        %v1708 = vunpack.c.l.b16 %v1612
        %v1709 = vunpack.c.l.b16 %v1613
        %v1710 = vunpack.c.l.b16 %v1614
        %v1711 = vunpack.c.l.b16 %v1615
        %v1712 = vunpack.c.l.b16 %v1616
        %v1713 = vunpack.c.l.b16 %v1617
        %v1714 = vunpack.c.l.b16 %v1618
        %v1715 = vunpack.c.l.b16 %v1619
        %v1716 = vunpack.c.l.b16 %v1620
        %v1717 = vunpack.c.l.b16 %v1621
        %v1718 = vunpack.c.l.b16 %v1622
        %v1719 = vunpack.c.l.b16 %v1623
        %v1720 = vunpack.c.l.b16 %v1624
        %v1721 = vunpack.c.l.b16 %v1625
        %v1722 = vunpack.c.l.b16 %v1626
        %v1723 = vunpack.c.l.b16 %v1627
        %v1724 = vunpack.c.l.b16 %v1628
        %v1725 = vunpack.c.l.b16 %v1629
        %v1726 = vunpack.c.l.b16 %v1630
        %v1727 = vunpack.c.l.b16 %v1631
        %v1728 = vunpack.c.l.b16 %v1632
        %v1729 = vunpack.c.l.b16 %v1633
        %v1730 = vunpack.c.l.b16 %v1634
        %v1731 = vunpack.c.l.b16 %v1635
        %v1732 = vunpack.c.l.b16 %v1636
        %v1733 = vunpack.c.l.b16 %v1637
        %v1734 = vunpack.c.l.b16 %v1638
        %v1735 = vunpack.c.l.b16 %v1639
        %v1736 = vunpack.c.l.b16 %v1640
        %v1737 = vunpack.c.l.b16 %v1641
        %v1738 = vunpack.c.l.b16 %v1642
        %v1739 = vpack.c.b16 %v1692, %v1691
        %v1740 = vpack.c.b16 %v1694, %v1693
        %v1741 = vpack.c.b16 %v1696, %v1695
        %v1742 = vpack.c.b16 %v1698, %v1697
        %v1743 = vpack.c.b16 %v1700, %v1699
        %v1744 = vpack.c.b16 %v1702, %v1701
        %v1745 = vpack.c.b16 %v1704, %v1703
        %v1746 = vpack.c.b16 %v1706, %v1705
        %v1747 = vpack.c.b16 %v1708, %v1707
        %v1748 = vpack.c.b16 %v1710, %v1709
        %v1749 = vpack.c.b16 %v1712, %v1711
        %v1750 = vpack.c.b16 %v1714, %v1713
        %v1751 = vpack.c.b16 %v1716, %v1715
        %v1752 = vpack.c.b16 %v1718, %v1717
        %v1753 = vpack.c.b16 %v1720, %v1719
        %v1754 = vpack.c.b16 %v1722, %v1721
        %v1755 = vpack.c.b16 %v1724, %v1723
        %v1756 = vpack.c.b16 %v1726, %v1725
        %v1757 = vpack.c.b16 %v1728, %v1727
        %v1758 = vpack.c.b16 %v1730, %v1729
        %v1759 = vpack.c.b16 %v1732, %v1731
        %v1760 = vpack.c.b16 %v1734, %v1733
        %v1761 = vpack.c.b16 %v1736, %v1735
        %v1762 = vpack.c.b16 %v1738, %v1737
        %1787 = vmatpush.bf16.msra.mxu0 %v1746
        %1788 = vmatpush.bf16.msra.mxu0 %v1745
        %1789 = vmatpush.bf16.msra.mxu0 %v1744
        %1790 = vmatpush.bf16.msra.mxu0 %v1743
        %1791 = vmatpush.bf16.msra.mxu0 %v1742
        %1792 = vmatpush.bf16.msra.mxu0 %v1741
        %1793 = vmatpush.bf16.msra.mxu0 %v1740
        %1794 = vmatpush.bf16.msra.mxu0 %v1739
        %1795 = vmatmul.bf16.gmra.mxu0 %v585
        %v1796 = vpop.f32.mrf.mxu0
        %v1797 = vadd.f32 0.0, %v1796
        %v1798 = vpop.f32.mrf.mxu0
        %v1799 = vadd.f32 0.0, %v1798
        %1800 = vmatmul.bf16.gmra.mxu0 %v586
        %v1801 = vpop.f32.mrf.mxu0
        %v1802 = vadd.f32 0.0, %v1801
        %v1803 = vpop.f32.mrf.mxu0
        %v1804 = vadd.f32 0.0, %v1803
        %1805 = vmatmul.bf16.gmra.mxu0 %v587
        %v1806 = vpop.f32.mrf.mxu0
        %v1807 = vadd.f32 0.0, %v1806
        %v1808 = vpop.f32.mrf.mxu0
        %v1809 = vadd.f32 0.0, %v1808
        %1810 = vmatmul.bf16.gmra.mxu0 %v588
        %v1811 = vpop.f32.mrf.mxu0
        %v1812 = vadd.f32 0.0, %v1811
        %v1813 = vpop.f32.mrf.mxu0
        %v1814 = vadd.f32 0.0, %v1813
        %1815 = vmatmul.bf16.gmra.mxu0 %v589
        %v1816 = vpop.f32.mrf.mxu0
        %v1817 = vadd.f32 0.0, %v1816
        %v1818 = vpop.f32.mrf.mxu0
        %v1819 = vadd.f32 0.0, %v1818
        %1820 = vmatmul.bf16.gmra.mxu0 %v590
        %v1821 = vpop.f32.mrf.mxu0
        %v1822 = vadd.f32 0.0, %v1821
        %v1823 = vpop.f32.mrf.mxu0
        %v1824 = vadd.f32 0.0, %v1823
        %1825 = vmatmul.bf16.gmra.mxu0 %v591
        %v1826 = vpop.f32.mrf.mxu0
        %v1827 = vadd.f32 0.0, %v1826
        %v1828 = vpop.f32.mrf.mxu0
        %v1829 = vadd.f32 0.0, %v1828
        %1830 = vmatmul.bf16.gmra.mxu0 %v592
        %v1831 = vpop.f32.mrf.mxu0
        %v1832 = vadd.f32 0.0, %v1831
        %v1833 = vpop.f32.mrf.mxu0
        %v1834 = vadd.f32 0.0, %v1833
        %1835 = vmatmul.bf16.gmra.mxu0 %v857
        %v1836 = vpop.f32.mrf.mxu0
        %v1837 = vadd.f32 0.0, %v1836
        %v1838 = vpop.f32.mrf.mxu0
        %v1839 = vadd.f32 0.0, %v1838
        %1840 = vmatmul.bf16.gmra.mxu0 %v1573
        %v1841 = vpop.f32.mrf.mxu0
        %v1842 = vadd.f32 0.0, %v1841
        %v1843 = vpop.f32.mrf.mxu0
        %v1844 = vadd.f32 0.0, %v1843
        %1845 = vdwg.mxu0
        %1846 = vmatpush.bf16.msra.mxu0 %v1754
        %1847 = vmatpush.bf16.msra.mxu0 %v1753
        %1848 = vmatpush.bf16.msra.mxu0 %v1752
        %1849 = vmatpush.bf16.msra.mxu0 %v1751
        %1850 = vmatpush.bf16.msra.mxu0 %v1750
        %1851 = vmatpush.bf16.msra.mxu0 %v1749
        %1852 = vmatpush.bf16.msra.mxu0 %v1748
        %1853 = vmatpush.bf16.msra.mxu0 %v1747
        %1854 = vmatmul.bf16.gmra.mxu0 %v669
        %v1855 = vpop.f32.mrf.mxu0
        %v1856 = vadd.f32 %v1797, %v1855
        %v1857 = vpop.f32.mrf.mxu0
        %v1858 = vadd.f32 %v1799, %v1857
        %1859 = vmatmul.bf16.gmra.mxu0 %v681
        %v1860 = vpop.f32.mrf.mxu0
        %v1861 = vadd.f32 %v1802, %v1860
        %v1862 = vpop.f32.mrf.mxu0
        %v1863 = vadd.f32 %v1804, %v1862
        %1864 = vmatmul.bf16.gmra.mxu0 %v693
        %v1865 = vpop.f32.mrf.mxu0
        %v1866 = vadd.f32 %v1807, %v1865
        %v1867 = vpop.f32.mrf.mxu0
        %v1868 = vadd.f32 %v1809, %v1867
        %1869 = vmatmul.bf16.gmra.mxu0 %v705
        %v1870 = vpop.f32.mrf.mxu0
        %v1871 = vadd.f32 %v1812, %v1870
        %v1872 = vpop.f32.mrf.mxu0
        %v1873 = vadd.f32 %v1814, %v1872
        %1874 = vmatmul.bf16.gmra.mxu0 %v717
        %v1875 = vpop.f32.mrf.mxu0
        %v1876 = vadd.f32 %v1817, %v1875
        %v1877 = vpop.f32.mrf.mxu0
        %v1878 = vadd.f32 %v1819, %v1877
        %1879 = vmatmul.bf16.gmra.mxu0 %v729
        %v1880 = vpop.f32.mrf.mxu0
        %v1881 = vadd.f32 %v1822, %v1880
        %v1882 = vpop.f32.mrf.mxu0
        %v1883 = vadd.f32 %v1824, %v1882
        %1884 = vmatmul.bf16.gmra.mxu0 %v741
        %v1885 = vpop.f32.mrf.mxu0
        %v1886 = vadd.f32 %v1827, %v1885
        %v1887 = vpop.f32.mrf.mxu0
        %v1888 = vadd.f32 %v1829, %v1887
        %1889 = vmatmul.bf16.gmra.mxu0 %v753
        %v1890 = vpop.f32.mrf.mxu0
        %v1891 = vadd.f32 %v1832, %v1890
        %v1892 = vpop.f32.mrf.mxu0
        %v1893 = vadd.f32 %v1834, %v1892
        %1894 = vmatmul.bf16.gmra.mxu0 %v873
        %v1895 = vpop.f32.mrf.mxu0
        %v1896 = vadd.f32 %v1837, %v1895
        %v1897 = vpop.f32.mrf.mxu0
        %v1898 = vadd.f32 %v1839, %v1897
        %1899 = vmatmul.bf16.gmra.mxu0 %v1589
        %v1900 = vpop.f32.mrf.mxu0
        %v1901 = vadd.f32 %v1842, %v1900
        %v1902 = vpop.f32.mrf.mxu0
        %v1903 = vadd.f32 %v1844, %v1902
        %1904 = vdwg.mxu0
        %1905 = vmatpush.bf16.msra.mxu0 %v1762
        %1906 = vmatpush.bf16.msra.mxu0 %v1761
        %1907 = vmatpush.bf16.msra.mxu0 %v1760
        %1908 = vmatpush.bf16.msra.mxu0 %v1759
        %1909 = vmatpush.bf16.msra.mxu0 %v1758
        %1910 = vmatpush.bf16.msra.mxu0 %v1757
        %1911 = vmatpush.bf16.msra.mxu0 %v1756
        %1912 = vmatpush.bf16.msra.mxu0 %v1755
        %1913 = vmatmul.bf16.gmra.mxu0 %v773
        %v1914 = vpop.f32.mrf.mxu0
        %v1915 = vadd.f32 %v1856, %v1914
        %v1916 = vpop.f32.mrf.mxu0
        %v1917 = vadd.f32 %v1858, %v1916
        %1918 = vmatmul.bf16.gmra.mxu0 %v776
        %v1919 = vpop.f32.mrf.mxu0
        %v1920 = vadd.f32 %v1861, %v1919
        %v1921 = vpop.f32.mrf.mxu0
        %v1922 = vadd.f32 %v1863, %v1921
        %1923 = vmatmul.bf16.gmra.mxu0 %v779
        %v1924 = vpop.f32.mrf.mxu0
        %v1925 = vadd.f32 %v1866, %v1924
        %v1926 = vpop.f32.mrf.mxu0
        %v1927 = vadd.f32 %v1868, %v1926
        %1928 = vmatmul.bf16.gmra.mxu0 %v782
        %v1929 = vpop.f32.mrf.mxu0
        %v1930 = vadd.f32 %v1871, %v1929
        %v1931 = vpop.f32.mrf.mxu0
        %v1932 = vadd.f32 %v1873, %v1931
        %1933 = vmatmul.bf16.gmra.mxu0 %v785
        %v1934 = vpop.f32.mrf.mxu0
        %v1935 = vadd.f32 %v1876, %v1934
        %v1936 = vpop.f32.mrf.mxu0
        %v1937 = vadd.f32 %v1878, %v1936
        %1938 = vmatmul.bf16.gmra.mxu0 %v788
        %v1939 = vpop.f32.mrf.mxu0
        %v1940 = vadd.f32 %v1881, %v1939
        %v1941 = vpop.f32.mrf.mxu0
        %v1942 = vadd.f32 %v1883, %v1941
        %1943 = vmatmul.bf16.gmra.mxu0 %v791
        %v1944 = vpop.f32.mrf.mxu0
        %v1945 = vadd.f32 %v1886, %v1944
        %v1946 = vpop.f32.mrf.mxu0
        %v1947 = vadd.f32 %v1888, %v1946
        %1948 = vmatmul.bf16.gmra.mxu0 %v794
        %v1949 = vpop.f32.mrf.mxu0
        %v1950 = vadd.f32 %v1891, %v1949
        %v1951 = vpop.f32.mrf.mxu0
        %v1952 = vadd.f32 %v1893, %v1951
        %1953 = vmatmul.bf16.gmra.mxu0 %v877
        %v1954 = vpop.f32.mrf.mxu0
        %v1955 = vadd.f32 %v1896, %v1954
        %v1956 = vpop.f32.mrf.mxu0
        %v1957 = vadd.f32 %v1898, %v1956
        %1958 = vmatmul.bf16.gmra.mxu0 %v1593
        %v1959 = vpop.f32.mrf.mxu0
        %v1960 = vadd.f32 %v1901, %v1959
        %v1961 = vpop.f32.mrf.mxu0
        %v1962 = vadd.f32 %v1903, %v1961
        %1963 = vdwg.mxu0
        %v1964 = vadd.f32 %v1520, %v1915
        %v1965 = vadd.f32 %v1522, %v1917
        %v1966 = vadd.f32 %v1525, %v1920
        %v1967 = vadd.f32 %v1527, %v1922
        %v1968 = vadd.f32 %v1530, %v1925
        %v1969 = vadd.f32 %v1532, %v1927
        %v1970 = vadd.f32 %v1535, %v1930
        %v1971 = vadd.f32 %v1537, %v1932
        %v1972 = vadd.f32 %v1540, %v1935
        %v1973 = vadd.f32 %v1542, %v1937
        %v1974 = vadd.f32 %v1545, %v1940
        %v1975 = vadd.f32 %v1547, %v1942
        %v1976 = vadd.f32 %v1550, %v1945
        %v1977 = vadd.f32 %v1552, %v1947
        %v1978 = vadd.f32 %v1555, %v1950
        %v1979 = vadd.f32 %v1557, %v1952
        %v1980 = vadd.f32 %v1560, %v1955
        %v1981 = vadd.f32 %v1562, %v1957
        %v1982 = vadd.f32 %v1565, %v1960
        %v1983 = vadd.f32 %v1567, %v1962
        %v1984 = vld [vmem:[%s2] sm:$0x1]
        %v1986 = vperm.slane %v1984, 0
        %v1988 = vadd.f32 %v1964, %v1986
        %v1989 = vadd.f32 %v1965, %v1986
        %v1990 = vadd.f32 %v1966, %v1986
        %v1991 = vadd.f32 %v1967, %v1986
        %v1992 = vadd.f32 %v1968, %v1986
        %v1993 = vadd.f32 %v1969, %v1986
        %v1994 = vadd.f32 %v1970, %v1986
        %v1995 = vadd.f32 %v1971, %v1986
        %v1996 = vadd.f32 %v1972, %v1986
        %v1997 = vadd.f32 %v1973, %v1986
        %v1998 = vadd.f32 %v1974, %v1986
        %v1999 = vadd.f32 %v1975, %v1986
        %v2000 = vadd.f32 %v1976, %v1986
        %v2001 = vadd.f32 %v1977, %v1986
        %v2002 = vadd.f32 %v1978, %v1986
        %v2003 = vadd.f32 %v1979, %v1986
        %v2004 = vadd.f32 %v1980, %v1986
        %v2005 = vadd.f32 %v1981, %v1986
        %v2006 = vadd.f32 %v1982, %v1986
        %v2007 = vadd.f32 %v1983, %v1986
        %v2008 = vmax.f32 %v1988, 0.0
        %v2009 = vmax.f32 %v1989, 0.0
        %v2010 = vmax.f32 %v1990, 0.0
        %v2011 = vmax.f32 %v1991, 0.0
        %v2012 = vmax.f32 %v1992, 0.0
        %v2013 = vmax.f32 %v1993, 0.0
        %v2014 = vmax.f32 %v1994, 0.0
        %v2015 = vmax.f32 %v1995, 0.0
        %v2016 = vmax.f32 %v1996, 0.0
        %v2017 = vmax.f32 %v1997, 0.0
        %v2018 = vmax.f32 %v1998, 0.0
        %v2019 = vmax.f32 %v1999, 0.0
        %v2020 = vmax.f32 %v2000, 0.0
        %v2021 = vmax.f32 %v2001, 0.0
        %v2022 = vmax.f32 %v2002, 0.0
        %v2023 = vmax.f32 %v2003, 0.0
        %v2024 = vmax.f32 %v2004, 0.0
        %v2025 = vmax.f32 %v2005, 0.0
        %v2026 = vmax.f32 %v2006, 0.0
        %v2027 = vmax.f32 %v2007, 0.0
        %v2028 = vlaneseq
        %v2029 = vshrl.u32 %v2028, 7
        %v2030 = vadd.s32 %v2029, 8
        %s2031 = smul.u32 %s25, 8
        %s2032 = ssub.s32 %s2031, 1
        %v2033 = vstv %s2032
        %v2034 = vadd.s32 %v2029, %v2033
        %v2035 = vadd.s32 %v2030, %v2033
        %v2036 = vlaneseq
        %v2037 = vand.u32 %v2036, 127
        %s2038 = smul.u32 %s26, 8
        %s2039 = ssub.s32 %s2038, 1
        %v2040 = vstv %s2039
        %v2041 = vadd.s32 %v2037, %v2040
        %vm2042 = vcmp.ge.s32.totalorder %v2034, 0
        %vm2043 = vcmp.ge.s32.totalorder %v2035, 0
        %vm2044 = vcmp.lt.s32.totalorder %v2034, 16
        %vm2045 = vcmp.lt.s32.totalorder %v2035, 16
        %vm2046 = vmand %vm2042, %vm2044
        %vm2047 = vmand %vm2043, %vm2045
        %vm2048 = vcmp.ge.s32.totalorder %v2041, 0
        %vm2049 = vmand %vm2046, %vm2048
        %vm2050 = vmand %vm2047, %vm2048
        %vm2051 = vcmp.lt.s32.totalorder %v2041, 16
        %vm2052 = vmand %vm2049, %vm2051
        %vm2053 = vmand %vm2050, %vm2051
        %v2054 = vsel %vm2052, 1, 0
        %v2055 = vsel %vm2053, 1, 0
        %v2056 = vcvt.s32.f32 %v2054
        %v2057 = vcvt.s32.f32 %v2055
        %v2058 = vperm.slane %v2056, 0
        %v2059 = vlaneseq
        %v2060 = vshrl.u32 %v2059, 7
        %2062 = vset.pattern.permute.xlu0 %v2060
        %2063 = vperm.xlu0 %2062, %v2058
        %v2064 = vpop.permute.xlu0 %2063
        %v2065 = vlaneseq
        %v2066 = vshrl.u32 %v2065, 7
        %v2067 = vadd.s32 %v2066, 8
        %2068 = vset.pattern.permute.xlu0 %v2067
        %2069 = vperm.xlu0 %2068, %v2058
        %v2070 = vpop.permute.xlu0 %2069
        %v2071 = vperm.slane %v2056, 1
        %v2072 = vlaneseq
        %v2073 = vshrl.u32 %v2072, 7
        %2075 = vset.pattern.permute.xlu0 %v2073
        %2076 = vperm.xlu0 %2075, %v2071
        %v2077 = vpop.permute.xlu0 %2076
        %v2078 = vlaneseq
        %v2079 = vshrl.u32 %v2078, 7
        %v2080 = vadd.s32 %v2079, 8
        %2081 = vset.pattern.permute.xlu0 %v2080
        %2082 = vperm.xlu0 %2081, %v2071
        %v2083 = vpop.permute.xlu0 %2082
        %v2084 = vperm.slane %v2056, 2
        %v2085 = vlaneseq
        %v2086 = vshrl.u32 %v2085, 7
        %2088 = vset.pattern.permute.xlu0 %v2086
        %2089 = vperm.xlu0 %2088, %v2084
        %v2090 = vpop.permute.xlu0 %2089
        %v2091 = vlaneseq
        %v2092 = vshrl.u32 %v2091, 7
        %v2093 = vadd.s32 %v2092, 8
        %2094 = vset.pattern.permute.xlu0 %v2093
        %2095 = vperm.xlu0 %2094, %v2084
        %v2096 = vpop.permute.xlu0 %2095
        %v2097 = vperm.slane %v2056, 3
        %v2098 = vlaneseq
        %v2099 = vshrl.u32 %v2098, 7
        %2101 = vset.pattern.permute.xlu0 %v2099
        %2102 = vperm.xlu0 %2101, %v2097
        %v2103 = vpop.permute.xlu0 %2102
        %v2104 = vlaneseq
        %v2105 = vshrl.u32 %v2104, 7
        %v2106 = vadd.s32 %v2105, 8
        %2107 = vset.pattern.permute.xlu0 %v2106
        %2108 = vperm.xlu0 %2107, %v2097
        %v2109 = vpop.permute.xlu0 %2108
        %v2110 = vperm.slane %v2056, 4
        %v2111 = vlaneseq
        %v2112 = vshrl.u32 %v2111, 7
        %2114 = vset.pattern.permute.xlu0 %v2112
        %2115 = vperm.xlu0 %2114, %v2110
        %v2116 = vpop.permute.xlu0 %2115
        %v2117 = vlaneseq
        %v2118 = vshrl.u32 %v2117, 7
        %v2119 = vadd.s32 %v2118, 8
        %2120 = vset.pattern.permute.xlu0 %v2119
        %2121 = vperm.xlu0 %2120, %v2110
        %v2122 = vpop.permute.xlu0 %2121
        %v2123 = vperm.slane %v2056, 5
        %v2124 = vlaneseq
        %v2125 = vshrl.u32 %v2124, 7
        %2127 = vset.pattern.permute.xlu0 %v2125
        %2128 = vperm.xlu0 %2127, %v2123
        %v2129 = vpop.permute.xlu0 %2128
        %v2130 = vlaneseq
        %v2131 = vshrl.u32 %v2130, 7
        %v2132 = vadd.s32 %v2131, 8
        %2133 = vset.pattern.permute.xlu0 %v2132
        %2134 = vperm.xlu0 %2133, %v2123
        %v2135 = vpop.permute.xlu0 %2134
        %v2136 = vperm.slane %v2056, 6
        %v2137 = vlaneseq
        %v2138 = vshrl.u32 %v2137, 7
        %2140 = vset.pattern.permute.xlu0 %v2138
        %2141 = vperm.xlu0 %2140, %v2136
        %v2142 = vpop.permute.xlu0 %2141
        %v2143 = vlaneseq
        %v2144 = vshrl.u32 %v2143, 7
        %v2145 = vadd.s32 %v2144, 8
        %2146 = vset.pattern.permute.xlu0 %v2145
        %2147 = vperm.xlu0 %2146, %v2136
        %v2148 = vpop.permute.xlu0 %2147
        %v2149 = vperm.slane %v2056, 7
        %v2150 = vlaneseq
        %v2151 = vshrl.u32 %v2150, 7
        %2153 = vset.pattern.permute.xlu0 %v2151
        %2154 = vperm.xlu0 %2153, %v2149
        %v2155 = vpop.permute.xlu0 %2154
        %v2156 = vlaneseq
        %v2157 = vshrl.u32 %v2156, 7
        %v2158 = vadd.s32 %v2157, 8
        %2159 = vset.pattern.permute.xlu0 %v2158
        %2160 = vperm.xlu0 %2159, %v2149
        %v2161 = vpop.permute.xlu0 %2160
        %v2162 = vperm.slane %v2057, 0
        %v2163 = vlaneseq
        %v2164 = vshrl.u32 %v2163, 7
        %2166 = vset.pattern.permute.xlu0 %v2164
        %2167 = vperm.xlu0 %2166, %v2162
        %v2168 = vpop.permute.xlu0 %2167
        %v2169 = vlaneseq
        %v2170 = vshrl.u32 %v2169, 7
        %v2171 = vadd.s32 %v2170, 8
        %2172 = vset.pattern.permute.xlu0 %v2171
        %2173 = vperm.xlu0 %2172, %v2162
        %v2174 = vpop.permute.xlu0 %2173
        %v2175 = vperm.slane %v2057, 1
        %v2176 = vlaneseq
        %v2177 = vshrl.u32 %v2176, 7
        %2179 = vset.pattern.permute.xlu0 %v2177
        %2180 = vperm.xlu0 %2179, %v2175
        %v2181 = vpop.permute.xlu0 %2180
        %v2182 = vlaneseq
        %v2183 = vshrl.u32 %v2182, 7
        %v2184 = vadd.s32 %v2183, 8
        %2185 = vset.pattern.permute.xlu0 %v2184
        %2186 = vperm.xlu0 %2185, %v2175
        %v2187 = vpop.permute.xlu0 %2186
        %v2188 = vmul.f32 %v2008, %v2064
        %v2189 = vmul.f32 %v2009, %v2070
        %v2190 = vmul.f32 %v2010, %v2077
        %v2191 = vmul.f32 %v2011, %v2083
        %v2192 = vmul.f32 %v2012, %v2090
        %v2193 = vmul.f32 %v2013, %v2096
        %v2194 = vmul.f32 %v2014, %v2103
        %v2195 = vmul.f32 %v2015, %v2109
        %v2196 = vmul.f32 %v2016, %v2116
        %v2197 = vmul.f32 %v2017, %v2122
        %v2198 = vmul.f32 %v2018, %v2129
        %v2199 = vmul.f32 %v2019, %v2135
        %v2200 = vmul.f32 %v2020, %v2142
        %v2201 = vmul.f32 %v2021, %v2148
        %v2202 = vmul.f32 %v2022, %v2155
        %v2203 = vmul.f32 %v2023, %v2161
        %v2204 = vmul.f32 %v2024, %v2168
        %v2205 = vmul.f32 %v2025, %v2174
        %v2206 = vmul.f32 %v2026, %v2181
        %v2207 = vmul.f32 %v2027, %v2187
        %v2208 = vpack.c.bf16 %v2188, %v2188
        %v2209 = vpack.c.bf16 %v2189, %v2189
        %v2210 = vpack.c.bf16 %v2190, %v2190
        %v2211 = vpack.c.bf16 %v2191, %v2191
        %v2212 = vpack.c.bf16 %v2192, %v2192
        %v2213 = vpack.c.bf16 %v2193, %v2193
        %v2214 = vpack.c.bf16 %v2194, %v2194
        %v2215 = vpack.c.bf16 %v2195, %v2195
        %v2216 = vpack.c.bf16 %v2196, %v2196
        %v2217 = vpack.c.bf16 %v2197, %v2197
        %v2218 = vpack.c.bf16 %v2198, %v2198
        %v2219 = vpack.c.bf16 %v2199, %v2199
        %v2220 = vpack.c.bf16 %v2200, %v2200
        %v2221 = vpack.c.bf16 %v2201, %v2201
        %v2222 = vpack.c.bf16 %v2202, %v2202
        %v2223 = vpack.c.bf16 %v2203, %v2203
        %v2224 = vpack.c.bf16 %v2204, %v2204
        %v2225 = vpack.c.bf16 %v2205, %v2205
        %v2226 = vpack.c.bf16 %v2206, %v2206
        %v2227 = vpack.c.bf16 %v2207, %v2207
        %v2244 = vunpack.c.l.b16 %v2208
        %v2245 = vunpack.c.l.b16 %v2209
        %v2246 = vunpack.c.l.b16 %v2210
        %v2247 = vunpack.c.l.b16 %v2211
        %v2248 = vunpack.c.l.b16 %v2212
        %v2249 = vunpack.c.l.b16 %v2213
        %v2250 = vunpack.c.l.b16 %v2214
        %v2251 = vunpack.c.l.b16 %v2215
        %v2252 = vunpack.c.l.b16 %v2216
        %v2253 = vunpack.c.l.b16 %v2217
        %v2254 = vunpack.c.l.b16 %v2218
        %v2255 = vunpack.c.l.b16 %v2219
        %v2256 = vunpack.c.l.b16 %v2220
        %v2257 = vunpack.c.l.b16 %v2221
        %v2258 = vunpack.c.l.b16 %v2222
        %v2259 = vunpack.c.l.b16 %v2223
        %v2260 = vpack.c.b16 %v2245, %v2244
        %v2261 = vpack.c.b16 %v2247, %v2246
        %v2262 = vpack.c.b16 %v2249, %v2248
        %v2263 = vpack.c.b16 %v2251, %v2250
        %v2264 = vpack.c.b16 %v2253, %v2252
        %v2265 = vpack.c.b16 %v2255, %v2254
        %v2266 = vpack.c.b16 %v2257, %v2256
        %v2267 = vpack.c.b16 %v2259, %v2258
        %v2269 = vshrl.u32 %v2260, 16
        %v2271 = vshll.u32 %v2260, 16
        %v2273 = vrot.slane %v2271, 1
        %v2274 = vor.u32 %v2269, %v2273
        %v2276 = vshrl.u32 %v2261, 16
        %v2278 = vshll.u32 %v2261, 16
        %v2280 = vrot.slane %v2278, 1
        %v2281 = vor.u32 %v2276, %v2280
        %v2283 = vshrl.u32 %v2262, 16
        %v2285 = vshll.u32 %v2262, 16
        %v2287 = vrot.slane %v2285, 1
        %v2288 = vor.u32 %v2283, %v2287
        %v2290 = vshrl.u32 %v2263, 16
        %v2292 = vshll.u32 %v2263, 16
        %v2294 = vrot.slane %v2292, 1
        %v2295 = vor.u32 %v2290, %v2294
        %v2297 = vshrl.u32 %v2264, 16
        %v2299 = vshll.u32 %v2264, 16
        %v2301 = vrot.slane %v2299, 1
        %v2302 = vor.u32 %v2297, %v2301
        %v2304 = vshrl.u32 %v2265, 16
        %v2306 = vshll.u32 %v2265, 16
        %v2308 = vrot.slane %v2306, 1
        %v2309 = vor.u32 %v2304, %v2308
        %v2311 = vshrl.u32 %v2266, 16
        %v2313 = vshll.u32 %v2266, 16
        %v2315 = vrot.slane %v2313, 1
        %v2316 = vor.u32 %v2311, %v2315
        %v2318 = vshrl.u32 %v2267, 16
        %v2320 = vshll.u32 %v2267, 16
        %v2322 = vrot.slane %v2320, 1
        %v2323 = vor.u32 %v2318, %v2322
        %v2324 = vrot.slane %v2260, 1
        %v2325 = vrot.slane %v2261, 1
        %v2326 = vrot.slane %v2262, 1
        %v2327 = vrot.slane %v2263, 1
        %v2328 = vrot.slane %v2264, 1
        %v2329 = vrot.slane %v2265, 1
        %v2330 = vrot.slane %v2266, 1
        %v2331 = vrot.slane %v2267, 1
        %v2332 = vunpack.c.l.b16 %v2274
        %v2333 = vunpack.c.l.b16 %v2324
        %v2334 = vunpack.c.l.b16 %v2281
        %v2335 = vunpack.c.l.b16 %v2325
        %v2336 = vunpack.c.l.b16 %v2288
        %v2337 = vunpack.c.l.b16 %v2326
        %v2338 = vunpack.c.l.b16 %v2295
        %v2339 = vunpack.c.l.b16 %v2327
        %v2340 = vunpack.c.l.b16 %v2302
        %v2341 = vunpack.c.l.b16 %v2328
        %v2342 = vunpack.c.l.b16 %v2309
        %v2343 = vunpack.c.l.b16 %v2329
        %v2344 = vunpack.c.l.b16 %v2316
        %v2345 = vunpack.c.l.b16 %v2330
        %v2346 = vunpack.c.l.b16 %v2323
        %v2347 = vunpack.c.l.b16 %v2331
        %v2348 = vld [vmem:[%s3] sm:$0xf]
        %v2349 = vld [vmem:[%s3 + $0x4] sm:$0xf]
        %v2350 = vld [vmem:[%s3 + $0x8] sm:$0xf]
        %v2351 = vld [vmem:[%s3 + $0xc] sm:$0xf]
        %v2352 = vld [vmem:[%s3 + $0x10] sm:$0xf]
        %v2353 = vld [vmem:[%s3 + $0x14] sm:$0xf]
        %v2354 = vld [vmem:[%s3 + $0x18] sm:$0xf]
        %v2355 = vld [vmem:[%s3 + $0x1c] sm:$0xf]
        %v2356 = vld [vmem:[%s3 + $0x20] sm:$0xf]
        %v2357 = vld [vmem:[%s3 + $0x24] sm:$0xf]
        %v2358 = vld [vmem:[%s3 + $0x28] sm:$0xf]
        %v2359 = vld [vmem:[%s3 + $0x2c] sm:$0xf]
        %v2360 = vld [vmem:[%s3 + $0x30] sm:$0xf]
        %v2361 = vld [vmem:[%s3 + $0x34] sm:$0xf]
        %v2362 = vld [vmem:[%s3 + $0x38] sm:$0xf]
        %v2363 = vld [vmem:[%s3 + $0x3c] sm:$0xf]
        %v2364 = vld [vmem:[%s3 + $0x40] sm:$0xf]
        %v2365 = vld [vmem:[%s3 + $0x44] sm:$0xf]
        %v2366 = vld [vmem:[%s3 + $0x48] sm:$0xf]
        %v2367 = vld [vmem:[%s3 + $0x4c] sm:$0xf]
        %v2368 = vld [vmem:[%s3 + $0x50] sm:$0xf]
        %v2369 = vld [vmem:[%s3 + $0x54] sm:$0xf]
        %v2370 = vld [vmem:[%s3 + $0x58] sm:$0xf]
        %v2371 = vld [vmem:[%s3 + $0x5c] sm:$0xf]
        %v2372 = vld [vmem:[%s3 + $0x60] sm:$0xf]
        %v2373 = vld [vmem:[%s3 + $0x64] sm:$0xf]
        %v2374 = vld [vmem:[%s3 + $0x68] sm:$0xf]
        %v2375 = vld [vmem:[%s3 + $0x6c] sm:$0xf]
        %v2376 = vld [vmem:[%s3 + $0x70] sm:$0xf]
        %v2377 = vld [vmem:[%s3 + $0x74] sm:$0xf]
        %v2378 = vld [vmem:[%s3 + $0x78] sm:$0xf]
        %v2379 = vld [vmem:[%s3 + $0x7c] sm:$0xf]
        %v2380 = vld [vmem:[%s3 + $0x80] sm:$0xf]
        %v2381 = vld [vmem:[%s3 + $0x84] sm:$0xf]
        %v2382 = vld [vmem:[%s3 + $0x88] sm:$0xf]
        %v2383 = vld [vmem:[%s3 + $0x8c] sm:$0xf]
        %v2384 = vld [vmem:[%s3 + $0x90] sm:$0xf]
        %v2385 = vld [vmem:[%s3 + $0x94] sm:$0xf]
        %v2386 = vld [vmem:[%s3 + $0x98] sm:$0xf]
        %v2387 = vld [vmem:[%s3 + $0x9c] sm:$0xf]
        %v2388 = vld [vmem:[%s3 + $0xa0] sm:$0xf]
        %v2389 = vld [vmem:[%s3 + $0xa4] sm:$0xf]
        %v2390 = vld [vmem:[%s3 + $0xa8] sm:$0xf]
        %v2391 = vld [vmem:[%s3 + $0xac] sm:$0xf]
        %v2392 = vld [vmem:[%s3 + $0xb0] sm:$0xf]
        %v2393 = vld [vmem:[%s3 + $0xb4] sm:$0xf]
        %v2394 = vld [vmem:[%s3 + $0xb8] sm:$0xf]
        %v2395 = vld [vmem:[%s3 + $0xbc] sm:$0xf]
        %v2398 = vunpack.c.l.b16 %v2224
        %v2399 = vunpack.c.l.b16 %v2225
        %v2400 = vpack.c.b16 %v2399, %v2398
        %v2402 = vshrl.u32 %v2400, 16
        %v2404 = vshll.u32 %v2400, 16
        %v2406 = vrot.slane %v2404, 1
        %v2407 = vor.u32 %v2402, %v2406
        %v2408 = vrot.slane %v2400, 1
        %v2409 = vunpack.c.l.b16 %v2407
        %v2410 = vunpack.c.l.b16 %v2408
        %v2411 = vld [vmem:[%s3 + $0xc0] sm:$0xf]
        %v2412 = vld [vmem:[%s3 + $0xc4] sm:$0xf]
        %v2413 = vld [vmem:[%s3 + $0xc8] sm:$0xf]
        %v2414 = vld [vmem:[%s3 + $0xcc] sm:$0xf]
        %v2415 = vld [vmem:[%s3 + $0xd0] sm:$0xf]
        %v2416 = vld [vmem:[%s3 + $0xd4] sm:$0xf]
        %v2417 = vld [vmem:[%s3 + $0xd8] sm:$0xf]
        %v2418 = vld [vmem:[%s3 + $0xdc] sm:$0xf]
        %v2419 = vld [vmem:[%s3 + $0xe0] sm:$0xf]
        %v2420 = vld [vmem:[%s3 + $0xe4] sm:$0xf]
        %v2421 = vld [vmem:[%s3 + $0xe8] sm:$0xf]
        %v2422 = vld [vmem:[%s3 + $0xec] sm:$0xf]
        %v2423 = vld [vmem:[%s3 + $0xf0] sm:$0xf]
        %v2424 = vld [vmem:[%s3 + $0xf4] sm:$0xf]
        %v2425 = vld [vmem:[%s3 + $0xf8] sm:$0xf]
        %v2426 = vld [vmem:[%s3 + $0xfc] sm:$0xf]
        %v2427 = vld [vmem:[%s3 + $0x100] sm:$0xf]
        %v2428 = vld [vmem:[%s3 + $0x104] sm:$0xf]
        %v2429 = vld [vmem:[%s3 + $0x108] sm:$0xf]
        %v2430 = vld [vmem:[%s3 + $0x10c] sm:$0xf]
        %v2431 = vld [vmem:[%s3 + $0x110] sm:$0xf]
        %v2432 = vld [vmem:[%s3 + $0x114] sm:$0xf]
        %v2433 = vld [vmem:[%s3 + $0x118] sm:$0xf]
        %v2434 = vld [vmem:[%s3 + $0x11c] sm:$0xf]
        %v2435 = vld [vmem:[%s3 + $0x120] sm:$0xf]
        %v2436 = vld [vmem:[%s3 + $0x124] sm:$0xf]
        %v2437 = vld [vmem:[%s3 + $0x128] sm:$0xf]
        %v2438 = vld [vmem:[%s3 + $0x12c] sm:$0xf]
        %v2439 = vld [vmem:[%s3 + $0x130] sm:$0xf]
        %v2440 = vld [vmem:[%s3 + $0x134] sm:$0xf]
        %v2441 = vld [vmem:[%s3 + $0x138] sm:$0xf]
        %v2442 = vld [vmem:[%s3 + $0x13c] sm:$0xf]
        %v2443 = vld [vmem:[%s3 + $0x140] sm:$0xf]
        %v2444 = vld [vmem:[%s3 + $0x144] sm:$0xf]
        %v2445 = vld [vmem:[%s3 + $0x148] sm:$0xf]
        %v2446 = vld [vmem:[%s3 + $0x14c] sm:$0xf]
        %v2447 = vld [vmem:[%s3 + $0x150] sm:$0xf]
        %v2448 = vld [vmem:[%s3 + $0x154] sm:$0xf]
        %v2449 = vld [vmem:[%s3 + $0x158] sm:$0xf]
        %v2450 = vld [vmem:[%s3 + $0x15c] sm:$0xf]
        %v2451 = vld [vmem:[%s3 + $0x160] sm:$0xf]
        %v2452 = vld [vmem:[%s3 + $0x164] sm:$0xf]
        %v2453 = vld [vmem:[%s3 + $0x168] sm:$0xf]
        %v2454 = vld [vmem:[%s3 + $0x16c] sm:$0xf]
        %v2455 = vld [vmem:[%s3 + $0x170] sm:$0xf]
        %v2456 = vld [vmem:[%s3 + $0x174] sm:$0xf]
        %v2457 = vld [vmem:[%s3 + $0x178] sm:$0xf]
        %v2458 = vld [vmem:[%s3 + $0x17c] sm:$0xf]
        %v2459 = vpack.c.b16 %v2248, %v2246
        %v2460 = vpack.c.b16 %v2336, %v2334
        %v2461 = vpack.c.b16 %v2337, %v2335
        %v2462 = vpack.c.b16 %v2252, %v2250
        %v2463 = vpack.c.b16 %v2340, %v2338
        %v2464 = vpack.c.b16 %v2341, %v2339
        %v2465 = vpack.c.b16 %v2256, %v2254
        %v2466 = vpack.c.b16 %v2344, %v2342
        %v2467 = vpack.c.b16 %v2345, %v2343
        %v2468 = vpack.c.b16 %v2398, %v2258
        %v2469 = vpack.c.b16 %v2409, %v2346
        %v2470 = vpack.c.b16 %v2410, %v2347
        %v2531 = vunpack.c.l.b16 %v2411
        %v2532 = vunpack.c.l.b16 %v2412
        %v2533 = vunpack.c.l.b16 %v2413
        %v2534 = vunpack.c.l.b16 %v2414
        %v2535 = vunpack.c.l.b16 %v2415
        %v2536 = vunpack.c.l.b16 %v2416
        %v2537 = vunpack.c.l.b16 %v2417
        %v2538 = vunpack.c.l.b16 %v2418
        %v2539 = vunpack.c.l.b16 %v2419
        %v2540 = vunpack.c.l.b16 %v2420
        %v2541 = vunpack.c.l.b16 %v2421
        %v2542 = vunpack.c.l.b16 %v2422
        %v2543 = vunpack.c.l.b16 %v2423
        %v2544 = vunpack.c.l.b16 %v2424
        %v2545 = vunpack.c.l.b16 %v2425
        %v2546 = vunpack.c.l.b16 %v2426
        %v2547 = vunpack.c.l.b16 %v2427
        %v2548 = vunpack.c.l.b16 %v2428
        %v2549 = vunpack.c.l.b16 %v2429
        %v2550 = vunpack.c.l.b16 %v2430
        %v2551 = vunpack.c.l.b16 %v2431
        %v2552 = vunpack.c.l.b16 %v2432
        %v2553 = vunpack.c.l.b16 %v2433
        %v2554 = vunpack.c.l.b16 %v2434
        %v2555 = vunpack.c.l.b16 %v2435
        %v2556 = vunpack.c.l.b16 %v2436
        %v2557 = vunpack.c.l.b16 %v2437
        %v2558 = vunpack.c.l.b16 %v2438
        %v2559 = vunpack.c.l.b16 %v2439
        %v2560 = vunpack.c.l.b16 %v2440
        %v2561 = vunpack.c.l.b16 %v2441
        %v2562 = vunpack.c.l.b16 %v2442
        %v2563 = vunpack.c.l.b16 %v2443
        %v2564 = vunpack.c.l.b16 %v2444
        %v2565 = vunpack.c.l.b16 %v2445
        %v2566 = vunpack.c.l.b16 %v2446
        %v2567 = vunpack.c.l.b16 %v2447
        %v2568 = vunpack.c.l.b16 %v2448
        %v2569 = vunpack.c.l.b16 %v2449
        %v2570 = vunpack.c.l.b16 %v2450
        %v2571 = vunpack.c.l.b16 %v2451
        %v2572 = vunpack.c.l.b16 %v2452
        %v2573 = vunpack.c.l.b16 %v2453
        %v2574 = vunpack.c.l.b16 %v2454
        %v2575 = vunpack.c.l.b16 %v2455
        %v2576 = vunpack.c.l.b16 %v2456
        %v2577 = vunpack.c.l.b16 %v2457
        %v2578 = vunpack.c.l.b16 %v2458
        %v2579 = vpack.c.b16 %v2532, %v2531
        %v2580 = vpack.c.b16 %v2534, %v2533
        %v2581 = vpack.c.b16 %v2536, %v2535
        %v2582 = vpack.c.b16 %v2538, %v2537
        %v2583 = vpack.c.b16 %v2540, %v2539
        %v2584 = vpack.c.b16 %v2542, %v2541
        %v2585 = vpack.c.b16 %v2544, %v2543
        %v2586 = vpack.c.b16 %v2546, %v2545
        %v2587 = vpack.c.b16 %v2548, %v2547
        %v2588 = vpack.c.b16 %v2550, %v2549
        %v2589 = vpack.c.b16 %v2552, %v2551
        %v2590 = vpack.c.b16 %v2554, %v2553
        %v2591 = vpack.c.b16 %v2556, %v2555
        %v2592 = vpack.c.b16 %v2558, %v2557
        %v2593 = vpack.c.b16 %v2560, %v2559
        %v2594 = vpack.c.b16 %v2562, %v2561
        %v2595 = vpack.c.b16 %v2564, %v2563
        %v2596 = vpack.c.b16 %v2566, %v2565
        %v2597 = vpack.c.b16 %v2568, %v2567
        %v2598 = vpack.c.b16 %v2570, %v2569
        %v2599 = vpack.c.b16 %v2572, %v2571
        %v2600 = vpack.c.b16 %v2574, %v2573
        %v2601 = vpack.c.b16 %v2576, %v2575
        %v2602 = vpack.c.b16 %v2578, %v2577
        %2627 = vmatpush.bf16.msra.mxu0 %v2586
        %2628 = vmatpush.bf16.msra.mxu0 %v2585
        %2629 = vmatpush.bf16.msra.mxu0 %v2584
        %2630 = vmatpush.bf16.msra.mxu0 %v2583
        %2631 = vmatpush.bf16.msra.mxu0 %v2582
        %2632 = vmatpush.bf16.msra.mxu0 %v2581
        %2633 = vmatpush.bf16.msra.mxu0 %v2580
        %2634 = vmatpush.bf16.msra.mxu0 %v2579
        %2635 = vmatmul.bf16.gmra.mxu0 %v2459
        %v2636 = vpop.f32.mrf.mxu0
        %v2637 = vadd.f32 0.0, %v2636
        %v2638 = vpop.f32.mrf.mxu0
        %v2639 = vadd.f32 0.0, %v2638
        %2640 = vmatmul.bf16.gmra.mxu0 %v2462
        %v2641 = vpop.f32.mrf.mxu0
        %v2642 = vadd.f32 0.0, %v2641
        %v2643 = vpop.f32.mrf.mxu0
        %v2644 = vadd.f32 0.0, %v2643
        %2645 = vmatmul.bf16.gmra.mxu0 %v2465
        %v2646 = vpop.f32.mrf.mxu0
        %v2647 = vadd.f32 0.0, %v2646
        %v2648 = vpop.f32.mrf.mxu0
        %v2649 = vadd.f32 0.0, %v2648
        %2650 = vmatmul.bf16.gmra.mxu0 %v2468
        %v2651 = vpop.f32.mrf.mxu0
        %v2652 = vadd.f32 0.0, %v2651
        %v2653 = vpop.f32.mrf.mxu0
        %v2654 = vadd.f32 0.0, %v2653
        %2655 = vdwg.mxu0
        %2656 = vmatpush.bf16.msra.mxu0 %v2594
        %2657 = vmatpush.bf16.msra.mxu0 %v2593
        %2658 = vmatpush.bf16.msra.mxu0 %v2592
        %2659 = vmatpush.bf16.msra.mxu0 %v2591
        %2660 = vmatpush.bf16.msra.mxu0 %v2590
        %2661 = vmatpush.bf16.msra.mxu0 %v2589
        %2662 = vmatpush.bf16.msra.mxu0 %v2588
        %2663 = vmatpush.bf16.msra.mxu0 %v2587
        %2664 = vmatmul.bf16.gmra.mxu0 %v2460
        %v2665 = vpop.f32.mrf.mxu0
        %v2666 = vadd.f32 %v2637, %v2665
        %v2667 = vpop.f32.mrf.mxu0
        %v2668 = vadd.f32 %v2639, %v2667
        %2669 = vmatmul.bf16.gmra.mxu0 %v2463
        %v2670 = vpop.f32.mrf.mxu0
        %v2671 = vadd.f32 %v2642, %v2670
        %v2672 = vpop.f32.mrf.mxu0
        %v2673 = vadd.f32 %v2644, %v2672
        %2674 = vmatmul.bf16.gmra.mxu0 %v2466
        %v2675 = vpop.f32.mrf.mxu0
        %v2676 = vadd.f32 %v2647, %v2675
        %v2677 = vpop.f32.mrf.mxu0
        %v2678 = vadd.f32 %v2649, %v2677
        %2679 = vmatmul.bf16.gmra.mxu0 %v2469
        %v2680 = vpop.f32.mrf.mxu0
        %v2681 = vadd.f32 %v2652, %v2680
        %v2682 = vpop.f32.mrf.mxu0
        %v2683 = vadd.f32 %v2654, %v2682
        %2684 = vdwg.mxu0
        %2685 = vmatpush.bf16.msra.mxu0 %v2602
        %2686 = vmatpush.bf16.msra.mxu0 %v2601
        %2687 = vmatpush.bf16.msra.mxu0 %v2600
        %2688 = vmatpush.bf16.msra.mxu0 %v2599
        %2689 = vmatpush.bf16.msra.mxu0 %v2598
        %2690 = vmatpush.bf16.msra.mxu0 %v2597
        %2691 = vmatpush.bf16.msra.mxu0 %v2596
        %2692 = vmatpush.bf16.msra.mxu0 %v2595
        %2693 = vmatmul.bf16.gmra.mxu0 %v2461
        %v2694 = vpop.f32.mrf.mxu0
        %v2695 = vadd.f32 %v2666, %v2694
        %v2696 = vpop.f32.mrf.mxu0
        %v2697 = vadd.f32 %v2668, %v2696
        %2698 = vmatmul.bf16.gmra.mxu0 %v2464
        %v2699 = vpop.f32.mrf.mxu0
        %v2700 = vadd.f32 %v2671, %v2699
        %v2701 = vpop.f32.mrf.mxu0
        %v2702 = vadd.f32 %v2673, %v2701
        %2703 = vmatmul.bf16.gmra.mxu0 %v2467
        %v2704 = vpop.f32.mrf.mxu0
        %v2705 = vadd.f32 %v2676, %v2704
        %v2706 = vpop.f32.mrf.mxu0
        %v2707 = vadd.f32 %v2678, %v2706
        %2708 = vmatmul.bf16.gmra.mxu0 %v2470
        %v2709 = vpop.f32.mrf.mxu0
        %v2710 = vadd.f32 %v2681, %v2709
        %v2711 = vpop.f32.mrf.mxu0
        %v2712 = vadd.f32 %v2683, %v2711
        %2713 = vdwg.mxu0
        %v2714 = vpack.c.b16 %v2246, %v2244
        %v2715 = vpack.c.b16 %v2334, %v2332
        %v2716 = vpack.c.b16 %v2335, %v2333
        %v2717 = vpack.c.b16 %v2250, %v2248
        %v2718 = vpack.c.b16 %v2338, %v2336
        %v2719 = vpack.c.b16 %v2339, %v2337
        %v2720 = vpack.c.b16 %v2254, %v2252
        %v2721 = vpack.c.b16 %v2342, %v2340
        %v2722 = vpack.c.b16 %v2343, %v2341
        %v2723 = vpack.c.b16 %v2258, %v2256
        %v2724 = vpack.c.b16 %v2346, %v2344
        %v2725 = vpack.c.b16 %v2347, %v2345
        %v2786 = vunpack.c.l.b16 %v2348
        %v2787 = vunpack.c.l.b16 %v2349
        %v2788 = vunpack.c.l.b16 %v2350
        %v2789 = vunpack.c.l.b16 %v2351
        %v2790 = vunpack.c.l.b16 %v2352
        %v2791 = vunpack.c.l.b16 %v2353
        %v2792 = vunpack.c.l.b16 %v2354
        %v2793 = vunpack.c.l.b16 %v2355
        %v2794 = vunpack.c.l.b16 %v2356
        %v2795 = vunpack.c.l.b16 %v2357
        %v2796 = vunpack.c.l.b16 %v2358
        %v2797 = vunpack.c.l.b16 %v2359
        %v2798 = vunpack.c.l.b16 %v2360
        %v2799 = vunpack.c.l.b16 %v2361
        %v2800 = vunpack.c.l.b16 %v2362
        %v2801 = vunpack.c.l.b16 %v2363
        %v2802 = vunpack.c.l.b16 %v2364
        %v2803 = vunpack.c.l.b16 %v2365
        %v2804 = vunpack.c.l.b16 %v2366
        %v2805 = vunpack.c.l.b16 %v2367
        %v2806 = vunpack.c.l.b16 %v2368
        %v2807 = vunpack.c.l.b16 %v2369
        %v2808 = vunpack.c.l.b16 %v2370
        %v2809 = vunpack.c.l.b16 %v2371
        %v2810 = vunpack.c.l.b16 %v2372
        %v2811 = vunpack.c.l.b16 %v2373
        %v2812 = vunpack.c.l.b16 %v2374
        %v2813 = vunpack.c.l.b16 %v2375
        %v2814 = vunpack.c.l.b16 %v2376
        %v2815 = vunpack.c.l.b16 %v2377
        %v2816 = vunpack.c.l.b16 %v2378
        %v2817 = vunpack.c.l.b16 %v2379
        %v2818 = vunpack.c.l.b16 %v2380
        %v2819 = vunpack.c.l.b16 %v2381
        %v2820 = vunpack.c.l.b16 %v2382
        %v2821 = vunpack.c.l.b16 %v2383
        %v2822 = vunpack.c.l.b16 %v2384
        %v2823 = vunpack.c.l.b16 %v2385
        %v2824 = vunpack.c.l.b16 %v2386
        %v2825 = vunpack.c.l.b16 %v2387
        %v2826 = vunpack.c.l.b16 %v2388
        %v2827 = vunpack.c.l.b16 %v2389
        %v2828 = vunpack.c.l.b16 %v2390
        %v2829 = vunpack.c.l.b16 %v2391
        %v2830 = vunpack.c.l.b16 %v2392
        %v2831 = vunpack.c.l.b16 %v2393
        %v2832 = vunpack.c.l.b16 %v2394
        %v2833 = vunpack.c.l.b16 %v2395
        %v2834 = vpack.c.b16 %v2787, %v2786
        %v2835 = vpack.c.b16 %v2789, %v2788
        %v2836 = vpack.c.b16 %v2791, %v2790
        %v2837 = vpack.c.b16 %v2793, %v2792
        %v2838 = vpack.c.b16 %v2795, %v2794
        %v2839 = vpack.c.b16 %v2797, %v2796
        %v2840 = vpack.c.b16 %v2799, %v2798
        %v2841 = vpack.c.b16 %v2801, %v2800
        %v2842 = vpack.c.b16 %v2803, %v2802
        %v2843 = vpack.c.b16 %v2805, %v2804
        %v2844 = vpack.c.b16 %v2807, %v2806
        %v2845 = vpack.c.b16 %v2809, %v2808
        %v2846 = vpack.c.b16 %v2811, %v2810
        %v2847 = vpack.c.b16 %v2813, %v2812
        %v2848 = vpack.c.b16 %v2815, %v2814
        %v2849 = vpack.c.b16 %v2817, %v2816
        %v2850 = vpack.c.b16 %v2819, %v2818
        %v2851 = vpack.c.b16 %v2821, %v2820
        %v2852 = vpack.c.b16 %v2823, %v2822
        %v2853 = vpack.c.b16 %v2825, %v2824
        %v2854 = vpack.c.b16 %v2827, %v2826
        %v2855 = vpack.c.b16 %v2829, %v2828
        %v2856 = vpack.c.b16 %v2831, %v2830
        %v2857 = vpack.c.b16 %v2833, %v2832
        %2882 = vmatpush.bf16.msra.mxu0 %v2841
        %2883 = vmatpush.bf16.msra.mxu0 %v2840
        %2884 = vmatpush.bf16.msra.mxu0 %v2839
        %2885 = vmatpush.bf16.msra.mxu0 %v2838
        %2886 = vmatpush.bf16.msra.mxu0 %v2837
        %2887 = vmatpush.bf16.msra.mxu0 %v2836
        %2888 = vmatpush.bf16.msra.mxu0 %v2835
        %2889 = vmatpush.bf16.msra.mxu0 %v2834
        %2890 = vmatmul.bf16.gmra.mxu0 %v2714
        %v2891 = vpop.f32.mrf.mxu0
        %v2892 = vadd.f32 %v2695, %v2891
        %v2893 = vpop.f32.mrf.mxu0
        %v2894 = vadd.f32 %v2697, %v2893
        %2895 = vmatmul.bf16.gmra.mxu0 %v2717
        %v2896 = vpop.f32.mrf.mxu0
        %v2897 = vadd.f32 %v2700, %v2896
        %v2898 = vpop.f32.mrf.mxu0
        %v2899 = vadd.f32 %v2702, %v2898
        %2900 = vmatmul.bf16.gmra.mxu0 %v2720
        %v2901 = vpop.f32.mrf.mxu0
        %v2902 = vadd.f32 %v2705, %v2901
        %v2903 = vpop.f32.mrf.mxu0
        %v2904 = vadd.f32 %v2707, %v2903
        %2905 = vmatmul.bf16.gmra.mxu0 %v2723
        %v2906 = vpop.f32.mrf.mxu0
        %v2907 = vadd.f32 %v2710, %v2906
        %v2908 = vpop.f32.mrf.mxu0
        %v2909 = vadd.f32 %v2712, %v2908
        %2910 = vdwg.mxu0
        %2911 = vmatpush.bf16.msra.mxu0 %v2849
        %2912 = vmatpush.bf16.msra.mxu0 %v2848
        %2913 = vmatpush.bf16.msra.mxu0 %v2847
        %2914 = vmatpush.bf16.msra.mxu0 %v2846
        %2915 = vmatpush.bf16.msra.mxu0 %v2845
        %2916 = vmatpush.bf16.msra.mxu0 %v2844
        %2917 = vmatpush.bf16.msra.mxu0 %v2843
        %2918 = vmatpush.bf16.msra.mxu0 %v2842
        %2919 = vmatmul.bf16.gmra.mxu0 %v2715
        %v2920 = vpop.f32.mrf.mxu0
        %v2921 = vadd.f32 %v2892, %v2920
        %v2922 = vpop.f32.mrf.mxu0
        %v2923 = vadd.f32 %v2894, %v2922
        %2924 = vmatmul.bf16.gmra.mxu0 %v2718
        %v2925 = vpop.f32.mrf.mxu0
        %v2926 = vadd.f32 %v2897, %v2925
        %v2927 = vpop.f32.mrf.mxu0
        %v2928 = vadd.f32 %v2899, %v2927
        %2929 = vmatmul.bf16.gmra.mxu0 %v2721
        %v2930 = vpop.f32.mrf.mxu0
        %v2931 = vadd.f32 %v2902, %v2930
        %v2932 = vpop.f32.mrf.mxu0
        %v2933 = vadd.f32 %v2904, %v2932
        %2934 = vmatmul.bf16.gmra.mxu0 %v2724
        %v2935 = vpop.f32.mrf.mxu0
        %v2936 = vadd.f32 %v2907, %v2935
        %v2937 = vpop.f32.mrf.mxu0
        %v2938 = vadd.f32 %v2909, %v2937
        %2939 = vdwg.mxu0
        %2940 = vmatpush.bf16.msra.mxu0 %v2857
        %2941 = vmatpush.bf16.msra.mxu0 %v2856
        %2942 = vmatpush.bf16.msra.mxu0 %v2855
        %2943 = vmatpush.bf16.msra.mxu0 %v2854
        %2944 = vmatpush.bf16.msra.mxu0 %v2853
        %2945 = vmatpush.bf16.msra.mxu0 %v2852
        %2946 = vmatpush.bf16.msra.mxu0 %v2851
        %2947 = vmatpush.bf16.msra.mxu0 %v2850
        %2948 = vmatmul.bf16.gmra.mxu0 %v2716
        %v2949 = vpop.f32.mrf.mxu0
        %v2950 = vadd.f32 %v2921, %v2949
        %v2951 = vpop.f32.mrf.mxu0
        %v2952 = vadd.f32 %v2923, %v2951
        %2953 = vmatmul.bf16.gmra.mxu0 %v2719
        %v2954 = vpop.f32.mrf.mxu0
        %v2955 = vadd.f32 %v2926, %v2954
        %v2956 = vpop.f32.mrf.mxu0
        %v2957 = vadd.f32 %v2928, %v2956
        %2958 = vmatmul.bf16.gmra.mxu0 %v2722
        %v2959 = vpop.f32.mrf.mxu0
        %v2960 = vadd.f32 %v2931, %v2959
        %v2961 = vpop.f32.mrf.mxu0
        %v2962 = vadd.f32 %v2933, %v2961
        %2963 = vmatmul.bf16.gmra.mxu0 %v2725
        %v2964 = vpop.f32.mrf.mxu0
        %v2965 = vadd.f32 %v2936, %v2964
        %v2966 = vpop.f32.mrf.mxu0
        %v2967 = vadd.f32 %v2938, %v2966
        %2968 = vdwg.mxu0
        %v2971 = vunpack.c.l.b16 %v2226
        %v2972 = vunpack.c.l.b16 %v2227
        %v2973 = vpack.c.b16 %v2972, %v2971
        %v2975 = vshrl.u32 %v2973, 16
        %v2977 = vshll.u32 %v2973, 16
        %v2979 = vrot.slane %v2977, 1
        %v2980 = vor.u32 %v2975, %v2979
        %v2981 = vrot.slane %v2973, 1
        %v2982 = vunpack.c.l.b16 %v2980
        %v2983 = vunpack.c.l.b16 %v2981
        %v2984 = vld [vmem:[%s3 + $0x180] sm:$0xf]
        %v2985 = vld [vmem:[%s3 + $0x184] sm:$0xf]
        %v2986 = vld [vmem:[%s3 + $0x188] sm:$0xf]
        %v2987 = vld [vmem:[%s3 + $0x18c] sm:$0xf]
        %v2988 = vld [vmem:[%s3 + $0x190] sm:$0xf]
        %v2989 = vld [vmem:[%s3 + $0x194] sm:$0xf]
        %v2990 = vld [vmem:[%s3 + $0x198] sm:$0xf]
        %v2991 = vld [vmem:[%s3 + $0x19c] sm:$0xf]
        %v2992 = vld [vmem:[%s3 + $0x1a0] sm:$0xf]
        %v2993 = vld [vmem:[%s3 + $0x1a4] sm:$0xf]
        %v2994 = vld [vmem:[%s3 + $0x1a8] sm:$0xf]
        %v2995 = vld [vmem:[%s3 + $0x1ac] sm:$0xf]
        %v2996 = vld [vmem:[%s3 + $0x1b0] sm:$0xf]
        %v2997 = vld [vmem:[%s3 + $0x1b4] sm:$0xf]
        %v2998 = vld [vmem:[%s3 + $0x1b8] sm:$0xf]
        %v2999 = vld [vmem:[%s3 + $0x1bc] sm:$0xf]
        %v3000 = vld [vmem:[%s3 + $0x1c0] sm:$0xf]
        %v3001 = vld [vmem:[%s3 + $0x1c4] sm:$0xf]
        %v3002 = vld [vmem:[%s3 + $0x1c8] sm:$0xf]
        %v3003 = vld [vmem:[%s3 + $0x1cc] sm:$0xf]
        %v3004 = vld [vmem:[%s3 + $0x1d0] sm:$0xf]
        %v3005 = vld [vmem:[%s3 + $0x1d4] sm:$0xf]
        %v3006 = vld [vmem:[%s3 + $0x1d8] sm:$0xf]
        %v3007 = vld [vmem:[%s3 + $0x1dc] sm:$0xf]
        %v3008 = vld [vmem:[%s3 + $0x1e0] sm:$0xf]
        %v3009 = vld [vmem:[%s3 + $0x1e4] sm:$0xf]
        %v3010 = vld [vmem:[%s3 + $0x1e8] sm:$0xf]
        %v3011 = vld [vmem:[%s3 + $0x1ec] sm:$0xf]
        %v3012 = vld [vmem:[%s3 + $0x1f0] sm:$0xf]
        %v3013 = vld [vmem:[%s3 + $0x1f4] sm:$0xf]
        %v3014 = vld [vmem:[%s3 + $0x1f8] sm:$0xf]
        %v3015 = vld [vmem:[%s3 + $0x1fc] sm:$0xf]
        %v3016 = vld [vmem:[%s3 + $0x200] sm:$0xf]
        %v3017 = vld [vmem:[%s3 + $0x204] sm:$0xf]
        %v3018 = vld [vmem:[%s3 + $0x208] sm:$0xf]
        %v3019 = vld [vmem:[%s3 + $0x20c] sm:$0xf]
        %v3020 = vld [vmem:[%s3 + $0x210] sm:$0xf]
        %v3021 = vld [vmem:[%s3 + $0x214] sm:$0xf]
        %v3022 = vld [vmem:[%s3 + $0x218] sm:$0xf]
        %v3023 = vld [vmem:[%s3 + $0x21c] sm:$0xf]
        %v3024 = vld [vmem:[%s3 + $0x220] sm:$0xf]
        %v3025 = vld [vmem:[%s3 + $0x224] sm:$0xf]
        %v3026 = vld [vmem:[%s3 + $0x228] sm:$0xf]
        %v3027 = vld [vmem:[%s3 + $0x22c] sm:$0xf]
        %v3028 = vld [vmem:[%s3 + $0x230] sm:$0xf]
        %v3029 = vld [vmem:[%s3 + $0x234] sm:$0xf]
        %v3030 = vld [vmem:[%s3 + $0x238] sm:$0xf]
        %v3031 = vld [vmem:[%s3 + $0x23c] sm:$0xf]
        %v3032 = vpack.c.b16 %v2971, %v2398
        %v3033 = vpack.c.b16 %v2982, %v2409
        %v3034 = vpack.c.b16 %v2983, %v2410
        %v3086 = vunpack.c.l.b16 %v2984
        %v3087 = vunpack.c.l.b16 %v2985
        %v3088 = vunpack.c.l.b16 %v2986
        %v3089 = vunpack.c.l.b16 %v2987
        %v3090 = vunpack.c.l.b16 %v2988
        %v3091 = vunpack.c.l.b16 %v2989
        %v3092 = vunpack.c.l.b16 %v2990
        %v3093 = vunpack.c.l.b16 %v2991
        %v3094 = vunpack.c.l.b16 %v2992
        %v3095 = vunpack.c.l.b16 %v2993
        %v3096 = vunpack.c.l.b16 %v2994
        %v3097 = vunpack.c.l.b16 %v2995
        %v3098 = vunpack.c.l.b16 %v2996
        %v3099 = vunpack.c.l.b16 %v2997
        %v3100 = vunpack.c.l.b16 %v2998
        %v3101 = vunpack.c.l.b16 %v2999
        %v3102 = vunpack.c.l.b16 %v3000
        %v3103 = vunpack.c.l.b16 %v3001
        %v3104 = vunpack.c.l.b16 %v3002
        %v3105 = vunpack.c.l.b16 %v3003
        %v3106 = vunpack.c.l.b16 %v3004
        %v3107 = vunpack.c.l.b16 %v3005
        %v3108 = vunpack.c.l.b16 %v3006
        %v3109 = vunpack.c.l.b16 %v3007
        %v3110 = vunpack.c.l.b16 %v3008
        %v3111 = vunpack.c.l.b16 %v3009
        %v3112 = vunpack.c.l.b16 %v3010
        %v3113 = vunpack.c.l.b16 %v3011
        %v3114 = vunpack.c.l.b16 %v3012
        %v3115 = vunpack.c.l.b16 %v3013
        %v3116 = vunpack.c.l.b16 %v3014
        %v3117 = vunpack.c.l.b16 %v3015
        %v3118 = vunpack.c.l.b16 %v3016
        %v3119 = vunpack.c.l.b16 %v3017
        %v3120 = vunpack.c.l.b16 %v3018
        %v3121 = vunpack.c.l.b16 %v3019
        %v3122 = vunpack.c.l.b16 %v3020
        %v3123 = vunpack.c.l.b16 %v3021
        %v3124 = vunpack.c.l.b16 %v3022
        %v3125 = vunpack.c.l.b16 %v3023
        %v3126 = vunpack.c.l.b16 %v3024
        %v3127 = vunpack.c.l.b16 %v3025
        %v3128 = vunpack.c.l.b16 %v3026
        %v3129 = vunpack.c.l.b16 %v3027
        %v3130 = vunpack.c.l.b16 %v3028
        %v3131 = vunpack.c.l.b16 %v3029
        %v3132 = vunpack.c.l.b16 %v3030
        %v3133 = vunpack.c.l.b16 %v3031
        %v3134 = vpack.c.b16 %v3087, %v3086
        %v3135 = vpack.c.b16 %v3089, %v3088
        %v3136 = vpack.c.b16 %v3091, %v3090
        %v3137 = vpack.c.b16 %v3093, %v3092
        %v3138 = vpack.c.b16 %v3095, %v3094
        %v3139 = vpack.c.b16 %v3097, %v3096
        %v3140 = vpack.c.b16 %v3099, %v3098
        %v3141 = vpack.c.b16 %v3101, %v3100
        %v3142 = vpack.c.b16 %v3103, %v3102
        %v3143 = vpack.c.b16 %v3105, %v3104
        %v3144 = vpack.c.b16 %v3107, %v3106
        %v3145 = vpack.c.b16 %v3109, %v3108
        %v3146 = vpack.c.b16 %v3111, %v3110
        %v3147 = vpack.c.b16 %v3113, %v3112
        %v3148 = vpack.c.b16 %v3115, %v3114
        %v3149 = vpack.c.b16 %v3117, %v3116
        %v3150 = vpack.c.b16 %v3119, %v3118
        %v3151 = vpack.c.b16 %v3121, %v3120
        %v3152 = vpack.c.b16 %v3123, %v3122
        %v3153 = vpack.c.b16 %v3125, %v3124
        %v3154 = vpack.c.b16 %v3127, %v3126
        %v3155 = vpack.c.b16 %v3129, %v3128
        %v3156 = vpack.c.b16 %v3131, %v3130
        %v3157 = vpack.c.b16 %v3133, %v3132
        %3182 = vmatpush.bf16.msra.mxu0 %v3141
        %3183 = vmatpush.bf16.msra.mxu0 %v3140
        %3184 = vmatpush.bf16.msra.mxu0 %v3139
        %3185 = vmatpush.bf16.msra.mxu0 %v3138
        %3186 = vmatpush.bf16.msra.mxu0 %v3137
        %3187 = vmatpush.bf16.msra.mxu0 %v3136
        %3188 = vmatpush.bf16.msra.mxu0 %v3135
        %3189 = vmatpush.bf16.msra.mxu0 %v3134
        %3190 = vmatmul.bf16.gmra.mxu0 %v2717
        %v3191 = vpop.f32.mrf.mxu0
        %v3192 = vadd.f32 0.0, %v3191
        %v3193 = vpop.f32.mrf.mxu0
        %v3194 = vadd.f32 0.0, %v3193
        %3195 = vmatmul.bf16.gmra.mxu0 %v2720
        %v3196 = vpop.f32.mrf.mxu0
        %v3197 = vadd.f32 0.0, %v3196
        %v3198 = vpop.f32.mrf.mxu0
        %v3199 = vadd.f32 0.0, %v3198
        %3200 = vmatmul.bf16.gmra.mxu0 %v2723
        %v3201 = vpop.f32.mrf.mxu0
        %v3202 = vadd.f32 0.0, %v3201
        %v3203 = vpop.f32.mrf.mxu0
        %v3204 = vadd.f32 0.0, %v3203
        %3205 = vmatmul.bf16.gmra.mxu0 %v3032
        %v3206 = vpop.f32.mrf.mxu0
        %v3207 = vadd.f32 0.0, %v3206
        %v3208 = vpop.f32.mrf.mxu0
        %v3209 = vadd.f32 0.0, %v3208
        %3210 = vdwg.mxu0
        %3211 = vmatpush.bf16.msra.mxu0 %v3149
        %3212 = vmatpush.bf16.msra.mxu0 %v3148
        %3213 = vmatpush.bf16.msra.mxu0 %v3147
        %3214 = vmatpush.bf16.msra.mxu0 %v3146
        %3215 = vmatpush.bf16.msra.mxu0 %v3145
        %3216 = vmatpush.bf16.msra.mxu0 %v3144
        %3217 = vmatpush.bf16.msra.mxu0 %v3143
        %3218 = vmatpush.bf16.msra.mxu0 %v3142
        %3219 = vmatmul.bf16.gmra.mxu0 %v2718
        %v3220 = vpop.f32.mrf.mxu0
        %v3221 = vadd.f32 %v3192, %v3220
        %v3222 = vpop.f32.mrf.mxu0
        %v3223 = vadd.f32 %v3194, %v3222
        %3224 = vmatmul.bf16.gmra.mxu0 %v2721
        %v3225 = vpop.f32.mrf.mxu0
        %v3226 = vadd.f32 %v3197, %v3225
        %v3227 = vpop.f32.mrf.mxu0
        %v3228 = vadd.f32 %v3199, %v3227
        %3229 = vmatmul.bf16.gmra.mxu0 %v2724
        %v3230 = vpop.f32.mrf.mxu0
        %v3231 = vadd.f32 %v3202, %v3230
        %v3232 = vpop.f32.mrf.mxu0
        %v3233 = vadd.f32 %v3204, %v3232
        %3234 = vmatmul.bf16.gmra.mxu0 %v3033
        %v3235 = vpop.f32.mrf.mxu0
        %v3236 = vadd.f32 %v3207, %v3235
        %v3237 = vpop.f32.mrf.mxu0
        %v3238 = vadd.f32 %v3209, %v3237
        %3239 = vdwg.mxu0
        %3240 = vmatpush.bf16.msra.mxu0 %v3157
        %3241 = vmatpush.bf16.msra.mxu0 %v3156
        %3242 = vmatpush.bf16.msra.mxu0 %v3155
        %3243 = vmatpush.bf16.msra.mxu0 %v3154
        %3244 = vmatpush.bf16.msra.mxu0 %v3153
        %3245 = vmatpush.bf16.msra.mxu0 %v3152
        %3246 = vmatpush.bf16.msra.mxu0 %v3151
        %3247 = vmatpush.bf16.msra.mxu0 %v3150
        %3248 = vmatmul.bf16.gmra.mxu0 %v2719
        %v3249 = vpop.f32.mrf.mxu0
        %v3250 = vadd.f32 %v3221, %v3249
        %v3251 = vpop.f32.mrf.mxu0
        %v3252 = vadd.f32 %v3223, %v3251
        %3253 = vmatmul.bf16.gmra.mxu0 %v2722
        %v3254 = vpop.f32.mrf.mxu0
        %v3255 = vadd.f32 %v3226, %v3254
        %v3256 = vpop.f32.mrf.mxu0
        %v3257 = vadd.f32 %v3228, %v3256
        %3258 = vmatmul.bf16.gmra.mxu0 %v2725
        %v3259 = vpop.f32.mrf.mxu0
        %v3260 = vadd.f32 %v3231, %v3259
        %v3261 = vpop.f32.mrf.mxu0
        %v3262 = vadd.f32 %v3233, %v3261
        %3263 = vmatmul.bf16.gmra.mxu0 %v3034
        %v3264 = vpop.f32.mrf.mxu0
        %v3265 = vadd.f32 %v3236, %v3264
        %v3266 = vpop.f32.mrf.mxu0
        %v3267 = vadd.f32 %v3238, %v3266
        %3268 = vdwg.mxu0
        %v3269 = vadd.f32 %v2950, %v3250
        %v3270 = vadd.f32 %v2952, %v3252
        %v3271 = vadd.f32 %v2955, %v3255
        %v3272 = vadd.f32 %v2957, %v3257
        %v3273 = vadd.f32 %v2960, %v3260
        %v3274 = vadd.f32 %v2962, %v3262
        %v3275 = vadd.f32 %v2965, %v3265
        %v3276 = vadd.f32 %v2967, %v3267
        %v3277 = vld [vmem:[%s4] sm:$0x1]
        %v3279 = vperm.slane %v3277, 0
        %v3281 = vadd.f32 %v3269, %v3279
        %v3282 = vadd.f32 %v3270, %v3279
        %v3283 = vadd.f32 %v3271, %v3279
        %v3284 = vadd.f32 %v3272, %v3279
        %v3285 = vadd.f32 %v3273, %v3279
        %v3286 = vadd.f32 %v3274, %v3279
        %v3287 = vadd.f32 %v3275, %v3279
        %v3288 = vadd.f32 %v3276, %v3279
        %vm3305 = vcmask 1045504
        %v3306 = vrot.slane %v441, 2
        %v3307 = vrot.slane %v442, 2
        %v3308 = vsel %vm3305, %v3306, %v3307
        %v3309 = vrot.slane %v444, 2
        %v3310 = vrot.slane %v445, 2
        %v3311 = vsel %vm3305, %v3309, %v3310
        %v3312 = vrot.slane %v447, 2
        %v3313 = vrot.slane %v448, 2
        %v3314 = vsel %vm3305, %v3312, %v3313
        %v3315 = vrot.slane %v450, 2
        %v3316 = vrot.slane %v451, 2
        %v3317 = vsel %vm3305, %v3315, %v3316
        %v3318 = vrot.slane %v453, 2
        %v3319 = vrot.slane %v454, 2
        %v3320 = vsel %vm3305, %v3318, %v3319
        %v3321 = vrot.slane %v456, 2
        %v3322 = vrot.slane %v457, 2
        %v3323 = vsel %vm3305, %v3321, %v3322
        %v3324 = vrot.slane %v459, 2
        %v3325 = vrot.slane %v460, 2
        %v3326 = vsel %vm3305, %v3324, %v3325
        %v3327 = vrot.slane %v462, 2
        %v3328 = vrot.slane %v463, 2
        %v3329 = vsel %vm3305, %v3327, %v3328
        %v3338 = vadd.f32 %v3281, %v3308
        %v3339 = vadd.f32 %v3282, %v3311
        %v3340 = vadd.f32 %v3283, %v3314
        %v3341 = vadd.f32 %v3284, %v3317
        %v3342 = vadd.f32 %v3285, %v3320
        %v3343 = vadd.f32 %v3286, %v3323
        %v3344 = vadd.f32 %v3287, %v3326
        %v3345 = vadd.f32 %v3288, %v3329
        %3346 = vst [vmem:[%s199] sm:$0xff] %v3338
        %3347 = vst [vmem:[%s199 + $0x8] sm:$0xff] %v3339
        %3348 = vst [vmem:[%s199 + $0x10] sm:$0xff] %v3340
        %3349 = vst [vmem:[%s199 + $0x18] sm:$0xff] %v3341
        %3350 = vst [vmem:[%s199 + $0x20] sm:$0xff] %v3342
        %3351 = vst [vmem:[%s199 + $0x28] sm:$0xff] %v3343
        %3352 = vst [vmem:[%s199 + $0x30] sm:$0xff] %v3344
        %3353 = vst [vmem:[%s199 + $0x38] sm:$0xff] %v3345
        %s3354 = sand.u32 %s134, 1
        %s3355 = scalar_lea.sflag [#allocation5], %s3354
        %s3356 = sand.u32 %s134, 1
        %s3357 = smul.addr %s3356, 64
        %s3358 = scalar_lea.vmem [#allocation4], %s3357
        // Predicated region
        $region89: #{tpu_custom_call.1} parent=35 // pred_check
          %p3359 = pneg %p144
        $region90: #{tpu_custom_call.1} parent=35 // pred_check_branch
          %3361 = sbr.rel (%p3359) target = $region92
        $region91: #{tpu_custom_call.1} parent=35 // pred_region
          %s3362 = smul.u32 8, %s25
          %3364 = vsyncadd %s3355, 0
          %s3365 = smul.addr %s3362, 2
          %s3366 = sadd.s32 %s26, %s3365
          %s3367 = smul.addr %s24, 32
          %s3368 = sadd.s32 %s3366, %s3367
          %s3369 = smul.addr %s3368, 8
          %s3370 = scalar_lea.hbm %s5, %s3369
          %s3371 = sshll.u32 %s3358, 4
          %s3372 = int_to_ptr.vmem [resolvable:$true] %s3371
          %s3373 = sshll.u32 %s3370, 4
          %s3374 = int_to_ptr.hbm [resolvable:$true] %s3373
          %3379 = dma.vmem_to_hbm [thread:$0]  %s3372, 1024, %s3374, %s3355, 128, 256, 8
        $region92: #{tpu_custom_call.1} parent=35 // pred_fallthru
          _
      $region36: #{tpu_custom_call.1} parent=5 // pred_fallthru
        _
      %p3380 = scmp.le.s32.totalorder 2, %s14
      // Predicated region
      $region93: #{tpu_custom_call.1} parent=5 // pred_check
        %p3381 = pneg %p3380
      $region94: #{tpu_custom_call.1} parent=5 // pred_check_branch
        %3383 = sbr.rel (%p3381) target = $region96
      $region95: #{tpu_custom_call.1} parent=5 // pred_region
        %s3384 = ssub.s32 %s14, 2
        // Predicated region
        $region97: #{tpu_custom_call.1} parent=95 // pred_check
          %p3385 = pneg %p150
        $region98: #{tpu_custom_call.1} parent=95 // pred_check_branch
          %3387 = sbr.rel (%p3385) target = $region100
        $region99: #{tpu_custom_call.1} parent=95 // pred_region
          %s3388 = sand.u32 %s135, 1
          %s3389 = scalar_lea.sflag [#allocation5], %s3388
          %s3390 = sand.u32 %s135, 1
          %s3391 = smul.addr %s3390, 64
          %s3392 = scalar_lea.vmem [#allocation4], %s3391
          %3394 = dma.done %s3389, 1024
        $region100: #{tpu_custom_call.1} parent=95 // pred_fallthru
          _
      $region96: #{tpu_custom_call.1} parent=5 // pred_fallthru
        _
    $region6: #{tpu_custom_call.1} parent=1 // loop_footer
      %s18 = sadd.s32 1, %s14
    $region7: #{tpu_custom_call.1} parent=1 // loop_footer_branch
      %13 = sbr.rel target = $region3
    $region8: #{tpu_custom_call.1} parent=1 // loop_exit
      _
    %3395 = vsyncpa [#allocation5], 1
    %s3396 = scalar_lea.sflag [#allocation5], 1
    %3397 = vsyncpa %s3396, 1
  %3398 = vsyncmov [#allocation3]
  %s3399 = vpop.sfrf %3398
  %p3400 = scmp.eq.s32.totalorder %s3399, 0
  %p3401 = pneg %p3400
  %3403 = shalt.err (%p3401)
  %s3404 = scalar_lea.sflag [#allocation3], 1
  %3405 = vsyncmov %s3404
  %s3406 = vpop.sfrf %3405
  %p3407 = scmp.eq.s32.totalorder %s3406, 0
  %p3408 = pneg %p3407
  %3410 = shalt.err (%p3408)

</llo_original>
